<compile_context>
chip_gen: v6e
topology: v6e:2x2x1
jax: 0.10.0
libtpu: 0.0.40
codegen_flags: <defaults>
</compile_context>

<pallas_src>
import functools
import math

import jax
import jax.numpy as jnp
import numpy as np
from jax import lax
from jax.experimental import pallas as pl
from jax.experimental.pallas import tpu as pltpu


_VMEM_SPEC = pl.BlockSpec(memory_space=pltpu.MemorySpace.VMEM)


def _lstm_cell(gates, c, hidden):
    """gates: [B, 4H] pre-activation (PyTorch i,f,g,o order); c: [B, H]."""
    i = jax.nn.sigmoid(gates[:, 0 * hidden:1 * hidden])
    f = jax.nn.sigmoid(gates[:, 1 * hidden:2 * hidden])
    g = jnp.tanh(gates[:, 2 * hidden:3 * hidden])
    o = jax.nn.sigmoid(gates[:, 3 * hidden:4 * hidden])
    c_new = f * c + i * g
    h_new = o * jnp.tanh(c_new)
    return h_new, c_new


def _fused_rnn_kernel(tok_ref, emb_ref,
                      wih1f_ref, whh1f_ref, b1f_ref,
                      wih1b_ref, whh1b_ref, b1b_ref,
                      wih2ff_ref, wih2fb_ref, whh2f_ref, b2f_ref,
                      wih2bf_ref, wih2bb_ref, whh2b_ref, b2b_ref,
                      wlin_ref, blin_ref,
                      out_ref,
                      h1f_ref, h1b_ref,
                      *, seq, batch, hidden, vocab):
    """Whole forward pass in one kernel.

    tok_ref : [S*B, 1] int32, time-major (row t*B + b == tokens[b, t])
    emb_ref : [V, E]
    layer-1 weights (per direction): w_ih [E, 4H], w_hh [H, 4H], b [1, 4H]
    layer-2 weights (per direction): w_ih split into from-fwd/from-bwd [H, 4H]
                                     each, w_hh [H, 4H], b [1, 4H]
    wlin    : [4H, H], blin: [1, H]
    out_ref : [B, H]
    h1f_ref / h1b_ref : VMEM scratch [S*B, H] holding layer-1 outputs.
    """
    S, B, H = seq, batch, hidden
    SB = S * B
    f32 = jnp.float32

    # ---- embedding: one-hot @ table (vocab tiny, stays on the MXU) ----------
    ids = tok_ref[...]                                              # [SB, 1]
    lanes = lax.broadcasted_iota(jnp.int32, (SB, vocab), 1)
    onehot = jnp.where(ids == lanes, 1.0, 0.0).astype(f32)          # [SB, V]
    x = jnp.dot(onehot, emb_ref[...], preferred_element_type=f32)   # [SB, E]

    def run_bidir(gx_f, gx_b, whh_f, whh_b, sto_f=None, sto_b=None):
        """Forward + backward recurrences, interleaved, fully unrolled.

        gx_f/gx_b: [SB, 4H] precomputed input-to-hidden gates (+bias).
        Returns (h_fwd at t=S-1, h_bwd at t=0, h_fwd at t=0, h_bwd at t=S-1).
        """
        hf = jnp.zeros((B, H), f32)
        cf = jnp.zeros((B, H), f32)
        hb = jnp.zeros((B, H), f32)
        cb = jnp.zeros((B, H), f32)
        hf_first = hb_first = None
        for t in range(S):                      # static unroll, S is small
            tf, tb = t, S - 1 - t
            # forward chain
            gf = gx_f[tf * B:(tf + 1) * B, :] + jnp.dot(
                hf, whh_f, preferred_element_type=f32)
            hf, cf = _lstm_cell(gf, cf, H)
            # backward chain (independent -> interleaves on the VLIW bundles)
            gb = gx_b[tb * B:(tb + 1) * B, :] + jnp.dot(
                hb, whh_b, preferred_element_type=f32)
            hb, cb = _lstm_cell(gb, cb, H)
            if sto_f is not None:
                sto_f[pl.ds(tf * B, B), :] = hf
                sto_b[pl.ds(tb * B, B), :] = hb
            if t == 0:
                hf_first, hb_first = hf, hb
        return hf, hb, hf_first, hb_first

    # -------------------------------- layer 1 --------------------------------
    whh1f = whh1f_ref[...]
    whh1b = whh1b_ref[...]
    gx1f = jnp.dot(x, wih1f_ref[...], preferred_element_type=f32) + b1f_ref[...]
    gx1b = jnp.dot(x, wih1b_ref[...], preferred_element_type=f32) + b1b_ref[...]
    run_bidir(gx1f, gx1b, whh1f, whh1b, h1f_ref, h1b_ref)

    # TODO(synk): inter-layer dropout (train-only) skipped: eval semantics.

    # -------------------------------- layer 2 --------------------------------
    h1f = h1f_ref[...]                                              # [SB, H]
    h1b = h1b_ref[...]                                              # [SB, H]
    gx2f = (jnp.dot(h1f, wih2ff_ref[...], preferred_element_type=f32)
            + jnp.dot(h1b, wih2fb_ref[...], preferred_element_type=f32)
            + b2f_ref[...])
    gx2b = (jnp.dot(h1f, wih2bf_ref[...], preferred_element_type=f32)
            + jnp.dot(h1b, wih2bb_ref[...], preferred_element_type=f32)
            + b2b_ref[...])
    hf_last, hb_t0, hf_t0, hb_last = run_bidir(
        gx2f, gx2b, whh2f_ref[...], whh2b_ref[...])

    # ---- feat = cat([out[:, -1, :], out[:, 0, :]], 1); relu(feat @ W1 + b1) --
    # feat @ W1 is decomposed per H-wide block so no in-kernel concat is needed.
    wlin = wlin_ref[...]                                            # [4H, H]
    y = (jnp.dot(hf_last, wlin[0 * H:1 * H, :], preferred_element_type=f32)
         + jnp.dot(hb_last, wlin[1 * H:2 * H, :], preferred_element_type=f32)
         + jnp.dot(hf_t0, wlin[2 * H:3 * H, :], preferred_element_type=f32)
         + jnp.dot(hb_t0, wlin[3 * H:4 * H, :], preferred_element_type=f32)
         + blin_ref[...])
    out_ref[...] = jnp.maximum(y, 0.0).astype(out_ref.dtype)


# ------------------------------- wrapper -------------------------------------

def model_forward(tokens, params, cfg):
    """tokens: int32 [B, S] -> float32 [B, hidden_size]."""
    assert cfg["num_layers"] == 2, "fused kernel is specialized to num_layers=2"
    B, S = tokens.shape
    H = cfg["hidden_size"]
    V = cfg["n_vocab"]

    # time-major flatten (tiny int glue): row t*B + b == tokens[b, t]
    tok = jnp.transpose(tokens).reshape(S * B, 1).astype(jnp.int32)

    kernel = functools.partial(_fused_rnn_kernel,
                               seq=S, batch=B, hidden=H, vocab=V)
    args = (
        tok, params["embedding"],
        params["l1f"]["w_ih_t"], params["l1f"]["w_hh_t"], params["l1f"]["b"],
        params["l1b"]["w_ih_t"], params["l1b"]["w_hh_t"], params["l1b"]["b"],
        params["l2f"]["w_ih_from_f"], params["l2f"]["w_ih_from_b"],
        params["l2f"]["w_hh_t"], params["l2f"]["b"],
        params["l2b"]["w_ih_from_f"], params["l2b"]["w_ih_from_b"],
        params["l2b"]["w_hh_t"], params["l2b"]["b"],
        params["lin1_w_t"], params["lin1_b"],
    )
    return pl.pallas_call(
        kernel,
        out_shape=jax.ShapeDtypeStruct((B, H), jnp.float32),
        in_specs=[_VMEM_SPEC] * len(args),
        out_specs=_VMEM_SPEC,
        scratch_shapes=[pltpu.VMEM((S * B, H), jnp.float32),   # layer-1 fwd out
                        pltpu.VMEM((S * B, H), jnp.float32)],  # layer-1 bwd out
    )(*args)


# --------------------------- parameter creation -------------------------------

def init_params(key, cfg):
    V, E = cfg["n_vocab"], cfg["embed"]
    H = cfg["hidden_size"]
    keys = iter(jax.random.split(key, 32))

    emb = 0.1 * jax.random.normal(next(keys), (V, E), jnp.float32)
    emb = emb.at[V - 1].set(0.0)                    # padding_idx = n_vocab - 1

    k = 1.0 / math.sqrt(H)

    def lstm_dir(d_in):
        w_ih = jax.random.uniform(next(keys), (4 * H, d_in), jnp.float32, -k, k)
        w_hh = jax.random.uniform(next(keys), (4 * H, H), jnp.float32, -k, k)
        b_ih = jax.random.uniform(next(keys), (4 * H,), jnp.float32, -k, k)
        b_hh = jax.random.uniform(next(keys), (4 * H,), jnp.float32, -k, k)
        return dict(w_ih_t=w_ih.T,                  # [d_in, 4H]
                    w_hh_t=w_hh.T,                  # [H, 4H]
                    b=(b_ih + b_hh)[None, :])       # [1, 4H]

    l1f = lstm_dir(E)
    l1b = lstm_dir(E)

    def split_l2(p):                                # layer-2 d_in = 2H
        w = p["w_ih_t"]                             # [2H, 4H]
        return dict(w_ih_from_f=w[:H, :], w_ih_from_b=w[H:, :],
                    w_hh_t=p["w_hh_t"], b=p["b"])

    l2f = split_l2(lstm_dir(2 * H))
    l2b = split_l2(lstm_dir(2 * H))

    k1 = 1.0 / math.sqrt(4 * H)
    lin_w = jax.random.uniform(next(keys), (H, 4 * H), jnp.float32, -k1, k1)
    lin_b = jax.random.uniform(next(keys), (H,), jnp.float32, -k1, k1)

    return dict(embedding=emb, l1f=l1f, l1b=l1b, l2f=l2f, l2b=l2b,
                lin1_w_t=lin_w.T,                   # [4H, H]
                lin1_b=lin_b[None, :])              # [1, H]


# ------------------------ pure-JAX reference (check) --------------------------

def _ref_forward(tokens, params, cfg):
    H = cfg["hidden_size"]
    B = tokens.shape[0]
    emb = params["embedding"][tokens]                               # [B, S, E]
    x = jnp.transpose(emb, (1, 0, 2)).astype(jnp.float32)           # [S, B, E]

    def run_dir(x_seq, w_ih_t, w_hh_t, b):
        def step(carry, xt):
            h, c = carry
            gates = xt @ w_ih_t + h @ w_hh_t + b
            i = jax.nn.sigmoid(gates[:, :H])
            f = jax.nn.sigmoid(gates[:, H:2 * H])
            g = jnp.tanh(gates[:, 2 * H:3 * H])
            o = jax.nn.sigmoid(gates[:, 3 * H:])
            c = f * c + i * g
            h = o * jnp.tanh(c)
            return (h, c), h
        init = (jnp.zeros((B, H), jnp.float32), jnp.zeros((B, H), jnp.float32))
        _, hs = lax.scan(step, init, x_seq)
        return hs                                                   # [S, B, H]

    hf1 = run_dir(x, params["l1f"]["w_ih_t"], params["l1f"]["w_hh_t"], params["l1f"]["b"])
    hb1 = run_dir(x[::-1], params["l1b"]["w_ih_t"], params["l1b"]["w_hh_t"], params["l1b"]["b"])[::-1]
    x2 = jnp.concatenate([hf1, hb1], axis=-1)

    w2f = jnp.concatenate([params["l2f"]["w_ih_from_f"], params["l2f"]["w_ih_from_b"]], axis=0)
    w2b = jnp.concatenate([params["l2b"]["w_ih_from_f"], params["l2b"]["w_ih_from_b"]], axis=0)
    hf2 = run_dir(x2, w2f, params["l2f"]["w_hh_t"], params["l2f"]["b"])
    hb2 = run_dir(x2[::-1], w2b, params["l2b"]["w_hh_t"], params["l2b"]["b"])[::-1]

    out = jnp.transpose(jnp.concatenate([hf2, hb2], axis=-1), (1, 0, 2))  # [B,S,2H]
    feat = jnp.concatenate([out[:, -1, :], out[:, 0, :]], axis=1)         # [B,4H]
    return jnp.maximum(feat @ params["lin1_w_t"] + params["lin1_b"], 0.0)


# ----------------------------------- main -------------------------------------

if __name__ == "__main__":
    cfg = dict(
        n_vocab=32,
        embed=16,
        hidden_size=32,
        num_layers=2,
        num_classes=4,   # unused by forward()
        dropout=0.0,
    )
    B, S = 2, 8

    key = jax.random.PRNGKey(0)
    k_param, k_tok = jax.random.split(key)
    params = init_params(k_param, cfg)
    tokens = jax.random.randint(k_tok, (B, S), 0, cfg["n_vocab"], dtype=jnp.int32)

    fwd = jax.jit(functools.partial(model_forward, cfg=cfg))
    out = jax.block_until_ready(fwd(tokens, params))

    assert out.shape == (B, cfg["hidden_size"]), out.shape
    assert bool(jnp.all(jnp.isfinite(out)))

    # correctness spot-check against a pure-JAX reference
    with jax.default_matmul_precision("float32"):
        ref = _ref_forward(tokens, params, cfg)
    np.testing.assert_allclose(np.asarray(out), np.asarray(ref),
                               rtol=5e-2, atol=5e-3)

    print("KERNEL_OK")
</pallas_src>

<mosaic_0001>
module attributes {stable_mosaic.version = 11 : i64} {
  func.func @_fused_rnn_kernel(%arg0: memref<16x1xi32, #tpu.memory_space<vmem>>, %arg1: memref<32x16xf32, #tpu.memory_space<vmem>>, %arg2: memref<16x128xf32, #tpu.memory_space<vmem>>, %arg3: memref<32x128xf32, #tpu.memory_space<vmem>>, %arg4: memref<1x128xf32, #tpu.memory_space<vmem>>, %arg5: memref<16x128xf32, #tpu.memory_space<vmem>>, %arg6: memref<32x128xf32, #tpu.memory_space<vmem>>, %arg7: memref<1x128xf32, #tpu.memory_space<vmem>>, %arg8: memref<32x128xf32, #tpu.memory_space<vmem>>, %arg9: memref<32x128xf32, #tpu.memory_space<vmem>>, %arg10: memref<32x128xf32, #tpu.memory_space<vmem>>, %arg11: memref<1x128xf32, #tpu.memory_space<vmem>>, %arg12: memref<32x128xf32, #tpu.memory_space<vmem>>, %arg13: memref<32x128xf32, #tpu.memory_space<vmem>>, %arg14: memref<32x128xf32, #tpu.memory_space<vmem>>, %arg15: memref<1x128xf32, #tpu.memory_space<vmem>>, %arg16: memref<128x32xf32, #tpu.memory_space<vmem>>, %arg17: memref<1x32xf32, #tpu.memory_space<vmem>>, %arg18: memref<2x32xf32, #tpu.memory_space<vmem>>, %arg19: memref<16x32xf32, #tpu.memory_space<vmem>>, %arg20: memref<16x32xf32, #tpu.memory_space<vmem>>) attributes {dimension_semantics = [], scalar_prefetch = 0 : i64, scratch_operands = 2 : i64, tpu.core_type = #tpu.core_type<tc>} {
    %c0 = arith.constant 0 : index
    %c0_0 = arith.constant 0 : index
    %0 = vector.load %arg0[%c0, %c0_0] : memref<16x1xi32, #tpu.memory_space<vmem>>, vector<16x1xi32>
    %1 = tpu.iota {dimensions = array<i32: 1>} : vector<16x32xi32>
    %2 = vector.broadcast %0 : vector<16x1xi32> to vector<16x32xi32>
    %3 = arith.cmpi eq, %2, %1 : vector<16x32xi32>
    %cst = arith.constant 1.000000e+00 : f32
    %cst_1 = arith.constant 0.000000e+00 : f32
    %4 = vector.broadcast %cst : f32 to vector<16x32xf32>
    %5 = vector.broadcast %cst_1 : f32 to vector<16x32xf32>
    %6 = arith.select %3, %4, %5 : vector<16x32xi1>, vector<16x32xf32>
    %c0_2 = arith.constant 0 : index
    %c0_3 = arith.constant 0 : index
    %7 = vector.load %arg1[%c0_2, %c0_3] : memref<32x16xf32, #tpu.memory_space<vmem>>, vector<32x16xf32>
    %cst_4 = arith.constant dense<0.000000e+00> : vector<16x16xf32>
    %8 = tpu.matmul %6, %7, %cst_4 {dimension_numbers = #tpu.dot_dimension_numbers<[1], [0], [0], [1], [0, 0, 1, 1], [], []>} : vector<16x32xf32>, vector<32x16xf32>, vector<16x16xf32> -> vector<16x16xf32>
    %c0_5 = arith.constant 0 : index
    %c0_6 = arith.constant 0 : index
    %9 = vector.load %arg3[%c0_5, %c0_6] : memref<32x128xf32, #tpu.memory_space<vmem>>, vector<32x128xf32>
    %c0_7 = arith.constant 0 : index
    %c0_8 = arith.constant 0 : index
    %10 = vector.load %arg6[%c0_7, %c0_8] : memref<32x128xf32, #tpu.memory_space<vmem>>, vector<32x128xf32>
    %c0_9 = arith.constant 0 : index
    %c0_10 = arith.constant 0 : index
    %11 = vector.load %arg2[%c0_9, %c0_10] : memref<16x128xf32, #tpu.memory_space<vmem>>, vector<16x128xf32>
    %cst_11 = arith.constant dense<0.000000e+00> : vector<16x128xf32>
    %12 = tpu.matmul %8, %11, %cst_11 {dimension_numbers = #tpu.dot_dimension_numbers<[1], [0], [0], [1], [0, 0, 1, 1], [], []>} : vector<16x16xf32>, vector<16x128xf32>, vector<16x128xf32> -> vector<16x128xf32>
    %c0_12 = arith.constant 0 : index
    %c0_13 = arith.constant 0 : index
    %13 = vector.load %arg4[%c0_12, %c0_13] : memref<1x128xf32, #tpu.memory_space<vmem>>, vector<1x128xf32>
    %14 = vector.broadcast %13 : vector<1x128xf32> to vector<16x128xf32>
    %15 = arith.addf %12, %14 : vector<16x128xf32>
    %c0_14 = arith.constant 0 : index
    %c0_15 = arith.constant 0 : index
    %16 = vector.load %arg5[%c0_14, %c0_15] : memref<16x128xf32, #tpu.memory_space<vmem>>, vector<16x128xf32>
    %cst_16 = arith.constant dense<0.000000e+00> : vector<16x128xf32>
    %17 = tpu.matmul %8, %16, %cst_16 {dimension_numbers = #tpu.dot_dimension_numbers<[1], [0], [0], [1], [0, 0, 1, 1], [], []>} : vector<16x16xf32>, vector<16x128xf32>, vector<16x128xf32> -> vector<16x128xf32>
    %c0_17 = arith.constant 0 : index
    %c0_18 = arith.constant 0 : index
    %18 = vector.load %arg7[%c0_17, %c0_18] : memref<1x128xf32, #tpu.memory_space<vmem>>, vector<1x128xf32>
    %19 = vector.broadcast %18 : vector<1x128xf32> to vector<16x128xf32>
    %20 = arith.addf %17, %19 : vector<16x128xf32>
    %cst_19 = arith.constant 0.000000e+00 : f32
    %21 = vector.broadcast %cst_19 : f32 to vector<2x32xf32>
    %cst_20 = arith.constant 0.000000e+00 : f32
    %22 = vector.broadcast %cst_20 : f32 to vector<2x32xf32>
    %cst_21 = arith.constant 0.000000e+00 : f32
    %23 = vector.broadcast %cst_21 : f32 to vector<2x32xf32>
    %cst_22 = arith.constant 0.000000e+00 : f32
    %24 = vector.broadcast %cst_22 : f32 to vector<2x32xf32>
    %25 = vector.extract_strided_slice %15 {offsets = [0, 0], sizes = [2, 128], strides = [1, 1]} : vector<16x128xf32> to vector<2x128xf32>
    %cst_23 = arith.constant dense<0.000000e+00> : vector<2x128xf32>
    %26 = tpu.matmul %21, %9, %cst_23 {dimension_numbers = #tpu.dot_dimension_numbers<[1], [0], [0], [1], [0, 0, 1, 1], [], []>} : vector<2x32xf32>, vector<32x128xf32>, vector<2x128xf32> -> vector<2x128xf32>
    %27 = arith.addf %25, %26 : vector<2x128xf32>
    %28 = vector.extract_strided_slice %27 {offsets = [0, 0], sizes = [2, 32], strides = [1, 1]} : vector<2x128xf32> to vector<2x32xf32>
    %29 = arith.negf %28 : vector<2x32xf32>
    %30 = math.exp %29 : vector<2x32xf32>
    %cst_24 = arith.constant 1.000000e+00 : f32
    %31 = vector.broadcast %cst_24 : f32 to vector<2x32xf32>
    %32 = arith.addf %31, %30 : vector<2x32xf32>
    %33 = arith.divf %31, %32 : vector<2x32xf32>
    %34 = vector.extract_strided_slice %27 {offsets = [0, 32], sizes = [2, 32], strides = [1, 1]} : vector<2x128xf32> to vector<2x32xf32>
    %35 = arith.negf %34 : vector<2x32xf32>
    %36 = math.exp %35 : vector<2x32xf32>
    %cst_25 = arith.constant 1.000000e+00 : f32
    %37 = vector.broadcast %cst_25 : f32 to vector<2x32xf32>
    %38 = arith.addf %37, %36 : vector<2x32xf32>
    %39 = arith.divf %37, %38 : vector<2x32xf32>
    %40 = vector.extract_strided_slice %27 {offsets = [0, 64], sizes = [2, 32], strides = [1, 1]} : vector<2x128xf32> to vector<2x32xf32>
    %41 = math.tanh %40 : vector<2x32xf32>
    %42 = vector.extract_strided_slice %27 {offsets = [0, 96], sizes = [2, 32], strides = [1, 1]} : vector<2x128xf32> to vector<2x32xf32>
    %43 = arith.negf %42 : vector<2x32xf32>
    %44 = math.exp %43 : vector<2x32xf32>
    %cst_26 = arith.constant 1.000000e+00 : f32
    %45 = vector.broadcast %cst_26 : f32 to vector<2x32xf32>
    %46 = arith.addf %45, %44 : vector<2x32xf32>
    %47 = arith.divf %45, %46 : vector<2x32xf32>
    %48 = arith.mulf %39, %22 : vector<2x32xf32>
    %49 = arith.mulf %33, %41 : vector<2x32xf32>
    %50 = arith.addf %48, %49 : vector<2x32xf32>
    %51 = math.tanh %50 : vector<2x32xf32>
    %52 = arith.mulf %47, %51 : vector<2x32xf32>
    %53 = vector.extract_strided_slice %20 {offsets = [14, 0], sizes = [2, 128], strides = [1, 1]} : vector<16x128xf32> to vector<2x128xf32>
    %cst_27 = arith.constant dense<0.000000e+00> : vector<2x128xf32>
    %54 = tpu.matmul %23, %10, %cst_27 {dimension_numbers = #tpu.dot_dimension_numbers<[1], [0], [0], [1], [0, 0, 1, 1], [], []>} : vector<2x32xf32>, vector<32x128xf32>, vector<2x128xf32> -> vector<2x128xf32>
    %55 = arith.addf %53, %54 : vector<2x128xf32>
    %56 = vector.extract_strided_slice %55 {offsets = [0, 0], sizes = [2, 32], strides = [1, 1]} : vector<2x128xf32> to vector<2x32xf32>
    %57 = arith.negf %56 : vector<2x32xf32>
    %58 = math.exp %57 : vector<2x32xf32>
    %cst_28 = arith.constant 1.000000e+00 : f32
    %59 = vector.broadcast %cst_28 : f32 to vector<2x32xf32>
    %60 = arith.addf %59, %58 : vector<2x32xf32>
    %61 = arith.divf %59, %60 : vector<2x32xf32>
    %62 = vector.extract_strided_slice %55 {offsets = [0, 32], sizes = [2, 32], strides = [1, 1]} : vector<2x128xf32> to vector<2x32xf32>
    %63 = arith.negf %62 : vector<2x32xf32>
    %64 = math.exp %63 : vector<2x32xf32>
    %cst_29 = arith.constant 1.000000e+00 : f32
    %65 = vector.broadcast %cst_29 : f32 to vector<2x32xf32>
    %66 = arith.addf %65, %64 : vector<2x32xf32>
    %67 = arith.divf %65, %66 : vector<2x32xf32>
    %68 = vector.extract_strided_slice %55 {offsets = [0, 64], sizes = [2, 32], strides = [1, 1]} : vector<2x128xf32> to vector<2x32xf32>
    %69 = math.tanh %68 : vector<2x32xf32>
    %70 = vector.extract_strided_slice %55 {offsets = [0, 96], sizes = [2, 32], strides = [1, 1]} : vector<2x128xf32> to vector<2x32xf32>
    %71 = arith.negf %70 : vector<2x32xf32>
    %72 = math.exp %71 : vector<2x32xf32>
    %cst_30 = arith.constant 1.000000e+00 : f32
    %73 = vector.broadcast %cst_30 : f32 to vector<2x32xf32>
    %74 = arith.addf %73, %72 : vector<2x32xf32>
    %75 = arith.divf %73, %74 : vector<2x32xf32>
    %76 = arith.mulf %67, %24 : vector<2x32xf32>
    %77 = arith.mulf %61, %69 : vector<2x32xf32>
    %78 = arith.addf %76, %77 : vector<2x32xf32>
    %79 = math.tanh %78 : vector<2x32xf32>
    %80 = arith.mulf %75, %79 : vector<2x32xf32>
    %c0_31 = arith.constant 0 : index
    %c0_32 = arith.constant 0 : index
    %81 = vector.load %arg19[%c0_31, %c0_32] : memref<16x32xf32, #tpu.memory_space<vmem>>, vector<2x32xf32>
    tpu.vector_store %arg19[%c0_31, %c0_32], %52 {strides = array<i32>} : memref<16x32xf32, #tpu.memory_space<vmem>>, vector<2x32xf32>,
    %c14 = arith.constant 14 : index
    %c0_33 = arith.constant 0 : index
    %82 = vector.load %arg20[%c14, %c0_33] : memref<16x32xf32, #tpu.memory_space<vmem>>, vector<2x32xf32>
    tpu.vector_store %arg20[%c14, %c0_33], %80 {strides = array<i32>} : memref<16x32xf32, #tpu.memory_space<vmem>>, vector<2x32xf32>,
    %83 = vector.extract_strided_slice %15 {offsets = [2, 0], sizes = [2, 128], strides = [1, 1]} : vector<16x128xf32> to vector<2x128xf32>
    %cst_34 = arith.constant dense<0.000000e+00> : vector<2x128xf32>
    %84 = tpu.matmul %52, %9, %cst_34 {dimension_numbers = #tpu.dot_dimension_numbers<[1], [0], [0], [1], [0, 0, 1, 1], [], []>} : vector<2x32xf32>, vector<32x128xf32>, vector<2x128xf32> -> vector<2x128xf32>
    %85 = arith.addf %83, %84 : vector<2x128xf32>
    %86 = vector.extract_strided_slice %85 {offsets = [0, 0], sizes = [2, 32], strides = [1, 1]} : vector<2x128xf32> to vector<2x32xf32>
    %87 = arith.negf %86 : vector<2x32xf32>
    %88 = math.exp %87 : vector<2x32xf32>
    %cst_35 = arith.constant 1.000000e+00 : f32
    %89 = vector.broadcast %cst_35 : f32 to vector<2x32xf32>
    %90 = arith.addf %89, %88 : vector<2x32xf32>
    %91 = arith.divf %89, %90 : vector<2x32xf32>
    %92 = vector.extract_strided_slice %85 {offsets = [0, 32], sizes = [2, 32], strides = [1, 1]} : vector<2x128xf32> to vector<2x32xf32>
    %93 = arith.negf %92 : vector<2x32xf32>
    %94 = math.exp %93 : vector<2x32xf32>
    %cst_36 = arith.constant 1.000000e+00 : f32
    %95 = vector.broadcast %cst_36 : f32 to vector<2x32xf32>
    %96 = arith.addf %95, %94 : vector<2x32xf32>
    %97 = arith.divf %95, %96 : vector<2x32xf32>
    %98 = vector.extract_strided_slice %85 {offsets = [0, 64], sizes = [2, 32], strides = [1, 1]} : vector<2x128xf32> to vector<2x32xf32>
    %99 = math.tanh %98 : vector<2x32xf32>
    %100 = vector.extract_strided_slice %85 {offsets = [0, 96], sizes = [2, 32], strides = [1, 1]} : vector<2x128xf32> to vector<2x32xf32>
    %101 = arith.negf %100 : vector<2x32xf32>
    %102 = math.exp %101 : vector<2x32xf32>
    %cst_37 = arith.constant 1.000000e+00 : f32
    %103 = vector.broadcast %cst_37 : f32 to vector<2x32xf32>
    %104 = arith.addf %103, %102 : vector<2x32xf32>
    %105 = arith.divf %103, %104 : vector<2x32xf32>
    %106 = arith.mulf %97, %50 : vector<2x32xf32>
    %107 = arith.mulf %91, %99 : vector<2x32xf32>
    %108 = arith.addf %106, %107 : vector<2x32xf32>
    %109 = math.tanh %108 : vector<2x32xf32>
    %110 = arith.mulf %105, %109 : vector<2x32xf32>
    %111 = vector.extract_strided_slice %20 {offsets = [12, 0], sizes = [2, 128], strides = [1, 1]} : vector<16x128xf32> to vector<2x128xf32>
    %cst_38 = arith.constant dense<0.000000e+00> : vector<2x128xf32>
    %112 = tpu.matmul %80, %10, %cst_38 {dimension_numbers = #tpu.dot_dimension_numbers<[1], [0], [0], [1], [0, 0, 1, 1], [], []>} : vector<2x32xf32>, vector<32x128xf32>, vector<2x128xf32> -> vector<2x128xf32>
    %113 = arith.addf %111, %112 : vector<2x128xf32>
    %114 = vector.extract_strided_slice %113 {offsets = [0, 0], sizes = [2, 32], strides = [1, 1]} : vector<2x128xf32> to vector<2x32xf32>
    %115 = arith.negf %114 : vector<2x32xf32>
    %116 = math.exp %115 : vector<2x32xf32>
    %cst_39 = arith.constant 1.000000e+00 : f32
    %117 = vector.broadcast %cst_39 : f32 to vector<2x32xf32>
    %118 = arith.addf %117, %116 : vector<2x32xf32>
    %119 = arith.divf %117, %118 : vector<2x32xf32>
    %120 = vector.extract_strided_slice %113 {offsets = [0, 32], sizes = [2, 32], strides = [1, 1]} : vector<2x128xf32> to vector<2x32xf32>
    %121 = arith.negf %120 : vector<2x32xf32>
    %122 = math.exp %121 : vector<2x32xf32>
    %cst_40 = arith.constant 1.000000e+00 : f32
    %123 = vector.broadcast %cst_40 : f32 to vector<2x32xf32>
    %124 = arith.addf %123, %122 : vector<2x32xf32>
    %125 = arith.divf %123, %124 : vector<2x32xf32>
    %126 = vector.extract_strided_slice %113 {offsets = [0, 64], sizes = [2, 32], strides = [1, 1]} : vector<2x128xf32> to vector<2x32xf32>
    %127 = math.tanh %126 : vector<2x32xf32>
    %128 = vector.extract_strided_slice %113 {offsets = [0, 96], sizes = [2, 32], strides = [1, 1]} : vector<2x128xf32> to vector<2x32xf32>
    %129 = arith.negf %128 : vector<2x32xf32>
    %130 = math.exp %129 : vector<2x32xf32>
    %cst_41 = arith.constant 1.000000e+00 : f32
    %131 = vector.broadcast %cst_41 : f32 to vector<2x32xf32>
    %132 = arith.addf %131, %130 : vector<2x32xf32>
    %133 = arith.divf %131, %132 : vector<2x32xf32>
    %134 = arith.mulf %125, %78 : vector<2x32xf32>
    %135 = arith.mulf %119, %127 : vector<2x32xf32>
    %136 = arith.addf %134, %135 : vector<2x32xf32>
    %137 = math.tanh %136 : vector<2x32xf32>
    %138 = arith.mulf %133, %137 : vector<2x32xf32>
    %c2 = arith.constant 2 : index
    %c0_42 = arith.constant 0 : index
    %139 = vector.load %arg19[%c2, %c0_42] : memref<16x32xf32, #tpu.memory_space<vmem>>, vector<2x32xf32>
    tpu.vector_store %arg19[%c2, %c0_42], %110 {strides = array<i32>} : memref<16x32xf32, #tpu.memory_space<vmem>>, vector<2x32xf32>,
    %c12 = arith.constant 12 : index
    %c0_43 = arith.constant 0 : index
    %140 = vector.load %arg20[%c12, %c0_43] : memref<16x32xf32, #tpu.memory_space<vmem>>, vector<2x32xf32>
    tpu.vector_store %arg20[%c12, %c0_43], %138 {strides = array<i32>} : memref<16x32xf32, #tpu.memory_space<vmem>>, vector<2x32xf32>,
    %141 = vector.extract_strided_slice %15 {offsets = [4, 0], sizes = [2, 128], strides = [1, 1]} : vector<16x128xf32> to vector<2x128xf32>
    %cst_44 = arith.constant dense<0.000000e+00> : vector<2x128xf32>
    %142 = tpu.matmul %110, %9, %cst_44 {dimension_numbers = #tpu.dot_dimension_numbers<[1], [0], [0], [1], [0, 0, 1, 1], [], []>} : vector<2x32xf32>, vector<32x128xf32>, vector<2x128xf32> -> vector<2x128xf32>
    %143 = arith.addf %141, %142 : vector<2x128xf32>
    %144 = vector.extract_strided_slice %143 {offsets = [0, 0], sizes = [2, 32], strides = [1, 1]} : vector<2x128xf32> to vector<2x32xf32>
    %145 = arith.negf %144 : vector<2x32xf32>
    %146 = math.exp %145 : vector<2x32xf32>
    %cst_45 = arith.constant 1.000000e+00 : f32
    %147 = vector.broadcast %cst_45 : f32 to vector<2x32xf32>
    %148 = arith.addf %147, %146 : vector<2x32xf32>
    %149 = arith.divf %147, %148 : vector<2x32xf32>
    %150 = vector.extract_strided_slice %143 {offsets = [0, 32], sizes = [2, 32], strides = [1, 1]} : vector<2x128xf32> to vector<2x32xf32>
    %151 = arith.negf %150 : vector<2x32xf32>
    %152 = math.exp %151 : vector<2x32xf32>
    %cst_46 = arith.constant 1.000000e+00 : f32
    %153 = vector.broadcast %cst_46 : f32 to vector<2x32xf32>
    %154 = arith.addf %153, %152 : vector<2x32xf32>
    %155 = arith.divf %153, %154 : vector<2x32xf32>
    %156 = vector.extract_strided_slice %143 {offsets = [0, 64], sizes = [2, 32], strides = [1, 1]} : vector<2x128xf32> to vector<2x32xf32>
    %157 = math.tanh %156 : vector<2x32xf32>
    %158 = vector.extract_strided_slice %143 {offsets = [0, 96], sizes = [2, 32], strides = [1, 1]} : vector<2x128xf32> to vector<2x32xf32>
    %159 = arith.negf %158 : vector<2x32xf32>
    %160 = math.exp %159 : vector<2x32xf32>
    %cst_47 = arith.constant 1.000000e+00 : f32
    %161 = vector.broadcast %cst_47 : f32 to vector<2x32xf32>
    %162 = arith.addf %161, %160 : vector<2x32xf32>
    %163 = arith.divf %161, %162 : vector<2x32xf32>
    %164 = arith.mulf %155, %108 : vector<2x32xf32>
    %165 = arith.mulf %149, %157 : vector<2x32xf32>
    %166 = arith.addf %164, %165 : vector<2x32xf32>
    %167 = math.tanh %166 : vector<2x32xf32>
    %168 = arith.mulf %163, %167 : vector<2x32xf32>
    %169 = vector.extract_strided_slice %20 {offsets = [10, 0], sizes = [2, 128], strides = [1, 1]} : vector<16x128xf32> to vector<2x128xf32>
    %cst_48 = arith.constant dense<0.000000e+00> : vector<2x128xf32>
    %170 = tpu.matmul %138, %10, %cst_48 {dimension_numbers = #tpu.dot_dimension_numbers<[1], [0], [0], [1], [0, 0, 1, 1], [], []>} : vector<2x32xf32>, vector<32x128xf32>, vector<2x128xf32> -> vector<2x128xf32>
    %171 = arith.addf %169, %170 : vector<2x128xf32>
    %172 = vector.extract_strided_slice %171 {offsets = [0, 0], sizes = [2, 32], strides = [1, 1]} : vector<2x128xf32> to vector<2x32xf32>
    %173 = arith.negf %172 : vector<2x32xf32>
    %174 = math.exp %173 : vector<2x32xf32>
    %cst_49 = arith.constant 1.000000e+00 : f32
    %175 = vector.broadcast %cst_49 : f32 to vector<2x32xf32>
    %176 = arith.addf %175, %174 : vector<2x32xf32>
    %177 = arith.divf %175, %176 : vector<2x32xf32>
    %178 = vector.extract_strided_slice %171 {offsets = [0, 32], sizes = [2, 32], strides = [1, 1]} : vector<2x128xf32> to vector<2x32xf32>
    %179 = arith.negf %178 : vector<2x32xf32>
    %180 = math.exp %179 : vector<2x32xf32>
    %cst_50 = arith.constant 1.000000e+00 : f32
    %181 = vector.broadcast %cst_50 : f32 to vector<2x32xf32>
    %182 = arith.addf %181, %180 : vector<2x32xf32>
    %183 = arith.divf %181, %182 : vector<2x32xf32>
    %184 = vector.extract_strided_slice %171 {offsets = [0, 64], sizes = [2, 32], strides = [1, 1]} : vector<2x128xf32> to vector<2x32xf32>
    %185 = math.tanh %184 : vector<2x32xf32>
    %186 = vector.extract_strided_slice %171 {offsets = [0, 96], sizes = [2, 32], strides = [1, 1]} : vector<2x128xf32> to vector<2x32xf32>
    %187 = arith.negf %186 : vector<2x32xf32>
    %188 = math.exp %187 : vector<2x32xf32>
    %cst_51 = arith.constant 1.000000e+00 : f32
    %189 = vector.broadcast %cst_51 : f32 to vector<2x32xf32>
    %190 = arith.addf %189, %188 : vector<2x32xf32>
    %191 = arith.divf %189, %190 : vector<2x32xf32>
    %192 = arith.mulf %183, %136 : vector<2x32xf32>
    %193 = arith.mulf %177, %185 : vector<2x32xf32>
    %194 = arith.addf %192, %193 : vector<2x32xf32>
    %195 = math.tanh %194 : vector<2x32xf32>
    %196 = arith.mulf %191, %195 : vector<2x32xf32>
    %c4 = arith.constant 4 : index
    %c0_52 = arith.constant 0 : index
    %197 = vector.load %arg19[%c4, %c0_52] : memref<16x32xf32, #tpu.memory_space<vmem>>, vector<2x32xf32>
    tpu.vector_store %arg19[%c4, %c0_52], %168 {strides = array<i32>} : memref<16x32xf32, #tpu.memory_space<vmem>>, vector<2x32xf32>,
    %c10 = arith.constant 10 : index
    %c0_53 = arith.constant 0 : index
    %198 = vector.load %arg20[%c10, %c0_53] : memref<16x32xf32, #tpu.memory_space<vmem>>, vector<2x32xf32>
    tpu.vector_store %arg20[%c10, %c0_53], %196 {strides = array<i32>} : memref<16x32xf32, #tpu.memory_space<vmem>>, vector<2x32xf32>,
    %199 = vector.extract_strided_slice %15 {offsets = [6, 0], sizes = [2, 128], strides = [1, 1]} : vector<16x128xf32> to vector<2x128xf32>
    %cst_54 = arith.constant dense<0.000000e+00> : vector<2x128xf32>
    %200 = tpu.matmul %168, %9, %cst_54 {dimension_numbers = #tpu.dot_dimension_numbers<[1], [0], [0], [1], [0, 0, 1, 1], [], []>} : vector<2x32xf32>, vector<32x128xf32>, vector<2x128xf32> -> vector<2x128xf32>
    %201 = arith.addf %199, %200 : vector<2x128xf32>
    %202 = vector.extract_strided_slice %201 {offsets = [0, 0], sizes = [2, 32], strides = [1, 1]} : vector<2x128xf32> to vector<2x32xf32>
    %203 = arith.negf %202 : vector<2x32xf32>
    %204 = math.exp %203 : vector<2x32xf32>
    %cst_55 = arith.constant 1.000000e+00 : f32
    %205 = vector.broadcast %cst_55 : f32 to vector<2x32xf32>
    %206 = arith.addf %205, %204 : vector<2x32xf32>
    %207 = arith.divf %205, %206 : vector<2x32xf32>
    %208 = vector.extract_strided_slice %201 {offsets = [0, 32], sizes = [2, 32], strides = [1, 1]} : vector<2x128xf32> to vector<2x32xf32>
    %209 = arith.negf %208 : vector<2x32xf32>
    %210 = math.exp %209 : vector<2x32xf32>
    %cst_56 = arith.constant 1.000000e+00 : f32
    %211 = vector.broadcast %cst_56 : f32 to vector<2x32xf32>
    %212 = arith.addf %211, %210 : vector<2x32xf32>
    %213 = arith.divf %211, %212 : vector<2x32xf32>
    %214 = vector.extract_strided_slice %201 {offsets = [0, 64], sizes = [2, 32], strides = [1, 1]} : vector<2x128xf32> to vector<2x32xf32>
    %215 = math.tanh %214 : vector<2x32xf32>
    %216 = vector.extract_strided_slice %201 {offsets = [0, 96], sizes = [2, 32], strides = [1, 1]} : vector<2x128xf32> to vector<2x32xf32>
    %217 = arith.negf %216 : vector<2x32xf32>
    %218 = math.exp %217 : vector<2x32xf32>
    %cst_57 = arith.constant 1.000000e+00 : f32
    %219 = vector.broadcast %cst_57 : f32 to vector<2x32xf32>
    %220 = arith.addf %219, %218 : vector<2x32xf32>
    %221 = arith.divf %219, %220 : vector<2x32xf32>
    %222 = arith.mulf %213, %166 : vector<2x32xf32>
    %223 = arith.mulf %207, %215 : vector<2x32xf32>
    %224 = arith.addf %222, %223 : vector<2x32xf32>
    %225 = math.tanh %224 : vector<2x32xf32>
    %226 = arith.mulf %221, %225 : vector<2x32xf32>
    %227 = vector.extract_strided_slice %20 {offsets = [8, 0], sizes = [2, 128], strides = [1, 1]} : vector<16x128xf32> to vector<2x128xf32>
    %cst_58 = arith.constant dense<0.000000e+00> : vector<2x128xf32>
    %228 = tpu.matmul %196, %10, %cst_58 {dimension_numbers = #tpu.dot_dimension_numbers<[1], [0], [0], [1], [0, 0, 1, 1], [], []>} : vector<2x32xf32>, vector<32x128xf32>, vector<2x128xf32> -> vector<2x128xf32>
    %229 = arith.addf %227, %228 : vector<2x128xf32>
    %230 = vector.extract_strided_slice %229 {offsets = [0, 0], sizes = [2, 32], strides = [1, 1]} : vector<2x128xf32> to vector<2x32xf32>
    %231 = arith.negf %230 : vector<2x32xf32>
    %232 = math.exp %231 : vector<2x32xf32>
    %cst_59 = arith.constant 1.000000e+00 : f32
    %233 = vector.broadcast %cst_59 : f32 to vector<2x32xf32>
    %234 = arith.addf %233, %232 : vector<2x32xf32>
    %235 = arith.divf %233, %234 : vector<2x32xf32>
    %236 = vector.extract_strided_slice %229 {offsets = [0, 32], sizes = [2, 32], strides = [1, 1]} : vector<2x128xf32> to vector<2x32xf32>
    %237 = arith.negf %236 : vector<2x32xf32>
    %238 = math.exp %237 : vector<2x32xf32>
    %cst_60 = arith.constant 1.000000e+00 : f32
    %239 = vector.broadcast %cst_60 : f32 to vector<2x32xf32>
    %240 = arith.addf %239, %238 : vector<2x32xf32>
    %241 = arith.divf %239, %240 : vector<2x32xf32>
    %242 = vector.extract_strided_slice %229 {offsets = [0, 64], sizes = [2, 32], strides = [1, 1]} : vector<2x128xf32> to vector<2x32xf32>
    %243 = math.tanh %242 : vector<2x32xf32>
    %244 = vector.extract_strided_slice %229 {offsets = [0, 96], sizes = [2, 32], strides = [1, 1]} : vector<2x128xf32> to vector<2x32xf32>
    %245 = arith.negf %244 : vector<2x32xf32>
    %246 = math.exp %245 : vector<2x32xf32>
    %cst_61 = arith.constant 1.000000e+00 : f32
    %247 = vector.broadcast %cst_61 : f32 to vector<2x32xf32>
    %248 = arith.addf %247, %246 : vector<2x32xf32>
    %249 = arith.divf %247, %248 : vector<2x32xf32>
    %250 = arith.mulf %241, %194 : vector<2x32xf32>
    %251 = arith.mulf %235, %243 : vector<2x32xf32>
    %252 = arith.addf %250, %251 : vector<2x32xf32>
    %253 = math.tanh %252 : vector<2x32xf32>
    %254 = arith.mulf %249, %253 : vector<2x32xf32>
    %c6 = arith.constant 6 : index
    %c0_62 = arith.constant 0 : index
    %255 = vector.load %arg19[%c6, %c0_62] : memref<16x32xf32, #tpu.memory_space<vmem>>, vector<2x32xf32>
    tpu.vector_store %arg19[%c6, %c0_62], %226 {strides = array<i32>} : memref<16x32xf32, #tpu.memory_space<vmem>>, vector<2x32xf32>,
    %c8 = arith.constant 8 : index
    %c0_63 = arith.constant 0 : index
    %256 = vector.load %arg20[%c8, %c0_63] : memref<16x32xf32, #tpu.memory_space<vmem>>, vector<2x32xf32>
    tpu.vector_store %arg20[%c8, %c0_63], %254 {strides = array<i32>} : memref<16x32xf32, #tpu.memory_space<vmem>>, vector<2x32xf32>,
    %257 = vector.extract_strided_slice %15 {offsets = [8, 0], sizes = [2, 128], strides = [1, 1]} : vector<16x128xf32> to vector<2x128xf32>
    %cst_64 = arith.constant dense<0.000000e+00> : vector<2x128xf32>
    %258 = tpu.matmul %226, %9, %cst_64 {dimension_numbers = #tpu.dot_dimension_numbers<[1], [0], [0], [1], [0, 0, 1, 1], [], []>} : vector<2x32xf32>, vector<32x128xf32>, vector<2x128xf32> -> vector<2x128xf32>
    %259 = arith.addf %257, %258 : vector<2x128xf32>
    %260 = vector.extract_strided_slice %259 {offsets = [0, 0], sizes = [2, 32], strides = [1, 1]} : vector<2x128xf32> to vector<2x32xf32>
    %261 = arith.negf %260 : vector<2x32xf32>
    %262 = math.exp %261 : vector<2x32xf32>
    %cst_65 = arith.constant 1.000000e+00 : f32
    %263 = vector.broadcast %cst_65 : f32 to vector<2x32xf32>
    %264 = arith.addf %263, %262 : vector<2x32xf32>
    %265 = arith.divf %263, %264 : vector<2x32xf32>
    %266 = vector.extract_strided_slice %259 {offsets = [0, 32], sizes = [2, 32], strides = [1, 1]} : vector<2x128xf32> to vector<2x32xf32>
    %267 = arith.negf %266 : vector<2x32xf32>
    %268 = math.exp %267 : vector<2x32xf32>
    %cst_66 = arith.constant 1.000000e+00 : f32
    %269 = vector.broadcast %cst_66 : f32 to vector<2x32xf32>
    %270 = arith.addf %269, %268 : vector<2x32xf32>
    %271 = arith.divf %269, %270 : vector<2x32xf32>
    %272 = vector.extract_strided_slice %259 {offsets = [0, 64], sizes = [2, 32], strides = [1, 1]} : vector<2x128xf32> to vector<2x32xf32>
    %273 = math.tanh %272 : vector<2x32xf32>
    %274 = vector.extract_strided_slice %259 {offsets = [0, 96], sizes = [2, 32], strides = [1, 1]} : vector<2x128xf32> to vector<2x32xf32>
    %275 = arith.negf %274 : vector<2x32xf32>
    %276 = math.exp %275 : vector<2x32xf32>
    %cst_67 = arith.constant 1.000000e+00 : f32
    %277 = vector.broadcast %cst_67 : f32 to vector<2x32xf32>
    %278 = arith.addf %277, %276 : vector<2x32xf32>
    %279 = arith.divf %277, %278 : vector<2x32xf32>
    %280 = arith.mulf %271, %224 : vector<2x32xf32>
    %281 = arith.mulf %265, %273 : vector<2x32xf32>
    %282 = arith.addf %280, %281 : vector<2x32xf32>
    %283 = math.tanh %282 : vector<2x32xf32>
    %284 = arith.mulf %279, %283 : vector<2x32xf32>
    %285 = vector.extract_strided_slice %20 {offsets = [6, 0], sizes = [2, 128], strides = [1, 1]} : vector<16x128xf32> to vector<2x128xf32>
    %cst_68 = arith.constant dense<0.000000e+00> : vector<2x128xf32>
    %286 = tpu.matmul %254, %10, %cst_68 {dimension_numbers = #tpu.dot_dimension_numbers<[1], [0], [0], [1], [0, 0, 1, 1], [], []>} : vector<2x32xf32>, vector<32x128xf32>, vector<2x128xf32> -> vector<2x128xf32>
    %287 = arith.addf %285, %286 : vector<2x128xf32>
    %288 = vector.extract_strided_slice %287 {offsets = [0, 0], sizes = [2, 32], strides = [1, 1]} : vector<2x128xf32> to vector<2x32xf32>
    %289 = arith.negf %288 : vector<2x32xf32>
    %290 = math.exp %289 : vector<2x32xf32>
    %cst_69 = arith.constant 1.000000e+00 : f32
    %291 = vector.broadcast %cst_69 : f32 to vector<2x32xf32>
    %292 = arith.addf %291, %290 : vector<2x32xf32>
    %293 = arith.divf %291, %292 : vector<2x32xf32>
    %294 = vector.extract_strided_slice %287 {offsets = [0, 32], sizes = [2, 32], strides = [1, 1]} : vector<2x128xf32> to vector<2x32xf32>
    %295 = arith.negf %294 : vector<2x32xf32>
    %296 = math.exp %295 : vector<2x32xf32>
    %cst_70 = arith.constant 1.000000e+00 : f32
    %297 = vector.broadcast %cst_70 : f32 to vector<2x32xf32>
    %298 = arith.addf %297, %296 : vector<2x32xf32>
    %299 = arith.divf %297, %298 : vector<2x32xf32>
    %300 = vector.extract_strided_slice %287 {offsets = [0, 64], sizes = [2, 32], strides = [1, 1]} : vector<2x128xf32> to vector<2x32xf32>
    %301 = math.tanh %300 : vector<2x32xf32>
    %302 = vector.extract_strided_slice %287 {offsets = [0, 96], sizes = [2, 32], strides = [1, 1]} : vector<2x128xf32> to vector<2x32xf32>
    %303 = arith.negf %302 : vector<2x32xf32>
    %304 = math.exp %303 : vector<2x32xf32>
    %cst_71 = arith.constant 1.000000e+00 : f32
    %305 = vector.broadcast %cst_71 : f32 to vector<2x32xf32>
    %306 = arith.addf %305, %304 : vector<2x32xf32>
    %307 = arith.divf %305, %306 : vector<2x32xf32>
    %308 = arith.mulf %299, %252 : vector<2x32xf32>
    %309 = arith.mulf %293, %301 : vector<2x32xf32>
    %310 = arith.addf %308, %309 : vector<2x32xf32>
    %311 = math.tanh %310 : vector<2x32xf32>
    %312 = arith.mulf %307, %311 : vector<2x32xf32>
    %c8_72 = arith.constant 8 : index
    %c0_73 = arith.constant 0 : index
    %313 = vector.load %arg19[%c8_72, %c0_73] : memref<16x32xf32, #tpu.memory_space<vmem>>, vector<2x32xf32>
    tpu.vector_store %arg19[%c8_72, %c0_73], %284 {strides = array<i32>} : memref<16x32xf32, #tpu.memory_space<vmem>>, vector<2x32xf32>,
    %c6_74 = arith.constant 6 : index
    %c0_75 = arith.constant 0 : index
    %314 = vector.load %arg20[%c6_74, %c0_75] : memref<16x32xf32, #tpu.memory_space<vmem>>, vector<2x32xf32>
    tpu.vector_store %arg20[%c6_74, %c0_75], %312 {strides = array<i32>} : memref<16x32xf32, #tpu.memory_space<vmem>>, vector<2x32xf32>,
    %315 = vector.extract_strided_slice %15 {offsets = [10, 0], sizes = [2, 128], strides = [1, 1]} : vector<16x128xf32> to vector<2x128xf32>
    %cst_76 = arith.constant dense<0.000000e+00> : vector<2x128xf32>
    %316 = tpu.matmul %284, %9, %cst_76 {dimension_numbers = #tpu.dot_dimension_numbers<[1], [0], [0], [1], [0, 0, 1, 1], [], []>} : vector<2x32xf32>, vector<32x128xf32>, vector<2x128xf32> -> vector<2x128xf32>
    %317 = arith.addf %315, %316 : vector<2x128xf32>
    %318 = vector.extract_strided_slice %317 {offsets = [0, 0], sizes = [2, 32], strides = [1, 1]} : vector<2x128xf32> to vector<2x32xf32>
    %319 = arith.negf %318 : vector<2x32xf32>
    %320 = math.exp %319 : vector<2x32xf32>
    %cst_77 = arith.constant 1.000000e+00 : f32
    %321 = vector.broadcast %cst_77 : f32 to vector<2x32xf32>
    %322 = arith.addf %321, %320 : vector<2x32xf32>
    %323 = arith.divf %321, %322 : vector<2x32xf32>
    %324 = vector.extract_strided_slice %317 {offsets = [0, 32], sizes = [2, 32], strides = [1, 1]} : vector<2x128xf32> to vector<2x32xf32>
    %325 = arith.negf %324 : vector<2x32xf32>
    %326 = math.exp %325 : vector<2x32xf32>
    %cst_78 = arith.constant 1.000000e+00 : f32
    %327 = vector.broadcast %cst_78 : f32 to vector<2x32xf32>
    %328 = arith.addf %327, %326 : vector<2x32xf32>
    %329 = arith.divf %327, %328 : vector<2x32xf32>
    %330 = vector.extract_strided_slice %317 {offsets = [0, 64], sizes = [2, 32], strides = [1, 1]} : vector<2x128xf32> to vector<2x32xf32>
    %331 = math.tanh %330 : vector<2x32xf32>
    %332 = vector.extract_strided_slice %317 {offsets = [0, 96], sizes = [2, 32], strides = [1, 1]} : vector<2x128xf32> to vector<2x32xf32>
    %333 = arith.negf %332 : vector<2x32xf32>
    %334 = math.exp %333 : vector<2x32xf32>
    %cst_79 = arith.constant 1.000000e+00 : f32
    %335 = vector.broadcast %cst_79 : f32 to vector<2x32xf32>
    %336 = arith.addf %335, %334 : vector<2x32xf32>
    %337 = arith.divf %335, %336 : vector<2x32xf32>
    %338 = arith.mulf %329, %282 : vector<2x32xf32>
    %339 = arith.mulf %323, %331 : vector<2x32xf32>
    %340 = arith.addf %338, %339 : vector<2x32xf32>
    %341 = math.tanh %340 : vector<2x32xf32>
    %342 = arith.mulf %337, %341 : vector<2x32xf32>
    %343 = vector.extract_strided_slice %20 {offsets = [4, 0], sizes = [2, 128], strides = [1, 1]} : vector<16x128xf32> to vector<2x128xf32>
    %cst_80 = arith.constant dense<0.000000e+00> : vector<2x128xf32>
    %344 = tpu.matmul %312, %10, %cst_80 {dimension_numbers = #tpu.dot_dimension_numbers<[1], [0], [0], [1], [0, 0, 1, 1], [], []>} : vector<2x32xf32>, vector<32x128xf32>, vector<2x128xf32> -> vector<2x128xf32>
    %345 = arith.addf %343, %344 : vector<2x128xf32>
    %346 = vector.extract_strided_slice %345 {offsets = [0, 0], sizes = [2, 32], strides = [1, 1]} : vector<2x128xf32> to vector<2x32xf32>
    %347 = arith.negf %346 : vector<2x32xf32>
    %348 = math.exp %347 : vector<2x32xf32>
    %cst_81 = arith.constant 1.000000e+00 : f32
    %349 = vector.broadcast %cst_81 : f32 to vector<2x32xf32>
    %350 = arith.addf %349, %348 : vector<2x32xf32>
    %351 = arith.divf %349, %350 : vector<2x32xf32>
    %352 = vector.extract_strided_slice %345 {offsets = [0, 32], sizes = [2, 32], strides = [1, 1]} : vector<2x128xf32> to vector<2x32xf32>
    %353 = arith.negf %352 : vector<2x32xf32>
    %354 = math.exp %353 : vector<2x32xf32>
    %cst_82 = arith.constant 1.000000e+00 : f32
    %355 = vector.broadcast %cst_82 : f32 to vector<2x32xf32>
    %356 = arith.addf %355, %354 : vector<2x32xf32>
    %357 = arith.divf %355, %356 : vector<2x32xf32>
    %358 = vector.extract_strided_slice %345 {offsets = [0, 64], sizes = [2, 32], strides = [1, 1]} : vector<2x128xf32> to vector<2x32xf32>
    %359 = math.tanh %358 : vector<2x32xf32>
    %360 = vector.extract_strided_slice %345 {offsets = [0, 96], sizes = [2, 32], strides = [1, 1]} : vector<2x128xf32> to vector<2x32xf32>
    %361 = arith.negf %360 : vector<2x32xf32>
    %362 = math.exp %361 : vector<2x32xf32>
    %cst_83 = arith.constant 1.000000e+00 : f32
    %363 = vector.broadcast %cst_83 : f32 to vector<2x32xf32>
    %364 = arith.addf %363, %362 : vector<2x32xf32>
    %365 = arith.divf %363, %364 : vector<2x32xf32>
    %366 = arith.mulf %357, %310 : vector<2x32xf32>
    %367 = arith.mulf %351, %359 : vector<2x32xf32>
    %368 = arith.addf %366, %367 : vector<2x32xf32>
    %369 = math.tanh %368 : vector<2x32xf32>
    %370 = arith.mulf %365, %369 : vector<2x32xf32>
    %c10_84 = arith.constant 10 : index
    %c0_85 = arith.constant 0 : index
    %371 = vector.load %arg19[%c10_84, %c0_85] : memref<16x32xf32, #tpu.memory_space<vmem>>, vector<2x32xf32>
    tpu.vector_store %arg19[%c10_84, %c0_85], %342 {strides = array<i32>} : memref<16x32xf32, #tpu.memory_space<vmem>>, vector<2x32xf32>,
    %c4_86 = arith.constant 4 : index
    %c0_87 = arith.constant 0 : index
    %372 = vector.load %arg20[%c4_86, %c0_87] : memref<16x32xf32, #tpu.memory_space<vmem>>, vector<2x32xf32>
    tpu.vector_store %arg20[%c4_86, %c0_87], %370 {strides = array<i32>} : memref<16x32xf32, #tpu.memory_space<vmem>>, vector<2x32xf32>,
    %373 = vector.extract_strided_slice %15 {offsets = [12, 0], sizes = [2, 128], strides = [1, 1]} : vector<16x128xf32> to vector<2x128xf32>
    %cst_88 = arith.constant dense<0.000000e+00> : vector<2x128xf32>
    %374 = tpu.matmul %342, %9, %cst_88 {dimension_numbers = #tpu.dot_dimension_numbers<[1], [0], [0], [1], [0, 0, 1, 1], [], []>} : vector<2x32xf32>, vector<32x128xf32>, vector<2x128xf32> -> vector<2x128xf32>
    %375 = arith.addf %373, %374 : vector<2x128xf32>
    %376 = vector.extract_strided_slice %375 {offsets = [0, 0], sizes = [2, 32], strides = [1, 1]} : vector<2x128xf32> to vector<2x32xf32>
    %377 = arith.negf %376 : vector<2x32xf32>
    %378 = math.exp %377 : vector<2x32xf32>
    %cst_89 = arith.constant 1.000000e+00 : f32
    %379 = vector.broadcast %cst_89 : f32 to vector<2x32xf32>
    %380 = arith.addf %379, %378 : vector<2x32xf32>
    %381 = arith.divf %379, %380 : vector<2x32xf32>
    %382 = vector.extract_strided_slice %375 {offsets = [0, 32], sizes = [2, 32], strides = [1, 1]} : vector<2x128xf32> to vector<2x32xf32>
    %383 = arith.negf %382 : vector<2x32xf32>
    %384 = math.exp %383 : vector<2x32xf32>
    %cst_90 = arith.constant 1.000000e+00 : f32
    %385 = vector.broadcast %cst_90 : f32 to vector<2x32xf32>
    %386 = arith.addf %385, %384 : vector<2x32xf32>
    %387 = arith.divf %385, %386 : vector<2x32xf32>
    %388 = vector.extract_strided_slice %375 {offsets = [0, 64], sizes = [2, 32], strides = [1, 1]} : vector<2x128xf32> to vector<2x32xf32>
    %389 = math.tanh %388 : vector<2x32xf32>
    %390 = vector.extract_strided_slice %375 {offsets = [0, 96], sizes = [2, 32], strides = [1, 1]} : vector<2x128xf32> to vector<2x32xf32>
    %391 = arith.negf %390 : vector<2x32xf32>
    %392 = math.exp %391 : vector<2x32xf32>
    %cst_91 = arith.constant 1.000000e+00 : f32
    %393 = vector.broadcast %cst_91 : f32 to vector<2x32xf32>
    %394 = arith.addf %393, %392 : vector<2x32xf32>
    %395 = arith.divf %393, %394 : vector<2x32xf32>
    %396 = arith.mulf %387, %340 : vector<2x32xf32>
    %397 = arith.mulf %381, %389 : vector<2x32xf32>
    %398 = arith.addf %396, %397 : vector<2x32xf32>
    %399 = math.tanh %398 : vector<2x32xf32>
    %400 = arith.mulf %395, %399 : vector<2x32xf32>
    %401 = vector.extract_strided_slice %20 {offsets = [2, 0], sizes = [2, 128], strides = [1, 1]} : vector<16x128xf32> to vector<2x128xf32>
    %cst_92 = arith.constant dense<0.000000e+00> : vector<2x128xf32>
    %402 = tpu.matmul %370, %10, %cst_92 {dimension_numbers = #tpu.dot_dimension_numbers<[1], [0], [0], [1], [0, 0, 1, 1], [], []>} : vector<2x32xf32>, vector<32x128xf32>, vector<2x128xf32> -> vector<2x128xf32>
    %403 = arith.addf %401, %402 : vector<2x128xf32>
    %404 = vector.extract_strided_slice %403 {offsets = [0, 0], sizes = [2, 32], strides = [1, 1]} : vector<2x128xf32> to vector<2x32xf32>
    %405 = arith.negf %404 : vector<2x32xf32>
    %406 = math.exp %405 : vector<2x32xf32>
    %cst_93 = arith.constant 1.000000e+00 : f32
    %407 = vector.broadcast %cst_93 : f32 to vector<2x32xf32>
    %408 = arith.addf %407, %406 : vector<2x32xf32>
    %409 = arith.divf %407, %408 : vector<2x32xf32>
    %410 = vector.extract_strided_slice %403 {offsets = [0, 32], sizes = [2, 32], strides = [1, 1]} : vector<2x128xf32> to vector<2x32xf32>
    %411 = arith.negf %410 : vector<2x32xf32>
    %412 = math.exp %411 : vector<2x32xf32>
    %cst_94 = arith.constant 1.000000e+00 : f32
    %413 = vector.broadcast %cst_94 : f32 to vector<2x32xf32>
    %414 = arith.addf %413, %412 : vector<2x32xf32>
    %415 = arith.divf %413, %414 : vector<2x32xf32>
    %416 = vector.extract_strided_slice %403 {offsets = [0, 64], sizes = [2, 32], strides = [1, 1]} : vector<2x128xf32> to vector<2x32xf32>
    %417 = math.tanh %416 : vector<2x32xf32>
    %418 = vector.extract_strided_slice %403 {offsets = [0, 96], sizes = [2, 32], strides = [1, 1]} : vector<2x128xf32> to vector<2x32xf32>
    %419 = arith.negf %418 : vector<2x32xf32>
    %420 = math.exp %419 : vector<2x32xf32>
    %cst_95 = arith.constant 1.000000e+00 : f32
    %421 = vector.broadcast %cst_95 : f32 to vector<2x32xf32>
    %422 = arith.addf %421, %420 : vector<2x32xf32>
    %423 = arith.divf %421, %422 : vector<2x32xf32>
    %424 = arith.mulf %415, %368 : vector<2x32xf32>
    %425 = arith.mulf %409, %417 : vector<2x32xf32>
    %426 = arith.addf %424, %425 : vector<2x32xf32>
    %427 = math.tanh %426 : vector<2x32xf32>
    %428 = arith.mulf %423, %427 : vector<2x32xf32>
    %c12_96 = arith.constant 12 : index
    %c0_97 = arith.constant 0 : index
    %429 = vector.load %arg19[%c12_96, %c0_97] : memref<16x32xf32, #tpu.memory_space<vmem>>, vector<2x32xf32>
    tpu.vector_store %arg19[%c12_96, %c0_97], %400 {strides = array<i32>} : memref<16x32xf32, #tpu.memory_space<vmem>>, vector<2x32xf32>,
    %c2_98 = arith.constant 2 : index
    %c0_99 = arith.constant 0 : index
    %430 = vector.load %arg20[%c2_98, %c0_99] : memref<16x32xf32, #tpu.memory_space<vmem>>, vector<2x32xf32>
    tpu.vector_store %arg20[%c2_98, %c0_99], %428 {strides = array<i32>} : memref<16x32xf32, #tpu.memory_space<vmem>>, vector<2x32xf32>,
    %431 = vector.extract_strided_slice %15 {offsets = [14, 0], sizes = [2, 128], strides = [1, 1]} : vector<16x128xf32> to vector<2x128xf32>
    %cst_100 = arith.constant dense<0.000000e+00> : vector<2x128xf32>
    %432 = tpu.matmul %400, %9, %cst_100 {dimension_numbers = #tpu.dot_dimension_numbers<[1], [0], [0], [1], [0, 0, 1, 1], [], []>} : vector<2x32xf32>, vector<32x128xf32>, vector<2x128xf32> -> vector<2x128xf32>
    %433 = arith.addf %431, %432 : vector<2x128xf32>
    %434 = vector.extract_strided_slice %433 {offsets = [0, 0], sizes = [2, 32], strides = [1, 1]} : vector<2x128xf32> to vector<2x32xf32>
    %435 = arith.negf %434 : vector<2x32xf32>
    %436 = math.exp %435 : vector<2x32xf32>
    %cst_101 = arith.constant 1.000000e+00 : f32
    %437 = vector.broadcast %cst_101 : f32 to vector<2x32xf32>
    %438 = arith.addf %437, %436 : vector<2x32xf32>
    %439 = arith.divf %437, %438 : vector<2x32xf32>
    %440 = vector.extract_strided_slice %433 {offsets = [0, 32], sizes = [2, 32], strides = [1, 1]} : vector<2x128xf32> to vector<2x32xf32>
    %441 = arith.negf %440 : vector<2x32xf32>
    %442 = math.exp %441 : vector<2x32xf32>
    %cst_102 = arith.constant 1.000000e+00 : f32
    %443 = vector.broadcast %cst_102 : f32 to vector<2x32xf32>
    %444 = arith.addf %443, %442 : vector<2x32xf32>
    %445 = arith.divf %443, %444 : vector<2x32xf32>
    %446 = vector.extract_strided_slice %433 {offsets = [0, 64], sizes = [2, 32], strides = [1, 1]} : vector<2x128xf32> to vector<2x32xf32>
    %447 = math.tanh %446 : vector<2x32xf32>
    %448 = vector.extract_strided_slice %433 {offsets = [0, 96], sizes = [2, 32], strides = [1, 1]} : vector<2x128xf32> to vector<2x32xf32>
    %449 = arith.negf %448 : vector<2x32xf32>
    %450 = math.exp %449 : vector<2x32xf32>
    %cst_103 = arith.constant 1.000000e+00 : f32
    %451 = vector.broadcast %cst_103 : f32 to vector<2x32xf32>
    %452 = arith.addf %451, %450 : vector<2x32xf32>
    %453 = arith.divf %451, %452 : vector<2x32xf32>
    %454 = arith.mulf %445, %398 : vector<2x32xf32>
    %455 = arith.mulf %439, %447 : vector<2x32xf32>
    %456 = arith.addf %454, %455 : vector<2x32xf32>
    %457 = math.tanh %456 : vector<2x32xf32>
    %458 = arith.mulf %453, %457 : vector<2x32xf32>
    %459 = vector.extract_strided_slice %20 {offsets = [0, 0], sizes = [2, 128], strides = [1, 1]} : vector<16x128xf32> to vector<2x128xf32>
    %cst_104 = arith.constant dense<0.000000e+00> : vector<2x128xf32>
    %460 = tpu.matmul %428, %10, %cst_104 {dimension_numbers = #tpu.dot_dimension_numbers<[1], [0], [0], [1], [0, 0, 1, 1], [], []>} : vector<2x32xf32>, vector<32x128xf32>, vector<2x128xf32> -> vector<2x128xf32>
    %461 = arith.addf %459, %460 : vector<2x128xf32>
    %462 = vector.extract_strided_slice %461 {offsets = [0, 0], sizes = [2, 32], strides = [1, 1]} : vector<2x128xf32> to vector<2x32xf32>
    %463 = arith.negf %462 : vector<2x32xf32>
    %464 = math.exp %463 : vector<2x32xf32>
    %cst_105 = arith.constant 1.000000e+00 : f32
    %465 = vector.broadcast %cst_105 : f32 to vector<2x32xf32>
    %466 = arith.addf %465, %464 : vector<2x32xf32>
    %467 = arith.divf %465, %466 : vector<2x32xf32>
    %468 = vector.extract_strided_slice %461 {offsets = [0, 32], sizes = [2, 32], strides = [1, 1]} : vector<2x128xf32> to vector<2x32xf32>
    %469 = arith.negf %468 : vector<2x32xf32>
    %470 = math.exp %469 : vector<2x32xf32>
    %cst_106 = arith.constant 1.000000e+00 : f32
    %471 = vector.broadcast %cst_106 : f32 to vector<2x32xf32>
    %472 = arith.addf %471, %470 : vector<2x32xf32>
    %473 = arith.divf %471, %472 : vector<2x32xf32>
    %474 = vector.extract_strided_slice %461 {offsets = [0, 64], sizes = [2, 32], strides = [1, 1]} : vector<2x128xf32> to vector<2x32xf32>
    %475 = math.tanh %474 : vector<2x32xf32>
    %476 = vector.extract_strided_slice %461 {offsets = [0, 96], sizes = [2, 32], strides = [1, 1]} : vector<2x128xf32> to vector<2x32xf32>
    %477 = arith.negf %476 : vector<2x32xf32>
    %478 = math.exp %477 : vector<2x32xf32>
    %cst_107 = arith.constant 1.000000e+00 : f32
    %479 = vector.broadcast %cst_107 : f32 to vector<2x32xf32>
    %480 = arith.addf %479, %478 : vector<2x32xf32>
    %481 = arith.divf %479, %480 : vector<2x32xf32>
    %482 = arith.mulf %473, %426 : vector<2x32xf32>
    %483 = arith.mulf %467, %475 : vector<2x32xf32>
    %484 = arith.addf %482, %483 : vector<2x32xf32>
    %485 = math.tanh %484 : vector<2x32xf32>
    %486 = arith.mulf %481, %485 : vector<2x32xf32>
    %c14_108 = arith.constant 14 : index
    %c0_109 = arith.constant 0 : index
    %487 = vector.load %arg19[%c14_108, %c0_109] : memref<16x32xf32, #tpu.memory_space<vmem>>, vector<2x32xf32>
    tpu.vector_store %arg19[%c14_108, %c0_109], %458 {strides = array<i32>} : memref<16x32xf32, #tpu.memory_space<vmem>>, vector<2x32xf32>,
    %c0_110 = arith.constant 0 : index
    %c0_111 = arith.constant 0 : index
    %488 = vector.load %arg20[%c0_110, %c0_111] : memref<16x32xf32, #tpu.memory_space<vmem>>, vector<2x32xf32>
    tpu.vector_store %arg20[%c0_110, %c0_111], %486 {strides = array<i32>} : memref<16x32xf32, #tpu.memory_space<vmem>>, vector<2x32xf32>,
    %c0_112 = arith.constant 0 : index
    %c0_113 = arith.constant 0 : index
    %489 = vector.load %arg19[%c0_112, %c0_113] : memref<16x32xf32, #tpu.memory_space<vmem>>, vector<16x32xf32>
    %c0_114 = arith.constant 0 : index
    %c0_115 = arith.constant 0 : index
    %490 = vector.load %arg20[%c0_114, %c0_115] : memref<16x32xf32, #tpu.memory_space<vmem>>, vector<16x32xf32>
    %c0_116 = arith.constant 0 : index
    %c0_117 = arith.constant 0 : index
    %491 = vector.load %arg8[%c0_116, %c0_117] : memref<32x128xf32, #tpu.memory_space<vmem>>, vector<32x128xf32>
    %cst_118 = arith.constant dense<0.000000e+00> : vector<16x128xf32>
    %492 = tpu.matmul %489, %491, %cst_118 {dimension_numbers = #tpu.dot_dimension_numbers<[1], [0], [0], [1], [0, 0, 1, 1], [], []>} : vector<16x32xf32>, vector<32x128xf32>, vector<16x128xf32> -> vector<16x128xf32>
    %c0_119 = arith.constant 0 : index
    %c0_120 = arith.constant 0 : index
    %493 = vector.load %arg9[%c0_119, %c0_120] : memref<32x128xf32, #tpu.memory_space<vmem>>, vector<32x128xf32>
    %cst_121 = arith.constant dense<0.000000e+00> : vector<16x128xf32>
    %494 = tpu.matmul %490, %493, %cst_121 {dimension_numbers = #tpu.dot_dimension_numbers<[1], [0], [0], [1], [0, 0, 1, 1], [], []>} : vector<16x32xf32>, vector<32x128xf32>, vector<16x128xf32> -> vector<16x128xf32>
    %495 = arith.addf %492, %494 : vector<16x128xf32>
    %c0_122 = arith.constant 0 : index
    %c0_123 = arith.constant 0 : index
    %496 = vector.load %arg11[%c0_122, %c0_123] : memref<1x128xf32, #tpu.memory_space<vmem>>, vector<1x128xf32>
    %497 = vector.broadcast %496 : vector<1x128xf32> to vector<16x128xf32>
    %498 = arith.addf %495, %497 : vector<16x128xf32>
    %c0_124 = arith.constant 0 : index
    %c0_125 = arith.constant 0 : index
    %499 = vector.load %arg12[%c0_124, %c0_125] : memref<32x128xf32, #tpu.memory_space<vmem>>, vector<32x128xf32>
    %cst_126 = arith.constant dense<0.000000e+00> : vector<16x128xf32>
    %500 = tpu.matmul %489, %499, %cst_126 {dimension_numbers = #tpu.dot_dimension_numbers<[1], [0], [0], [1], [0, 0, 1, 1], [], []>} : vector<16x32xf32>, vector<32x128xf32>, vector<16x128xf32> -> vector<16x128xf32>
    %c0_127 = arith.constant 0 : index
    %c0_128 = arith.constant 0 : index
    %501 = vector.load %arg13[%c0_127, %c0_128] : memref<32x128xf32, #tpu.memory_space<vmem>>, vector<32x128xf32>
    %cst_129 = arith.constant dense<0.000000e+00> : vector<16x128xf32>
    %502 = tpu.matmul %490, %501, %cst_129 {dimension_numbers = #tpu.dot_dimension_numbers<[1], [0], [0], [1], [0, 0, 1, 1], [], []>} : vector<16x32xf32>, vector<32x128xf32>, vector<16x128xf32> -> vector<16x128xf32>
    %503 = arith.addf %500, %502 : vector<16x128xf32>
    %c0_130 = arith.constant 0 : index
    %c0_131 = arith.constant 0 : index
    %504 = vector.load %arg15[%c0_130, %c0_131] : memref<1x128xf32, #tpu.memory_space<vmem>>, vector<1x128xf32>
    %505 = vector.broadcast %504 : vector<1x128xf32> to vector<16x128xf32>
    %506 = arith.addf %503, %505 : vector<16x128xf32>
    %c0_132 = arith.constant 0 : index
    %c0_133 = arith.constant 0 : index
    %507 = vector.load %arg10[%c0_132, %c0_133] : memref<32x128xf32, #tpu.memory_space<vmem>>, vector<32x128xf32>
    %c0_134 = arith.constant 0 : index
    %c0_135 = arith.constant 0 : index
    %508 = vector.load %arg14[%c0_134, %c0_135] : memref<32x128xf32, #tpu.memory_space<vmem>>, vector<32x128xf32>
    %cst_136 = arith.constant 0.000000e+00 : f32
    %509 = vector.broadcast %cst_136 : f32 to vector<2x32xf32>
    %cst_137 = arith.constant 0.000000e+00 : f32
    %510 = vector.broadcast %cst_137 : f32 to vector<2x32xf32>
    %cst_138 = arith.constant 0.000000e+00 : f32
    %511 = vector.broadcast %cst_138 : f32 to vector<2x32xf32>
    %cst_139 = arith.constant 0.000000e+00 : f32
    %512 = vector.broadcast %cst_139 : f32 to vector<2x32xf32>
    %513 = vector.extract_strided_slice %498 {offsets = [0, 0], sizes = [2, 128], strides = [1, 1]} : vector<16x128xf32> to vector<2x128xf32>
    %cst_140 = arith.constant dense<0.000000e+00> : vector<2x128xf32>
    %514 = tpu.matmul %509, %507, %cst_140 {dimension_numbers = #tpu.dot_dimension_numbers<[1], [0], [0], [1], [0, 0, 1, 1], [], []>} : vector<2x32xf32>, vector<32x128xf32>, vector<2x128xf32> -> vector<2x128xf32>
    %515 = arith.addf %513, %514 : vector<2x128xf32>
    %516 = vector.extract_strided_slice %515 {offsets = [0, 0], sizes = [2, 32], strides = [1, 1]} : vector<2x128xf32> to vector<2x32xf32>
    %517 = arith.negf %516 : vector<2x32xf32>
    %518 = math.exp %517 : vector<2x32xf32>
    %cst_141 = arith.constant 1.000000e+00 : f32
    %519 = vector.broadcast %cst_141 : f32 to vector<2x32xf32>
    %520 = arith.addf %519, %518 : vector<2x32xf32>
    %521 = arith.divf %519, %520 : vector<2x32xf32>
    %522 = vector.extract_strided_slice %515 {offsets = [0, 32], sizes = [2, 32], strides = [1, 1]} : vector<2x128xf32> to vector<2x32xf32>
    %523 = arith.negf %522 : vector<2x32xf32>
    %524 = math.exp %523 : vector<2x32xf32>
    %cst_142 = arith.constant 1.000000e+00 : f32
    %525 = vector.broadcast %cst_142 : f32 to vector<2x32xf32>
    %526 = arith.addf %525, %524 : vector<2x32xf32>
    %527 = arith.divf %525, %526 : vector<2x32xf32>
    %528 = vector.extract_strided_slice %515 {offsets = [0, 64], sizes = [2, 32], strides = [1, 1]} : vector<2x128xf32> to vector<2x32xf32>
    %529 = math.tanh %528 : vector<2x32xf32>
    %530 = vector.extract_strided_slice %515 {offsets = [0, 96], sizes = [2, 32], strides = [1, 1]} : vector<2x128xf32> to vector<2x32xf32>
    %531 = arith.negf %530 : vector<2x32xf32>
    %532 = math.exp %531 : vector<2x32xf32>
    %cst_143 = arith.constant 1.000000e+00 : f32
    %533 = vector.broadcast %cst_143 : f32 to vector<2x32xf32>
    %534 = arith.addf %533, %532 : vector<2x32xf32>
    %535 = arith.divf %533, %534 : vector<2x32xf32>
    %536 = arith.mulf %527, %510 : vector<2x32xf32>
    %537 = arith.mulf %521, %529 : vector<2x32xf32>
    %538 = arith.addf %536, %537 : vector<2x32xf32>
    %539 = math.tanh %538 : vector<2x32xf32>
    %540 = arith.mulf %535, %539 : vector<2x32xf32>
    %541 = vector.extract_strided_slice %506 {offsets = [14, 0], sizes = [2, 128], strides = [1, 1]} : vector<16x128xf32> to vector<2x128xf32>
    %cst_144 = arith.constant dense<0.000000e+00> : vector<2x128xf32>
    %542 = tpu.matmul %511, %508, %cst_144 {dimension_numbers = #tpu.dot_dimension_numbers<[1], [0], [0], [1], [0, 0, 1, 1], [], []>} : vector<2x32xf32>, vector<32x128xf32>, vector<2x128xf32> -> vector<2x128xf32>
    %543 = arith.addf %541, %542 : vector<2x128xf32>
    %544 = vector.extract_strided_slice %543 {offsets = [0, 0], sizes = [2, 32], strides = [1, 1]} : vector<2x128xf32> to vector<2x32xf32>
    %545 = arith.negf %544 : vector<2x32xf32>
    %546 = math.exp %545 : vector<2x32xf32>
    %cst_145 = arith.constant 1.000000e+00 : f32
    %547 = vector.broadcast %cst_145 : f32 to vector<2x32xf32>
    %548 = arith.addf %547, %546 : vector<2x32xf32>
    %549 = arith.divf %547, %548 : vector<2x32xf32>
    %550 = vector.extract_strided_slice %543 {offsets = [0, 32], sizes = [2, 32], strides = [1, 1]} : vector<2x128xf32> to vector<2x32xf32>
    %551 = arith.negf %550 : vector<2x32xf32>
    %552 = math.exp %551 : vector<2x32xf32>
    %cst_146 = arith.constant 1.000000e+00 : f32
    %553 = vector.broadcast %cst_146 : f32 to vector<2x32xf32>
    %554 = arith.addf %553, %552 : vector<2x32xf32>
    %555 = arith.divf %553, %554 : vector<2x32xf32>
    %556 = vector.extract_strided_slice %543 {offsets = [0, 64], sizes = [2, 32], strides = [1, 1]} : vector<2x128xf32> to vector<2x32xf32>
    %557 = math.tanh %556 : vector<2x32xf32>
    %558 = vector.extract_strided_slice %543 {offsets = [0, 96], sizes = [2, 32], strides = [1, 1]} : vector<2x128xf32> to vector<2x32xf32>
    %559 = arith.negf %558 : vector<2x32xf32>
    %560 = math.exp %559 : vector<2x32xf32>
    %cst_147 = arith.constant 1.000000e+00 : f32
    %561 = vector.broadcast %cst_147 : f32 to vector<2x32xf32>
    %562 = arith.addf %561, %560 : vector<2x32xf32>
    %563 = arith.divf %561, %562 : vector<2x32xf32>
    %564 = arith.mulf %555, %512 : vector<2x32xf32>
    %565 = arith.mulf %549, %557 : vector<2x32xf32>
    %566 = arith.addf %564, %565 : vector<2x32xf32>
    %567 = math.tanh %566 : vector<2x32xf32>
    %568 = arith.mulf %563, %567 : vector<2x32xf32>
    %569 = vector.extract_strided_slice %498 {offsets = [2, 0], sizes = [2, 128], strides = [1, 1]} : vector<16x128xf32> to vector<2x128xf32>
    %cst_148 = arith.constant dense<0.000000e+00> : vector<2x128xf32>
    %570 = tpu.matmul %540, %507, %cst_148 {dimension_numbers = #tpu.dot_dimension_numbers<[1], [0], [0], [1], [0, 0, 1, 1], [], []>} : vector<2x32xf32>, vector<32x128xf32>, vector<2x128xf32> -> vector<2x128xf32>
    %571 = arith.addf %569, %570 : vector<2x128xf32>
    %572 = vector.extract_strided_slice %571 {offsets = [0, 0], sizes = [2, 32], strides = [1, 1]} : vector<2x128xf32> to vector<2x32xf32>
    %573 = arith.negf %572 : vector<2x32xf32>
    %574 = math.exp %573 : vector<2x32xf32>
    %cst_149 = arith.constant 1.000000e+00 : f32
    %575 = vector.broadcast %cst_149 : f32 to vector<2x32xf32>
    %576 = arith.addf %575, %574 : vector<2x32xf32>
    %577 = arith.divf %575, %576 : vector<2x32xf32>
    %578 = vector.extract_strided_slice %571 {offsets = [0, 32], sizes = [2, 32], strides = [1, 1]} : vector<2x128xf32> to vector<2x32xf32>
    %579 = arith.negf %578 : vector<2x32xf32>
    %580 = math.exp %579 : vector<2x32xf32>
    %cst_150 = arith.constant 1.000000e+00 : f32
    %581 = vector.broadcast %cst_150 : f32 to vector<2x32xf32>
    %582 = arith.addf %581, %580 : vector<2x32xf32>
    %583 = arith.divf %581, %582 : vector<2x32xf32>
    %584 = vector.extract_strided_slice %571 {offsets = [0, 64], sizes = [2, 32], strides = [1, 1]} : vector<2x128xf32> to vector<2x32xf32>
    %585 = math.tanh %584 : vector<2x32xf32>
    %586 = vector.extract_strided_slice %571 {offsets = [0, 96], sizes = [2, 32], strides = [1, 1]} : vector<2x128xf32> to vector<2x32xf32>
    %587 = arith.negf %586 : vector<2x32xf32>
    %588 = math.exp %587 : vector<2x32xf32>
    %cst_151 = arith.constant 1.000000e+00 : f32
    %589 = vector.broadcast %cst_151 : f32 to vector<2x32xf32>
    %590 = arith.addf %589, %588 : vector<2x32xf32>
    %591 = arith.divf %589, %590 : vector<2x32xf32>
    %592 = arith.mulf %583, %538 : vector<2x32xf32>
    %593 = arith.mulf %577, %585 : vector<2x32xf32>
    %594 = arith.addf %592, %593 : vector<2x32xf32>
    %595 = math.tanh %594 : vector<2x32xf32>
    %596 = arith.mulf %591, %595 : vector<2x32xf32>
    %597 = vector.extract_strided_slice %506 {offsets = [12, 0], sizes = [2, 128], strides = [1, 1]} : vector<16x128xf32> to vector<2x128xf32>
    %cst_152 = arith.constant dense<0.000000e+00> : vector<2x128xf32>
    %598 = tpu.matmul %568, %508, %cst_152 {dimension_numbers = #tpu.dot_dimension_numbers<[1], [0], [0], [1], [0, 0, 1, 1], [], []>} : vector<2x32xf32>, vector<32x128xf32>, vector<2x128xf32> -> vector<2x128xf32>
    %599 = arith.addf %597, %598 : vector<2x128xf32>
    %600 = vector.extract_strided_slice %599 {offsets = [0, 0], sizes = [2, 32], strides = [1, 1]} : vector<2x128xf32> to vector<2x32xf32>
    %601 = arith.negf %600 : vector<2x32xf32>
    %602 = math.exp %601 : vector<2x32xf32>
    %cst_153 = arith.constant 1.000000e+00 : f32
    %603 = vector.broadcast %cst_153 : f32 to vector<2x32xf32>
    %604 = arith.addf %603, %602 : vector<2x32xf32>
    %605 = arith.divf %603, %604 : vector<2x32xf32>
    %606 = vector.extract_strided_slice %599 {offsets = [0, 32], sizes = [2, 32], strides = [1, 1]} : vector<2x128xf32> to vector<2x32xf32>
    %607 = arith.negf %606 : vector<2x32xf32>
    %608 = math.exp %607 : vector<2x32xf32>
    %cst_154 = arith.constant 1.000000e+00 : f32
    %609 = vector.broadcast %cst_154 : f32 to vector<2x32xf32>
    %610 = arith.addf %609, %608 : vector<2x32xf32>
    %611 = arith.divf %609, %610 : vector<2x32xf32>
    %612 = vector.extract_strided_slice %599 {offsets = [0, 64], sizes = [2, 32], strides = [1, 1]} : vector<2x128xf32> to vector<2x32xf32>
    %613 = math.tanh %612 : vector<2x32xf32>
    %614 = vector.extract_strided_slice %599 {offsets = [0, 96], sizes = [2, 32], strides = [1, 1]} : vector<2x128xf32> to vector<2x32xf32>
    %615 = arith.negf %614 : vector<2x32xf32>
    %616 = math.exp %615 : vector<2x32xf32>
    %cst_155 = arith.constant 1.000000e+00 : f32
    %617 = vector.broadcast %cst_155 : f32 to vector<2x32xf32>
    %618 = arith.addf %617, %616 : vector<2x32xf32>
    %619 = arith.divf %617, %618 : vector<2x32xf32>
    %620 = arith.mulf %611, %566 : vector<2x32xf32>
    %621 = arith.mulf %605, %613 : vector<2x32xf32>
    %622 = arith.addf %620, %621 : vector<2x32xf32>
    %623 = math.tanh %622 : vector<2x32xf32>
    %624 = arith.mulf %619, %623 : vector<2x32xf32>
    %625 = vector.extract_strided_slice %498 {offsets = [4, 0], sizes = [2, 128], strides = [1, 1]} : vector<16x128xf32> to vector<2x128xf32>
    %cst_156 = arith.constant dense<0.000000e+00> : vector<2x128xf32>
    %626 = tpu.matmul %596, %507, %cst_156 {dimension_numbers = #tpu.dot_dimension_numbers<[1], [0], [0], [1], [0, 0, 1, 1], [], []>} : vector<2x32xf32>, vector<32x128xf32>, vector<2x128xf32> -> vector<2x128xf32>
    %627 = arith.addf %625, %626 : vector<2x128xf32>
    %628 = vector.extract_strided_slice %627 {offsets = [0, 0], sizes = [2, 32], strides = [1, 1]} : vector<2x128xf32> to vector<2x32xf32>
    %629 = arith.negf %628 : vector<2x32xf32>
    %630 = math.exp %629 : vector<2x32xf32>
    %cst_157 = arith.constant 1.000000e+00 : f32
    %631 = vector.broadcast %cst_157 : f32 to vector<2x32xf32>
    %632 = arith.addf %631, %630 : vector<2x32xf32>
    %633 = arith.divf %631, %632 : vector<2x32xf32>
    %634 = vector.extract_strided_slice %627 {offsets = [0, 32], sizes = [2, 32], strides = [1, 1]} : vector<2x128xf32> to vector<2x32xf32>
    %635 = arith.negf %634 : vector<2x32xf32>
    %636 = math.exp %635 : vector<2x32xf32>
    %cst_158 = arith.constant 1.000000e+00 : f32
    %637 = vector.broadcast %cst_158 : f32 to vector<2x32xf32>
    %638 = arith.addf %637, %636 : vector<2x32xf32>
    %639 = arith.divf %637, %638 : vector<2x32xf32>
    %640 = vector.extract_strided_slice %627 {offsets = [0, 64], sizes = [2, 32], strides = [1, 1]} : vector<2x128xf32> to vector<2x32xf32>
    %641 = math.tanh %640 : vector<2x32xf32>
    %642 = vector.extract_strided_slice %627 {offsets = [0, 96], sizes = [2, 32], strides = [1, 1]} : vector<2x128xf32> to vector<2x32xf32>
    %643 = arith.negf %642 : vector<2x32xf32>
    %644 = math.exp %643 : vector<2x32xf32>
    %cst_159 = arith.constant 1.000000e+00 : f32
    %645 = vector.broadcast %cst_159 : f32 to vector<2x32xf32>
    %646 = arith.addf %645, %644 : vector<2x32xf32>
    %647 = arith.divf %645, %646 : vector<2x32xf32>
    %648 = arith.mulf %639, %594 : vector<2x32xf32>
    %649 = arith.mulf %633, %641 : vector<2x32xf32>
    %650 = arith.addf %648, %649 : vector<2x32xf32>
    %651 = math.tanh %650 : vector<2x32xf32>
    %652 = arith.mulf %647, %651 : vector<2x32xf32>
    %653 = vector.extract_strided_slice %506 {offsets = [10, 0], sizes = [2, 128], strides = [1, 1]} : vector<16x128xf32> to vector<2x128xf32>
    %cst_160 = arith.constant dense<0.000000e+00> : vector<2x128xf32>
    %654 = tpu.matmul %624, %508, %cst_160 {dimension_numbers = #tpu.dot_dimension_numbers<[1], [0], [0], [1], [0, 0, 1, 1], [], []>} : vector<2x32xf32>, vector<32x128xf32>, vector<2x128xf32> -> vector<2x128xf32>
    %655 = arith.addf %653, %654 : vector<2x128xf32>
    %656 = vector.extract_strided_slice %655 {offsets = [0, 0], sizes = [2, 32], strides = [1, 1]} : vector<2x128xf32> to vector<2x32xf32>
    %657 = arith.negf %656 : vector<2x32xf32>
    %658 = math.exp %657 : vector<2x32xf32>
    %cst_161 = arith.constant 1.000000e+00 : f32
    %659 = vector.broadcast %cst_161 : f32 to vector<2x32xf32>
    %660 = arith.addf %659, %658 : vector<2x32xf32>
    %661 = arith.divf %659, %660 : vector<2x32xf32>
    %662 = vector.extract_strided_slice %655 {offsets = [0, 32], sizes = [2, 32], strides = [1, 1]} : vector<2x128xf32> to vector<2x32xf32>
    %663 = arith.negf %662 : vector<2x32xf32>
    %664 = math.exp %663 : vector<2x32xf32>
    %cst_162 = arith.constant 1.000000e+00 : f32
    %665 = vector.broadcast %cst_162 : f32 to vector<2x32xf32>
    %666 = arith.addf %665, %664 : vector<2x32xf32>
    %667 = arith.divf %665, %666 : vector<2x32xf32>
    %668 = vector.extract_strided_slice %655 {offsets = [0, 64], sizes = [2, 32], strides = [1, 1]} : vector<2x128xf32> to vector<2x32xf32>
    %669 = math.tanh %668 : vector<2x32xf32>
    %670 = vector.extract_strided_slice %655 {offsets = [0, 96], sizes = [2, 32], strides = [1, 1]} : vector<2x128xf32> to vector<2x32xf32>
    %671 = arith.negf %670 : vector<2x32xf32>
    %672 = math.exp %671 : vector<2x32xf32>
    %cst_163 = arith.constant 1.000000e+00 : f32
    %673 = vector.broadcast %cst_163 : f32 to vector<2x32xf32>
    %674 = arith.addf %673, %672 : vector<2x32xf32>
    %675 = arith.divf %673, %674 : vector<2x32xf32>
    %676 = arith.mulf %667, %622 : vector<2x32xf32>
    %677 = arith.mulf %661, %669 : vector<2x32xf32>
    %678 = arith.addf %676, %677 : vector<2x32xf32>
    %679 = math.tanh %678 : vector<2x32xf32>
    %680 = arith.mulf %675, %679 : vector<2x32xf32>
    %681 = vector.extract_strided_slice %498 {offsets = [6, 0], sizes = [2, 128], strides = [1, 1]} : vector<16x128xf32> to vector<2x128xf32>
    %cst_164 = arith.constant dense<0.000000e+00> : vector<2x128xf32>
    %682 = tpu.matmul %652, %507, %cst_164 {dimension_numbers = #tpu.dot_dimension_numbers<[1], [0], [0], [1], [0, 0, 1, 1], [], []>} : vector<2x32xf32>, vector<32x128xf32>, vector<2x128xf32> -> vector<2x128xf32>
    %683 = arith.addf %681, %682 : vector<2x128xf32>
    %684 = vector.extract_strided_slice %683 {offsets = [0, 0], sizes = [2, 32], strides = [1, 1]} : vector<2x128xf32> to vector<2x32xf32>
    %685 = arith.negf %684 : vector<2x32xf32>
    %686 = math.exp %685 : vector<2x32xf32>
    %cst_165 = arith.constant 1.000000e+00 : f32
    %687 = vector.broadcast %cst_165 : f32 to vector<2x32xf32>
    %688 = arith.addf %687, %686 : vector<2x32xf32>
    %689 = arith.divf %687, %688 : vector<2x32xf32>
    %690 = vector.extract_strided_slice %683 {offsets = [0, 32], sizes = [2, 32], strides = [1, 1]} : vector<2x128xf32> to vector<2x32xf32>
    %691 = arith.negf %690 : vector<2x32xf32>
    %692 = math.exp %691 : vector<2x32xf32>
    %cst_166 = arith.constant 1.000000e+00 : f32
    %693 = vector.broadcast %cst_166 : f32 to vector<2x32xf32>
    %694 = arith.addf %693, %692 : vector<2x32xf32>
    %695 = arith.divf %693, %694 : vector<2x32xf32>
    %696 = vector.extract_strided_slice %683 {offsets = [0, 64], sizes = [2, 32], strides = [1, 1]} : vector<2x128xf32> to vector<2x32xf32>
    %697 = math.tanh %696 : vector<2x32xf32>
    %698 = vector.extract_strided_slice %683 {offsets = [0, 96], sizes = [2, 32], strides = [1, 1]} : vector<2x128xf32> to vector<2x32xf32>
    %699 = arith.negf %698 : vector<2x32xf32>
    %700 = math.exp %699 : vector<2x32xf32>
    %cst_167 = arith.constant 1.000000e+00 : f32
    %701 = vector.broadcast %cst_167 : f32 to vector<2x32xf32>
    %702 = arith.addf %701, %700 : vector<2x32xf32>
    %703 = arith.divf %701, %702 : vector<2x32xf32>
    %704 = arith.mulf %695, %650 : vector<2x32xf32>
    %705 = arith.mulf %689, %697 : vector<2x32xf32>
    %706 = arith.addf %704, %705 : vector<2x32xf32>
    %707 = math.tanh %706 : vector<2x32xf32>
    %708 = arith.mulf %703, %707 : vector<2x32xf32>
    %709 = vector.extract_strided_slice %506 {offsets = [8, 0], sizes = [2, 128], strides = [1, 1]} : vector<16x128xf32> to vector<2x128xf32>
    %cst_168 = arith.constant dense<0.000000e+00> : vector<2x128xf32>
    %710 = tpu.matmul %680, %508, %cst_168 {dimension_numbers = #tpu.dot_dimension_numbers<[1], [0], [0], [1], [0, 0, 1, 1], [], []>} : vector<2x32xf32>, vector<32x128xf32>, vector<2x128xf32> -> vector<2x128xf32>
    %711 = arith.addf %709, %710 : vector<2x128xf32>
    %712 = vector.extract_strided_slice %711 {offsets = [0, 0], sizes = [2, 32], strides = [1, 1]} : vector<2x128xf32> to vector<2x32xf32>
    %713 = arith.negf %712 : vector<2x32xf32>
    %714 = math.exp %713 : vector<2x32xf32>
    %cst_169 = arith.constant 1.000000e+00 : f32
    %715 = vector.broadcast %cst_169 : f32 to vector<2x32xf32>
    %716 = arith.addf %715, %714 : vector<2x32xf32>
    %717 = arith.divf %715, %716 : vector<2x32xf32>
    %718 = vector.extract_strided_slice %711 {offsets = [0, 32], sizes = [2, 32], strides = [1, 1]} : vector<2x128xf32> to vector<2x32xf32>
    %719 = arith.negf %718 : vector<2x32xf32>
    %720 = math.exp %719 : vector<2x32xf32>
    %cst_170 = arith.constant 1.000000e+00 : f32
    %721 = vector.broadcast %cst_170 : f32 to vector<2x32xf32>
    %722 = arith.addf %721, %720 : vector<2x32xf32>
    %723 = arith.divf %721, %722 : vector<2x32xf32>
    %724 = vector.extract_strided_slice %711 {offsets = [0, 64], sizes = [2, 32], strides = [1, 1]} : vector<2x128xf32> to vector<2x32xf32>
    %725 = math.tanh %724 : vector<2x32xf32>
    %726 = vector.extract_strided_slice %711 {offsets = [0, 96], sizes = [2, 32], strides = [1, 1]} : vector<2x128xf32> to vector<2x32xf32>
    %727 = arith.negf %726 : vector<2x32xf32>
    %728 = math.exp %727 : vector<2x32xf32>
    %cst_171 = arith.constant 1.000000e+00 : f32
    %729 = vector.broadcast %cst_171 : f32 to vector<2x32xf32>
    %730 = arith.addf %729, %728 : vector<2x32xf32>
    %731 = arith.divf %729, %730 : vector<2x32xf32>
    %732 = arith.mulf %723, %678 : vector<2x32xf32>
    %733 = arith.mulf %717, %725 : vector<2x32xf32>
    %734 = arith.addf %732, %733 : vector<2x32xf32>
    %735 = math.tanh %734 : vector<2x32xf32>
    %736 = arith.mulf %731, %735 : vector<2x32xf32>
    %737 = vector.extract_strided_slice %498 {offsets = [8, 0], sizes = [2, 128], strides = [1, 1]} : vector<16x128xf32> to vector<2x128xf32>
    %cst_172 = arith.constant dense<0.000000e+00> : vector<2x128xf32>
    %738 = tpu.matmul %708, %507, %cst_172 {dimension_numbers = #tpu.dot_dimension_numbers<[1], [0], [0], [1], [0, 0, 1, 1], [], []>} : vector<2x32xf32>, vector<32x128xf32>, vector<2x128xf32> -> vector<2x128xf32>
    %739 = arith.addf %737, %738 : vector<2x128xf32>
    %740 = vector.extract_strided_slice %739 {offsets = [0, 0], sizes = [2, 32], strides = [1, 1]} : vector<2x128xf32> to vector<2x32xf32>
    %741 = arith.negf %740 : vector<2x32xf32>
    %742 = math.exp %741 : vector<2x32xf32>
    %cst_173 = arith.constant 1.000000e+00 : f32
    %743 = vector.broadcast %cst_173 : f32 to vector<2x32xf32>
    %744 = arith.addf %743, %742 : vector<2x32xf32>
    %745 = arith.divf %743, %744 : vector<2x32xf32>
    %746 = vector.extract_strided_slice %739 {offsets = [0, 32], sizes = [2, 32], strides = [1, 1]} : vector<2x128xf32> to vector<2x32xf32>
    %747 = arith.negf %746 : vector<2x32xf32>
    %748 = math.exp %747 : vector<2x32xf32>
    %cst_174 = arith.constant 1.000000e+00 : f32
    %749 = vector.broadcast %cst_174 : f32 to vector<2x32xf32>
    %750 = arith.addf %749, %748 : vector<2x32xf32>
    %751 = arith.divf %749, %750 : vector<2x32xf32>
    %752 = vector.extract_strided_slice %739 {offsets = [0, 64], sizes = [2, 32], strides = [1, 1]} : vector<2x128xf32> to vector<2x32xf32>
    %753 = math.tanh %752 : vector<2x32xf32>
    %754 = vector.extract_strided_slice %739 {offsets = [0, 96], sizes = [2, 32], strides = [1, 1]} : vector<2x128xf32> to vector<2x32xf32>
    %755 = arith.negf %754 : vector<2x32xf32>
    %756 = math.exp %755 : vector<2x32xf32>
    %cst_175 = arith.constant 1.000000e+00 : f32
    %757 = vector.broadcast %cst_175 : f32 to vector<2x32xf32>
    %758 = arith.addf %757, %756 : vector<2x32xf32>
    %759 = arith.divf %757, %758 : vector<2x32xf32>
    %760 = arith.mulf %751, %706 : vector<2x32xf32>
    %761 = arith.mulf %745, %753 : vector<2x32xf32>
    %762 = arith.addf %760, %761 : vector<2x32xf32>
    %763 = math.tanh %762 : vector<2x32xf32>
    %764 = arith.mulf %759, %763 : vector<2x32xf32>
    %765 = vector.extract_strided_slice %506 {offsets = [6, 0], sizes = [2, 128], strides = [1, 1]} : vector<16x128xf32> to vector<2x128xf32>
    %cst_176 = arith.constant dense<0.000000e+00> : vector<2x128xf32>
    %766 = tpu.matmul %736, %508, %cst_176 {dimension_numbers = #tpu.dot_dimension_numbers<[1], [0], [0], [1], [0, 0, 1, 1], [], []>} : vector<2x32xf32>, vector<32x128xf32>, vector<2x128xf32> -> vector<2x128xf32>
    %767 = arith.addf %765, %766 : vector<2x128xf32>
    %768 = vector.extract_strided_slice %767 {offsets = [0, 0], sizes = [2, 32], strides = [1, 1]} : vector<2x128xf32> to vector<2x32xf32>
    %769 = arith.negf %768 : vector<2x32xf32>
    %770 = math.exp %769 : vector<2x32xf32>
    %cst_177 = arith.constant 1.000000e+00 : f32
    %771 = vector.broadcast %cst_177 : f32 to vector<2x32xf32>
    %772 = arith.addf %771, %770 : vector<2x32xf32>
    %773 = arith.divf %771, %772 : vector<2x32xf32>
    %774 = vector.extract_strided_slice %767 {offsets = [0, 32], sizes = [2, 32], strides = [1, 1]} : vector<2x128xf32> to vector<2x32xf32>
    %775 = arith.negf %774 : vector<2x32xf32>
    %776 = math.exp %775 : vector<2x32xf32>
    %cst_178 = arith.constant 1.000000e+00 : f32
    %777 = vector.broadcast %cst_178 : f32 to vector<2x32xf32>
    %778 = arith.addf %777, %776 : vector<2x32xf32>
    %779 = arith.divf %777, %778 : vector<2x32xf32>
    %780 = vector.extract_strided_slice %767 {offsets = [0, 64], sizes = [2, 32], strides = [1, 1]} : vector<2x128xf32> to vector<2x32xf32>
    %781 = math.tanh %780 : vector<2x32xf32>
    %782 = vector.extract_strided_slice %767 {offsets = [0, 96], sizes = [2, 32], strides = [1, 1]} : vector<2x128xf32> to vector<2x32xf32>
    %783 = arith.negf %782 : vector<2x32xf32>
    %784 = math.exp %783 : vector<2x32xf32>
    %cst_179 = arith.constant 1.000000e+00 : f32
    %785 = vector.broadcast %cst_179 : f32 to vector<2x32xf32>
    %786 = arith.addf %785, %784 : vector<2x32xf32>
    %787 = arith.divf %785, %786 : vector<2x32xf32>
    %788 = arith.mulf %779, %734 : vector<2x32xf32>
    %789 = arith.mulf %773, %781 : vector<2x32xf32>
    %790 = arith.addf %788, %789 : vector<2x32xf32>
    %791 = math.tanh %790 : vector<2x32xf32>
    %792 = arith.mulf %787, %791 : vector<2x32xf32>
    %793 = vector.extract_strided_slice %498 {offsets = [10, 0], sizes = [2, 128], strides = [1, 1]} : vector<16x128xf32> to vector<2x128xf32>
    %cst_180 = arith.constant dense<0.000000e+00> : vector<2x128xf32>
    %794 = tpu.matmul %764, %507, %cst_180 {dimension_numbers = #tpu.dot_dimension_numbers<[1], [0], [0], [1], [0, 0, 1, 1], [], []>} : vector<2x32xf32>, vector<32x128xf32>, vector<2x128xf32> -> vector<2x128xf32>
    %795 = arith.addf %793, %794 : vector<2x128xf32>
    %796 = vector.extract_strided_slice %795 {offsets = [0, 0], sizes = [2, 32], strides = [1, 1]} : vector<2x128xf32> to vector<2x32xf32>
    %797 = arith.negf %796 : vector<2x32xf32>
    %798 = math.exp %797 : vector<2x32xf32>
    %cst_181 = arith.constant 1.000000e+00 : f32
    %799 = vector.broadcast %cst_181 : f32 to vector<2x32xf32>
    %800 = arith.addf %799, %798 : vector<2x32xf32>
    %801 = arith.divf %799, %800 : vector<2x32xf32>
    %802 = vector.extract_strided_slice %795 {offsets = [0, 32], sizes = [2, 32], strides = [1, 1]} : vector<2x128xf32> to vector<2x32xf32>
    %803 = arith.negf %802 : vector<2x32xf32>
    %804 = math.exp %803 : vector<2x32xf32>
    %cst_182 = arith.constant 1.000000e+00 : f32
    %805 = vector.broadcast %cst_182 : f32 to vector<2x32xf32>
    %806 = arith.addf %805, %804 : vector<2x32xf32>
    %807 = arith.divf %805, %806 : vector<2x32xf32>
    %808 = vector.extract_strided_slice %795 {offsets = [0, 64], sizes = [2, 32], strides = [1, 1]} : vector<2x128xf32> to vector<2x32xf32>
    %809 = math.tanh %808 : vector<2x32xf32>
    %810 = vector.extract_strided_slice %795 {offsets = [0, 96], sizes = [2, 32], strides = [1, 1]} : vector<2x128xf32> to vector<2x32xf32>
    %811 = arith.negf %810 : vector<2x32xf32>
    %812 = math.exp %811 : vector<2x32xf32>
    %cst_183 = arith.constant 1.000000e+00 : f32
    %813 = vector.broadcast %cst_183 : f32 to vector<2x32xf32>
    %814 = arith.addf %813, %812 : vector<2x32xf32>
    %815 = arith.divf %813, %814 : vector<2x32xf32>
    %816 = arith.mulf %807, %762 : vector<2x32xf32>
    %817 = arith.mulf %801, %809 : vector<2x32xf32>
    %818 = arith.addf %816, %817 : vector<2x32xf32>
    %819 = math.tanh %818 : vector<2x32xf32>
    %820 = arith.mulf %815, %819 : vector<2x32xf32>
    %821 = vector.extract_strided_slice %506 {offsets = [4, 0], sizes = [2, 128], strides = [1, 1]} : vector<16x128xf32> to vector<2x128xf32>
    %cst_184 = arith.constant dense<0.000000e+00> : vector<2x128xf32>
    %822 = tpu.matmul %792, %508, %cst_184 {dimension_numbers = #tpu.dot_dimension_numbers<[1], [0], [0], [1], [0, 0, 1, 1], [], []>} : vector<2x32xf32>, vector<32x128xf32>, vector<2x128xf32> -> vector<2x128xf32>
    %823 = arith.addf %821, %822 : vector<2x128xf32>
    %824 = vector.extract_strided_slice %823 {offsets = [0, 0], sizes = [2, 32], strides = [1, 1]} : vector<2x128xf32> to vector<2x32xf32>
    %825 = arith.negf %824 : vector<2x32xf32>
    %826 = math.exp %825 : vector<2x32xf32>
    %cst_185 = arith.constant 1.000000e+00 : f32
    %827 = vector.broadcast %cst_185 : f32 to vector<2x32xf32>
    %828 = arith.addf %827, %826 : vector<2x32xf32>
    %829 = arith.divf %827, %828 : vector<2x32xf32>
    %830 = vector.extract_strided_slice %823 {offsets = [0, 32], sizes = [2, 32], strides = [1, 1]} : vector<2x128xf32> to vector<2x32xf32>
    %831 = arith.negf %830 : vector<2x32xf32>
    %832 = math.exp %831 : vector<2x32xf32>
    %cst_186 = arith.constant 1.000000e+00 : f32
    %833 = vector.broadcast %cst_186 : f32 to vector<2x32xf32>
    %834 = arith.addf %833, %832 : vector<2x32xf32>
    %835 = arith.divf %833, %834 : vector<2x32xf32>
    %836 = vector.extract_strided_slice %823 {offsets = [0, 64], sizes = [2, 32], strides = [1, 1]} : vector<2x128xf32> to vector<2x32xf32>
    %837 = math.tanh %836 : vector<2x32xf32>
    %838 = vector.extract_strided_slice %823 {offsets = [0, 96], sizes = [2, 32], strides = [1, 1]} : vector<2x128xf32> to vector<2x32xf32>
    %839 = arith.negf %838 : vector<2x32xf32>
    %840 = math.exp %839 : vector<2x32xf32>
    %cst_187 = arith.constant 1.000000e+00 : f32
    %841 = vector.broadcast %cst_187 : f32 to vector<2x32xf32>
    %842 = arith.addf %841, %840 : vector<2x32xf32>
    %843 = arith.divf %841, %842 : vector<2x32xf32>
    %844 = arith.mulf %835, %790 : vector<2x32xf32>
    %845 = arith.mulf %829, %837 : vector<2x32xf32>
    %846 = arith.addf %844, %845 : vector<2x32xf32>
    %847 = math.tanh %846 : vector<2x32xf32>
    %848 = arith.mulf %843, %847 : vector<2x32xf32>
    %849 = vector.extract_strided_slice %498 {offsets = [12, 0], sizes = [2, 128], strides = [1, 1]} : vector<16x128xf32> to vector<2x128xf32>
    %cst_188 = arith.constant dense<0.000000e+00> : vector<2x128xf32>
    %850 = tpu.matmul %820, %507, %cst_188 {dimension_numbers = #tpu.dot_dimension_numbers<[1], [0], [0], [1], [0, 0, 1, 1], [], []>} : vector<2x32xf32>, vector<32x128xf32>, vector<2x128xf32> -> vector<2x128xf32>
    %851 = arith.addf %849, %850 : vector<2x128xf32>
    %852 = vector.extract_strided_slice %851 {offsets = [0, 0], sizes = [2, 32], strides = [1, 1]} : vector<2x128xf32> to vector<2x32xf32>
    %853 = arith.negf %852 : vector<2x32xf32>
    %854 = math.exp %853 : vector<2x32xf32>
    %cst_189 = arith.constant 1.000000e+00 : f32
    %855 = vector.broadcast %cst_189 : f32 to vector<2x32xf32>
    %856 = arith.addf %855, %854 : vector<2x32xf32>
    %857 = arith.divf %855, %856 : vector<2x32xf32>
    %858 = vector.extract_strided_slice %851 {offsets = [0, 32], sizes = [2, 32], strides = [1, 1]} : vector<2x128xf32> to vector<2x32xf32>
    %859 = arith.negf %858 : vector<2x32xf32>
    %860 = math.exp %859 : vector<2x32xf32>
    %cst_190 = arith.constant 1.000000e+00 : f32
    %861 = vector.broadcast %cst_190 : f32 to vector<2x32xf32>
    %862 = arith.addf %861, %860 : vector<2x32xf32>
    %863 = arith.divf %861, %862 : vector<2x32xf32>
    %864 = vector.extract_strided_slice %851 {offsets = [0, 64], sizes = [2, 32], strides = [1, 1]} : vector<2x128xf32> to vector<2x32xf32>
    %865 = math.tanh %864 : vector<2x32xf32>
    %866 = vector.extract_strided_slice %851 {offsets = [0, 96], sizes = [2, 32], strides = [1, 1]} : vector<2x128xf32> to vector<2x32xf32>
    %867 = arith.negf %866 : vector<2x32xf32>
    %868 = math.exp %867 : vector<2x32xf32>
    %cst_191 = arith.constant 1.000000e+00 : f32
    %869 = vector.broadcast %cst_191 : f32 to vector<2x32xf32>
    %870 = arith.addf %869, %868 : vector<2x32xf32>
    %871 = arith.divf %869, %870 : vector<2x32xf32>
    %872 = arith.mulf %863, %818 : vector<2x32xf32>
    %873 = arith.mulf %857, %865 : vector<2x32xf32>
    %874 = arith.addf %872, %873 : vector<2x32xf32>
    %875 = math.tanh %874 : vector<2x32xf32>
    %876 = arith.mulf %871, %875 : vector<2x32xf32>
    %877 = vector.extract_strided_slice %506 {offsets = [2, 0], sizes = [2, 128], strides = [1, 1]} : vector<16x128xf32> to vector<2x128xf32>
    %cst_192 = arith.constant dense<0.000000e+00> : vector<2x128xf32>
    %878 = tpu.matmul %848, %508, %cst_192 {dimension_numbers = #tpu.dot_dimension_numbers<[1], [0], [0], [1], [0, 0, 1, 1], [], []>} : vector<2x32xf32>, vector<32x128xf32>, vector<2x128xf32> -> vector<2x128xf32>
    %879 = arith.addf %877, %878 : vector<2x128xf32>
    %880 = vector.extract_strided_slice %879 {offsets = [0, 0], sizes = [2, 32], strides = [1, 1]} : vector<2x128xf32> to vector<2x32xf32>
    %881 = arith.negf %880 : vector<2x32xf32>
    %882 = math.exp %881 : vector<2x32xf32>
    %cst_193 = arith.constant 1.000000e+00 : f32
    %883 = vector.broadcast %cst_193 : f32 to vector<2x32xf32>
    %884 = arith.addf %883, %882 : vector<2x32xf32>
    %885 = arith.divf %883, %884 : vector<2x32xf32>
    %886 = vector.extract_strided_slice %879 {offsets = [0, 32], sizes = [2, 32], strides = [1, 1]} : vector<2x128xf32> to vector<2x32xf32>
    %887 = arith.negf %886 : vector<2x32xf32>
    %888 = math.exp %887 : vector<2x32xf32>
    %cst_194 = arith.constant 1.000000e+00 : f32
    %889 = vector.broadcast %cst_194 : f32 to vector<2x32xf32>
    %890 = arith.addf %889, %888 : vector<2x32xf32>
    %891 = arith.divf %889, %890 : vector<2x32xf32>
    %892 = vector.extract_strided_slice %879 {offsets = [0, 64], sizes = [2, 32], strides = [1, 1]} : vector<2x128xf32> to vector<2x32xf32>
    %893 = math.tanh %892 : vector<2x32xf32>
    %894 = vector.extract_strided_slice %879 {offsets = [0, 96], sizes = [2, 32], strides = [1, 1]} : vector<2x128xf32> to vector<2x32xf32>
    %895 = arith.negf %894 : vector<2x32xf32>
    %896 = math.exp %895 : vector<2x32xf32>
    %cst_195 = arith.constant 1.000000e+00 : f32
    %897 = vector.broadcast %cst_195 : f32 to vector<2x32xf32>
    %898 = arith.addf %897, %896 : vector<2x32xf32>
    %899 = arith.divf %897, %898 : vector<2x32xf32>
    %900 = arith.mulf %891, %846 : vector<2x32xf32>
    %901 = arith.mulf %885, %893 : vector<2x32xf32>
    %902 = arith.addf %900, %901 : vector<2x32xf32>
    %903 = math.tanh %902 : vector<2x32xf32>
    %904 = arith.mulf %899, %903 : vector<2x32xf32>
    %905 = vector.extract_strided_slice %498 {offsets = [14, 0], sizes = [2, 128], strides = [1, 1]} : vector<16x128xf32> to vector<2x128xf32>
    %cst_196 = arith.constant dense<0.000000e+00> : vector<2x128xf32>
    %906 = tpu.matmul %876, %507, %cst_196 {dimension_numbers = #tpu.dot_dimension_numbers<[1], [0], [0], [1], [0, 0, 1, 1], [], []>} : vector<2x32xf32>, vector<32x128xf32>, vector<2x128xf32> -> vector<2x128xf32>
    %907 = arith.addf %905, %906 : vector<2x128xf32>
    %908 = vector.extract_strided_slice %907 {offsets = [0, 0], sizes = [2, 32], strides = [1, 1]} : vector<2x128xf32> to vector<2x32xf32>
    %909 = arith.negf %908 : vector<2x32xf32>
    %910 = math.exp %909 : vector<2x32xf32>
    %cst_197 = arith.constant 1.000000e+00 : f32
    %911 = vector.broadcast %cst_197 : f32 to vector<2x32xf32>
    %912 = arith.addf %911, %910 : vector<2x32xf32>
    %913 = arith.divf %911, %912 : vector<2x32xf32>
    %914 = vector.extract_strided_slice %907 {offsets = [0, 32], sizes = [2, 32], strides = [1, 1]} : vector<2x128xf32> to vector<2x32xf32>
    %915 = arith.negf %914 : vector<2x32xf32>
    %916 = math.exp %915 : vector<2x32xf32>
    %cst_198 = arith.constant 1.000000e+00 : f32
    %917 = vector.broadcast %cst_198 : f32 to vector<2x32xf32>
    %918 = arith.addf %917, %916 : vector<2x32xf32>
    %919 = arith.divf %917, %918 : vector<2x32xf32>
    %920 = vector.extract_strided_slice %907 {offsets = [0, 64], sizes = [2, 32], strides = [1, 1]} : vector<2x128xf32> to vector<2x32xf32>
    %921 = math.tanh %920 : vector<2x32xf32>
    %922 = vector.extract_strided_slice %907 {offsets = [0, 96], sizes = [2, 32], strides = [1, 1]} : vector<2x128xf32> to vector<2x32xf32>
    %923 = arith.negf %922 : vector<2x32xf32>
    %924 = math.exp %923 : vector<2x32xf32>
    %cst_199 = arith.constant 1.000000e+00 : f32
    %925 = vector.broadcast %cst_199 : f32 to vector<2x32xf32>
    %926 = arith.addf %925, %924 : vector<2x32xf32>
    %927 = arith.divf %925, %926 : vector<2x32xf32>
    %928 = arith.mulf %919, %874 : vector<2x32xf32>
    %929 = arith.mulf %913, %921 : vector<2x32xf32>
    %930 = arith.addf %928, %929 : vector<2x32xf32>
    %931 = math.tanh %930 : vector<2x32xf32>
    %932 = arith.mulf %927, %931 : vector<2x32xf32>
    %933 = vector.extract_strided_slice %506 {offsets = [0, 0], sizes = [2, 128], strides = [1, 1]} : vector<16x128xf32> to vector<2x128xf32>
    %cst_200 = arith.constant dense<0.000000e+00> : vector<2x128xf32>
    %934 = tpu.matmul %904, %508, %cst_200 {dimension_numbers = #tpu.dot_dimension_numbers<[1], [0], [0], [1], [0, 0, 1, 1], [], []>} : vector<2x32xf32>, vector<32x128xf32>, vector<2x128xf32> -> vector<2x128xf32>
    %935 = arith.addf %933, %934 : vector<2x128xf32>
    %936 = vector.extract_strided_slice %935 {offsets = [0, 0], sizes = [2, 32], strides = [1, 1]} : vector<2x128xf32> to vector<2x32xf32>
    %937 = arith.negf %936 : vector<2x32xf32>
    %938 = math.exp %937 : vector<2x32xf32>
    %cst_201 = arith.constant 1.000000e+00 : f32
    %939 = vector.broadcast %cst_201 : f32 to vector<2x32xf32>
    %940 = arith.addf %939, %938 : vector<2x32xf32>
    %941 = arith.divf %939, %940 : vector<2x32xf32>
    %942 = vector.extract_strided_slice %935 {offsets = [0, 32], sizes = [2, 32], strides = [1, 1]} : vector<2x128xf32> to vector<2x32xf32>
    %943 = arith.negf %942 : vector<2x32xf32>
    %944 = math.exp %943 : vector<2x32xf32>
    %cst_202 = arith.constant 1.000000e+00 : f32
    %945 = vector.broadcast %cst_202 : f32 to vector<2x32xf32>
    %946 = arith.addf %945, %944 : vector<2x32xf32>
    %947 = arith.divf %945, %946 : vector<2x32xf32>
    %948 = vector.extract_strided_slice %935 {offsets = [0, 64], sizes = [2, 32], strides = [1, 1]} : vector<2x128xf32> to vector<2x32xf32>
    %949 = math.tanh %948 : vector<2x32xf32>
    %950 = vector.extract_strided_slice %935 {offsets = [0, 96], sizes = [2, 32], strides = [1, 1]} : vector<2x128xf32> to vector<2x32xf32>
    %951 = arith.negf %950 : vector<2x32xf32>
    %952 = math.exp %951 : vector<2x32xf32>
    %cst_203 = arith.constant 1.000000e+00 : f32
    %953 = vector.broadcast %cst_203 : f32 to vector<2x32xf32>
    %954 = arith.addf %953, %952 : vector<2x32xf32>
    %955 = arith.divf %953, %954 : vector<2x32xf32>
    %956 = arith.mulf %947, %902 : vector<2x32xf32>
    %957 = arith.mulf %941, %949 : vector<2x32xf32>
    %958 = arith.addf %956, %957 : vector<2x32xf32>
    %959 = math.tanh %958 : vector<2x32xf32>
    %960 = arith.mulf %955, %959 : vector<2x32xf32>
    %c0_204 = arith.constant 0 : index
    %c0_205 = arith.constant 0 : index
    %961 = vector.load %arg16[%c0_204, %c0_205] : memref<128x32xf32, #tpu.memory_space<vmem>>, vector<128x32xf32>
    %962 = vector.extract_strided_slice %961 {offsets = [0, 0], sizes = [32, 32], strides = [1, 1]} : vector<128x32xf32> to vector<32x32xf32>
    %cst_206 = arith.constant dense<0.000000e+00> : vector<2x32xf32>
    %963 = tpu.matmul %932, %962, %cst_206 {dimension_numbers = #tpu.dot_dimension_numbers<[1], [0], [0], [1], [0, 0, 1, 1], [], []>} : vector<2x32xf32>, vector<32x32xf32>, vector<2x32xf32> -> vector<2x32xf32>
    %964 = vector.extract_strided_slice %961 {offsets = [32, 0], sizes = [32, 32], strides = [1, 1]} : vector<128x32xf32> to vector<32x32xf32>
    %cst_207 = arith.constant dense<0.000000e+00> : vector<2x32xf32>
    %965 = tpu.matmul %568, %964, %cst_207 {dimension_numbers = #tpu.dot_dimension_numbers<[1], [0], [0], [1], [0, 0, 1, 1], [], []>} : vector<2x32xf32>, vector<32x32xf32>, vector<2x32xf32> -> vector<2x32xf32>
    %966 = arith.addf %963, %965 : vector<2x32xf32>
    %967 = vector.extract_strided_slice %961 {offsets = [64, 0], sizes = [32, 32], strides = [1, 1]} : vector<128x32xf32> to vector<32x32xf32>
    %cst_208 = arith.constant dense<0.000000e+00> : vector<2x32xf32>
    %968 = tpu.matmul %540, %967, %cst_208 {dimension_numbers = #tpu.dot_dimension_numbers<[1], [0], [0], [1], [0, 0, 1, 1], [], []>} : vector<2x32xf32>, vector<32x32xf32>, vector<2x32xf32> -> vector<2x32xf32>
    %969 = arith.addf %966, %968 : vector<2x32xf32>
    %970 = vector.extract_strided_slice %961 {offsets = [96, 0], sizes = [32, 32], strides = [1, 1]} : vector<128x32xf32> to vector<32x32xf32>
    %cst_209 = arith.constant dense<0.000000e+00> : vector<2x32xf32>
    %971 = tpu.matmul %960, %970, %cst_209 {dimension_numbers = #tpu.dot_dimension_numbers<[1], [0], [0], [1], [0, 0, 1, 1], [], []>} : vector<2x32xf32>, vector<32x32xf32>, vector<2x32xf32> -> vector<2x32xf32>
    %972 = arith.addf %969, %971 : vector<2x32xf32>
    %c0_210 = arith.constant 0 : index
    %c0_211 = arith.constant 0 : index
    %973 = vector.load %arg17[%c0_210, %c0_211] : memref<1x32xf32, #tpu.memory_space<vmem>>, vector<1x32xf32>
    %974 = vector.broadcast %973 : vector<1x32xf32> to vector<2x32xf32>
    %975 = arith.addf %972, %974 : vector<2x32xf32>
    %cst_212 = arith.constant 0.000000e+00 : f32
    %976 = vector.broadcast %cst_212 : f32 to vector<2x32xf32>
    %977 = arith.maximumf %975, %976 : vector<2x32xf32>
    %c0_213 = arith.constant 0 : index
    %c0_214 = arith.constant 0 : index
    %978 = vector.load %arg18[%c0_213, %c0_214] : memref<2x32xf32, #tpu.memory_space<vmem>>, vector<2x32xf32>
    tpu.vector_store %arg18[%c0_213, %c0_214], %977 {strides = array<i32>} : memref<2x32xf32, #tpu.memory_space<vmem>>, vector<2x32xf32>,
    return
  }
}

</mosaic_0001>

<llo_original>
// kernel: model_forward.1
$region0: #{model_forward.1}
  #allocation0 [shape = 'u32[]', space=smem, size = 0x4, offset = 0x4, fixed_abs, tag = 'smem constant byte address 0x4 - core index']
  #allocation1 [shape = 'u32[144,128]{1,0:T(1,128)}', space=vmem, size = 0x12000, scoped, tag = 'internal scratch']
  #allocation2 [shape = 'f32[16,32]{1,0:T(8,128)}', space=vmem, size = 0x2000, scoped, tag = 'scratch operand']
  #allocation3 [shape = 'f32[16,32]{1,0:T(8,128)}', space=vmem, size = 0x2000, scoped, tag = 'scratch operand']
  %s0 = inlined_call_operand.vmem [shape: s32[16,1], index: 0, kind: input, shape index: {}]
  %s1 = inlined_call_operand.vmem [shape: f32[32,16], index: 1, kind: input, shape index: {}]
  %s2 = inlined_call_operand.hbm [shape: f32[16,128], index: 2, kind: input, shape index: {}]
  %s3 = inlined_call_operand.vmem [shape: f32[32,128], index: 3, kind: input, shape index: {}]
  %s4 = inlined_call_operand.hbm [shape: f32[1,128], index: 4, kind: input, shape index: {}]
  %s5 = inlined_call_operand.hbm [shape: f32[16,128], index: 5, kind: input, shape index: {}]
  %s6 = inlined_call_operand.vmem [shape: f32[32,128], index: 6, kind: input, shape index: {}]
  %s7 = inlined_call_operand.hbm [shape: f32[1,128], index: 7, kind: input, shape index: {}]
  %s8 = inlined_call_operand.vmem [shape: f32[32,128], index: 8, kind: input, shape index: {}]
  %s9 = inlined_call_operand.vmem [shape: f32[32,128], index: 9, kind: input, shape index: {}]
  %s10 = inlined_call_operand.vmem [shape: f32[32,128], index: 10, kind: input, shape index: {}]
  %s11 = inlined_call_operand.vmem [shape: f32[1,128], index: 11, kind: input, shape index: {}]
  %s12 = inlined_call_operand.vmem [shape: f32[32,128], index: 12, kind: input, shape index: {}]
  %s13 = inlined_call_operand.vmem [shape: f32[32,128], index: 13, kind: input, shape index: {}]
  %s14 = inlined_call_operand.hbm [shape: f32[32,128], index: 14, kind: input, shape index: {}]
  %s15 = inlined_call_operand.hbm [shape: f32[1,128], index: 15, kind: input, shape index: {}]
  %s16 = inlined_call_operand.vmem [shape: f32[128,32], index: 16, kind: input, shape index: {}]
  %s17 = inlined_call_operand.vmem [shape: f32[1,32], index: 17, kind: input, shape index: {}]
  %s18 = inlined_call_operand.hbm [shape: f32[2,32], index: 18, kind: output, shape index: {}]
  %s19 = sld [smem:[#allocation0]]
  $region106: #{model_forward.1} parent=0
    _
  %s21 = ssub.s32 1, %s19
  %s22 = scalar_select 0, %s21, %s19
  $region1: #{model_forward.1} parent=0
    #allocation4 [shape = 'u8[8192]{0}', space=vmem, size = 0x2000, scoped, tag = 'input window, operand 2, single buffered']
    #allocation5 [shape = 's32[1]{0}', space=sflag, size = 0x4, scoped, tag = 'scoped memory for model_forward.1']
    #allocation6 [shape = 's32[1]{0}', space=sflag, size = 0x4, scoped, tag = 'scoped memory for model_forward.1']
    #allocation7 [shape = 'u8[512]{0}', space=vmem, size = 0x400, scoped, tag = 'input window, operand 4, single buffered']
    #allocation8 [shape = 's32[1]{0}', space=sflag, size = 0x4, scoped, tag = 'scoped memory for model_forward.1']
    #allocation9 [shape = 'u8[8192]{0}', space=vmem, size = 0x2000, scoped, tag = 'input window, operand 5, single buffered']
    #allocation10 [shape = 'u8[512]{0}', space=vmem, size = 0x400, scoped, tag = 'input window, operand 7, single buffered']
    #allocation11 [shape = 's32[1]{0}', space=sflag, size = 0x4, scoped, tag = 'scoped memory for model_forward.1']
    #allocation12 [shape = 'u8[16384]{0}', space=vmem, size = 0x4000, scoped, tag = 'input window, operand 14, single buffered']
    #allocation13 [shape = 'u8[512]{0}', space=vmem, size = 0x400, scoped, tag = 'input window, operand 15, single buffered']
    #allocation14 [shape = 's32[1]{0}', space=sflag, size = 0x4, scoped, tag = 'scoped memory for model_forward.1']
    #allocation15 [shape = 'u8[1024]{0}', space=vmem, size = 0x400, scoped, tag = 'output window, operand 0, single buffered']
    %23 = vsyncpa [#allocation5], 0
    %24 = vsyncpa [#allocation8], 0
    %25 = vsyncpa [#allocation11], 0
    %26 = vsyncpa [#allocation14], 0
    %27 = vsyncpa [#allocation6], 0
    // Predicated region
    $region2: #{model_forward.1} parent=1 // pred_check
      _
    $region3: #{model_forward.1} parent=1 // pred_check_branch
      %29 = sbr.rel (0) target = $region5
    $region4: #{model_forward.1} parent=1 // pred_region
      _
    $region5: #{model_forward.1} parent=1 // pred_fallthru
      _
    // Predicated region
    $region6: #{model_forward.1} parent=1 // pred_check
      _
    $region7: #{model_forward.1} parent=1 // pred_check_branch
      %31 = sbr.rel (0) target = $region9
    $region8: #{model_forward.1} parent=1 // pred_region
      _
    $region9: #{model_forward.1} parent=1 // pred_fallthru
      _
    // Predicated region
    $region10: #{model_forward.1} parent=1 // pred_check
      _
    $region11: #{model_forward.1} parent=1 // pred_check_branch
      %33 = sbr.rel (0) target = $region13
    $region12: #{model_forward.1} parent=1 // pred_region
      %s35 = ssub.s32 256, 256
      %36 = vsyncadd [#allocation5], %s35
      %s37 = sshll.u32 [#allocation4], 4
      %s38 = int_to_ptr.vmem [resolvable:$true] %s37
      %43 = dma.hbm_to_vmem [thread:$0]  %s2, 256, %s38, [#allocation5], 128, 128, 8
    $region13: #{model_forward.1} parent=1 // pred_fallthru
      _
    // Predicated region
    $region14: #{model_forward.1} parent=1 // pred_check
      _
    $region15: #{model_forward.1} parent=1 // pred_check_branch
      %45 = sbr.rel (0) target = $region17
    $region16: #{model_forward.1} parent=1 // pred_region
      _
    $region17: #{model_forward.1} parent=1 // pred_fallthru
      _
    // Predicated region
    $region18: #{model_forward.1} parent=1 // pred_check
      _
    $region19: #{model_forward.1} parent=1 // pred_check_branch
      %47 = sbr.rel (0) target = $region21
    $region20: #{model_forward.1} parent=1 // pred_region
      %s49 = ssub.s32 16, 16
      %50 = vsyncadd [#allocation8], %s49
      %s52 = sshll.u32 [#allocation7], 4
      %s53 = int_to_ptr.vmem [resolvable:$true] %s52
      %55 = dma.hbm_to_vmem [thread:$0]  %s4, 16, %s53, [#allocation8]
    $region21: #{model_forward.1} parent=1 // pred_fallthru
      _
    // Predicated region
    $region22: #{model_forward.1} parent=1 // pred_check
      _
    $region23: #{model_forward.1} parent=1 // pred_check_branch
      %57 = sbr.rel (0) target = $region25
    $region24: #{model_forward.1} parent=1 // pred_region
      %s59 = ssub.s32 256, 256
      %60 = vsyncadd [#allocation8], %s59
      %s61 = sshll.u32 [#allocation9], 4
      %s62 = int_to_ptr.vmem [resolvable:$true] %s61
      %67 = dma.hbm_to_vmem [thread:$0]  %s5, 256, %s62, [#allocation8], 128, 128, 8
    $region25: #{model_forward.1} parent=1 // pred_fallthru
      _
    // Predicated region
    $region26: #{model_forward.1} parent=1 // pred_check
      _
    $region27: #{model_forward.1} parent=1 // pred_check_branch
      %69 = sbr.rel (0) target = $region29
    $region28: #{model_forward.1} parent=1 // pred_region
      _
    $region29: #{model_forward.1} parent=1 // pred_fallthru
      _
    // Predicated region
    $region30: #{model_forward.1} parent=1 // pred_check
      _
    $region31: #{model_forward.1} parent=1 // pred_check_branch
      %71 = sbr.rel (0) target = $region33
    $region32: #{model_forward.1} parent=1 // pred_region
      %s73 = ssub.s32 16, 16
      %74 = vsyncadd [#allocation11], %s73
      %s76 = sshll.u32 [#allocation10], 4
      %s77 = int_to_ptr.vmem [resolvable:$true] %s76
      %79 = dma.hbm_to_vmem [thread:$0]  %s7, 16, %s77, [#allocation11]
    $region33: #{model_forward.1} parent=1 // pred_fallthru
      _
    // Predicated region
    $region34: #{model_forward.1} parent=1 // pred_check
      _
    $region35: #{model_forward.1} parent=1 // pred_check_branch
      %81 = sbr.rel (0) target = $region37
    $region36: #{model_forward.1} parent=1 // pred_region
      _
    $region37: #{model_forward.1} parent=1 // pred_fallthru
      _
    // Predicated region
    $region38: #{model_forward.1} parent=1 // pred_check
      _
    $region39: #{model_forward.1} parent=1 // pred_check_branch
      %83 = sbr.rel (0) target = $region41
    $region40: #{model_forward.1} parent=1 // pred_region
      _
    $region41: #{model_forward.1} parent=1 // pred_fallthru
      _
    // Predicated region
    $region42: #{model_forward.1} parent=1 // pred_check
      _
    $region43: #{model_forward.1} parent=1 // pred_check_branch
      %85 = sbr.rel (0) target = $region45
    $region44: #{model_forward.1} parent=1 // pred_region
      _
    $region45: #{model_forward.1} parent=1 // pred_fallthru
      _
    // Predicated region
    $region46: #{model_forward.1} parent=1 // pred_check
      _
    $region47: #{model_forward.1} parent=1 // pred_check_branch
      %87 = sbr.rel (0) target = $region49
    $region48: #{model_forward.1} parent=1 // pred_region
      _
    $region49: #{model_forward.1} parent=1 // pred_fallthru
      _
    // Predicated region
    $region50: #{model_forward.1} parent=1 // pred_check
      _
    $region51: #{model_forward.1} parent=1 // pred_check_branch
      %89 = sbr.rel (0) target = $region53
    $region52: #{model_forward.1} parent=1 // pred_region
      _
    $region53: #{model_forward.1} parent=1 // pred_fallthru
      _
    // Predicated region
    $region54: #{model_forward.1} parent=1 // pred_check
      _
    $region55: #{model_forward.1} parent=1 // pred_check_branch
      %91 = sbr.rel (0) target = $region57
    $region56: #{model_forward.1} parent=1 // pred_region
      _
    $region57: #{model_forward.1} parent=1 // pred_fallthru
      _
    // Predicated region
    $region58: #{model_forward.1} parent=1 // pred_check
      _
    $region59: #{model_forward.1} parent=1 // pred_check_branch
      %93 = sbr.rel (0) target = $region61
    $region60: #{model_forward.1} parent=1 // pred_region
      %s95 = ssub.s32 512, 512
      %96 = vsyncadd [#allocation11], %s95
      %s97 = sshll.u32 [#allocation12], 4
      %s98 = int_to_ptr.vmem [resolvable:$true] %s97
      %103 = dma.hbm_to_vmem [thread:$0]  %s14, 512, %s98, [#allocation11], 128, 128, 8
    $region61: #{model_forward.1} parent=1 // pred_fallthru
      _
    // Predicated region
    $region62: #{model_forward.1} parent=1 // pred_check
      _
    $region63: #{model_forward.1} parent=1 // pred_check_branch
      %105 = sbr.rel (0) target = $region65
    $region64: #{model_forward.1} parent=1 // pred_region
      %s107 = ssub.s32 16, 16
      %108 = vsyncadd [#allocation14], %s107
      %s110 = sshll.u32 [#allocation13], 4
      %s111 = int_to_ptr.vmem [resolvable:$true] %s110
      %113 = dma.hbm_to_vmem [thread:$0]  %s15, 16, %s111, [#allocation14]
    $region65: #{model_forward.1} parent=1 // pred_fallthru
      _
    // Predicated region
    $region66: #{model_forward.1} parent=1 // pred_check
      _
    $region67: #{model_forward.1} parent=1 // pred_check_branch
      %115 = sbr.rel (0) target = $region69
    $region68: #{model_forward.1} parent=1 // pred_region
      _
    $region69: #{model_forward.1} parent=1 // pred_fallthru
      _
    // Predicated region
    $region70: #{model_forward.1} parent=1 // pred_check
      _
    $region71: #{model_forward.1} parent=1 // pred_check_branch
      %117 = sbr.rel (0) target = $region73
    $region72: #{model_forward.1} parent=1 // pred_region
      _
    $region73: #{model_forward.1} parent=1 // pred_fallthru
      _
    // Predicated region
    $region74: #{model_forward.1} parent=1 // pred_check
      _
    $region75: #{model_forward.1} parent=1 // pred_check_branch
      %119 = sbr.rel (0) target = $region77
    $region76: #{model_forward.1} parent=1 // pred_region
      %120 = dma.done [#allocation5], 256
    $region77: #{model_forward.1} parent=1 // pred_fallthru
      _
    // Predicated region
    $region78: #{model_forward.1} parent=1 // pred_check
      _
    $region79: #{model_forward.1} parent=1 // pred_check_branch
      %122 = sbr.rel (0) target = $region81
    $region80: #{model_forward.1} parent=1 // pred_region
      %123 = dma.done [#allocation8], 16
    $region81: #{model_forward.1} parent=1 // pred_fallthru
      _
    // Predicated region
    $region82: #{model_forward.1} parent=1 // pred_check
      _
    $region83: #{model_forward.1} parent=1 // pred_check_branch
      %125 = sbr.rel (0) target = $region85
    $region84: #{model_forward.1} parent=1 // pred_region
      %126 = dma.done [#allocation8], 256
    $region85: #{model_forward.1} parent=1 // pred_fallthru
      _
    // Predicated region
    $region86: #{model_forward.1} parent=1 // pred_check
      _
    $region87: #{model_forward.1} parent=1 // pred_check_branch
      %128 = sbr.rel (0) target = $region89
    $region88: #{model_forward.1} parent=1 // pred_region
      %129 = dma.done [#allocation11], 16
    $region89: #{model_forward.1} parent=1 // pred_fallthru
      _
    // Predicated region
    $region90: #{model_forward.1} parent=1 // pred_check
      _
    $region91: #{model_forward.1} parent=1 // pred_check_branch
      %131 = sbr.rel (0) target = $region93
    $region92: #{model_forward.1} parent=1 // pred_region
      %132 = dma.done [#allocation11], 512
    $region93: #{model_forward.1} parent=1 // pred_fallthru
      _
    // Predicated region
    $region94: #{model_forward.1} parent=1 // pred_check
      _
    $region95: #{model_forward.1} parent=1 // pred_check_branch
      %134 = sbr.rel (0) target = $region97
    $region96: #{model_forward.1} parent=1 // pred_region
      %135 = dma.done [#allocation14], 16
    $region97: #{model_forward.1} parent=1 // pred_fallthru
      _
    %v136 = vld [vmem:[%s0] sm:$0xff]
    %v137 = vld [vmem:[%s0 + $0x8] sm:$0xff]
    %v138 = vlaneseq
    %v139 = vand.u32 %v138, 127
    %140 = vset.pattern.permute.xlu0 0
    %141 = vperm.xlu0 %140, %v136
    %v142 = vpop.permute.xlu0 %141
    %143 = vset.pattern.permute.xlu0 0
    %144 = vperm.xlu0 %143, %v137
    %v145 = vpop.permute.xlu0 %144
    %vm146 = vcmp.eq.s32.totalorder %v142, %v139
    %vm147 = vcmp.eq.s32.totalorder %v145, %v139
    %v148 = vsel %vm146, 1.0, 0.0
    %v149 = vsel %vm147, 1.0, 0.0
    %v150 = vld [vmem:[%s1] sm:$0xff]
    %v151 = vld [vmem:[%s1 + $0x8] sm:$0xff]
    %v152 = vld [vmem:[%s1 + $0x10] sm:$0xff]
    %v153 = vld [vmem:[%s1 + $0x18] sm:$0xff]
    %vm154 = vcmask 261120
    %v156 = vsel %vm154, %v148, 0
    %v159 = vsel %vm154, %v149, 0
    %161 = vmatprep.subr.mxu0 0.0
    %162 = vmatpush1.msra.mxu0 0.0
    %163 = vmatprep.subr.mxu0 0.0
    %164 = vmatpush1.msra.mxu0 0.0
    %165 = vmatprep.subr.mxu0 0.0
    %166 = vmatpush1.msra.mxu0 0.0
    %167 = vmatprep.subr.mxu0 0.0
    %168 = vmatpush1.msra.mxu0 0.0
    %169 = vmatprep.subr.mxu0 0.0
    %170 = vmatpush1.msra.mxu0 0.0
    %171 = vmatprep.subr.mxu0 0.0
    %172 = vmatpush1.msra.mxu0 0.0
    %173 = vmatprep.subr.mxu0 0.0
    %174 = vmatpush1.msra.mxu0 0.0
    %175 = vmatprep.subr.mxu0 0.0
    %176 = vmatpush1.msra.mxu0 0.0
    %177 = vmatprep.subr.mxu0 0.0
    %178 = vmatpush1.msra.mxu0 0.0
    %179 = vmatprep.subr.mxu0 0.0
    %180 = vmatpush1.msra.mxu0 0.0
    %181 = vmatprep.subr.mxu0 0.0
    %182 = vmatpush1.msra.mxu0 0.0
    %183 = vmatprep.subr.mxu0 0.0
    %184 = vmatpush1.msra.mxu0 0.0
    %185 = vmatprep.subr.mxu0 0.0
    %186 = vmatpush1.msra.mxu0 %v153
    %187 = vmatprep.subr.mxu0 0.0
    %188 = vmatpush1.msra.mxu0 %v152
    %189 = vmatprep.subr.mxu0 0.0
    %190 = vmatpush1.msra.mxu0 %v151
    %191 = vmatprep.subr.mxu0 0.0
    %192 = vmatpush1.msra.mxu0 %v150
    %193 = vmatprep.subr.mxu0 0.0
    %194 = vmatpush2.msra.mxu0 0.0
    %195 = vmatprep.subr.mxu0 0.0
    %196 = vmatpush2.msra.mxu0 0.0
    %197 = vmatprep.subr.mxu0 0.0
    %198 = vmatpush2.msra.mxu0 0.0
    %199 = vmatprep.subr.mxu0 0.0
    %200 = vmatpush2.msra.mxu0 0.0
    %201 = vmatprep.subr.mxu0 0.0
    %202 = vmatpush2.msra.mxu0 0.0
    %203 = vmatprep.subr.mxu0 0.0
    %204 = vmatpush2.msra.mxu0 0.0
    %205 = vmatprep.subr.mxu0 0.0
    %206 = vmatpush2.msra.mxu0 0.0
    %207 = vmatprep.subr.mxu0 0.0
    %208 = vmatpush2.msra.mxu0 0.0
    %209 = vmatprep.subr.mxu0 0.0
    %210 = vmatpush2.msra.mxu0 0.0
    %211 = vmatprep.subr.mxu0 0.0
    %212 = vmatpush2.msra.mxu0 0.0
    %213 = vmatprep.subr.mxu0 0.0
    %214 = vmatpush2.msra.mxu0 0.0
    %215 = vmatprep.subr.mxu0 0.0
    %216 = vmatpush2.msra.mxu0 0.0
    %217 = vmatprep.subr.mxu0 0.0
    %218 = vmatpush2.msra.mxu0 0.0
    %219 = vmatprep.subr.mxu0 0.0
    %220 = vmatpush2.msra.mxu0 0.0
    %221 = vmatprep.subr.mxu0 0.0
    %222 = vmatpush2.msra.mxu0 0.0
    %223 = vmatprep.subr.mxu0 0.0
    %224 = vmatpush2.msra.mxu0 0.0
    %225 = vmatprep.mubr.f32.mxu0 0.0
    %226 = vmatmul.mubr.f32.gmra.mxu0 %v156
    %v227 = vpop.f32.mrf.mxu0
    %v228 = vadd.f32 0.0, %v227
    %v229 = vpop.f32.mrf.mxu0
    %230 = vmatprep.mubr.f32.mxu0 0.0
    %231 = vmatmul.mubr.f32.gmra.mxu0 %v159
    %v232 = vpop.f32.mrf.mxu0
    %v233 = vadd.f32 0.0, %v232
    %v234 = vpop.f32.mrf.mxu0
    %235 = vdwg.mxu0
    %v236 = vld [vmem:[%s3] sm:$0xff]
    %v237 = vld [vmem:[%s3 + $0x8] sm:$0xff]
    %v238 = vld [vmem:[%s3 + $0x10] sm:$0xff]
    %v239 = vld [vmem:[%s3 + $0x18] sm:$0xff]
    %v240 = vld [vmem:[%s6] sm:$0xff]
    %v241 = vld [vmem:[%s6 + $0x8] sm:$0xff]
    %v242 = vld [vmem:[%s6 + $0x10] sm:$0xff]
    %v243 = vld [vmem:[%s6 + $0x18] sm:$0xff]
    %v244 = vld [vmem:[#allocation4] sm:$0xff]
    %v245 = vld [vmem:[#allocation4 + $0x8] sm:$0xff]
    %v246 = vld [vmem:[#allocation7] sm:$0x1]
    %v248 = vlaneseq
    %v249 = vshrl.u32 %v248, 7
    %v250 = vsub.s32 0, %v249
    %v251 = vrot.slane %v246, %v250
    %vm253 = vcmask 130048
    %v255 = vsel %vm253, %v228, 0
    %v258 = vsel %vm253, %v233, 0
    %260 = vmatprep.subr.mxu0 0.0
    %261 = vmatpush1.msra.mxu0 0.0
    %262 = vmatprep.subr.mxu0 0.0
    %263 = vmatpush1.msra.mxu0 0.0
    %264 = vmatprep.subr.mxu0 0.0
    %265 = vmatpush1.msra.mxu0 0.0
    %266 = vmatprep.subr.mxu0 0.0
    %267 = vmatpush1.msra.mxu0 0.0
    %268 = vmatprep.subr.mxu0 0.0
    %269 = vmatpush1.msra.mxu0 0.0
    %270 = vmatprep.subr.mxu0 0.0
    %271 = vmatpush1.msra.mxu0 0.0
    %272 = vmatprep.subr.mxu0 0.0
    %273 = vmatpush1.msra.mxu0 0.0
    %274 = vmatprep.subr.mxu0 0.0
    %275 = vmatpush1.msra.mxu0 0.0
    %276 = vmatprep.subr.mxu0 0.0
    %277 = vmatpush1.msra.mxu0 0.0
    %278 = vmatprep.subr.mxu0 0.0
    %279 = vmatpush1.msra.mxu0 0.0
    %280 = vmatprep.subr.mxu0 0.0
    %281 = vmatpush1.msra.mxu0 0.0
    %282 = vmatprep.subr.mxu0 0.0
    %283 = vmatpush1.msra.mxu0 0.0
    %284 = vmatprep.subr.mxu0 0.0
    %285 = vmatpush1.msra.mxu0 0.0
    %286 = vmatprep.subr.mxu0 0.0
    %287 = vmatpush1.msra.mxu0 0.0
    %288 = vmatprep.subr.mxu0 0.0
    %289 = vmatpush1.msra.mxu0 %v245
    %290 = vmatprep.subr.mxu0 0.0
    %291 = vmatpush1.msra.mxu0 %v244
    %292 = vmatprep.subr.mxu0 0.0
    %293 = vmatpush2.msra.mxu0 0.0
    %294 = vmatprep.subr.mxu0 0.0
    %295 = vmatpush2.msra.mxu0 0.0
    %296 = vmatprep.subr.mxu0 0.0
    %297 = vmatpush2.msra.mxu0 0.0
    %298 = vmatprep.subr.mxu0 0.0
    %299 = vmatpush2.msra.mxu0 0.0
    %300 = vmatprep.subr.mxu0 0.0
    %301 = vmatpush2.msra.mxu0 0.0
    %302 = vmatprep.subr.mxu0 0.0
    %303 = vmatpush2.msra.mxu0 0.0
    %304 = vmatprep.subr.mxu0 0.0
    %305 = vmatpush2.msra.mxu0 0.0
    %306 = vmatprep.subr.mxu0 0.0
    %307 = vmatpush2.msra.mxu0 0.0
    %308 = vmatprep.subr.mxu0 0.0
    %309 = vmatpush2.msra.mxu0 0.0
    %310 = vmatprep.subr.mxu0 0.0
    %311 = vmatpush2.msra.mxu0 0.0
    %312 = vmatprep.subr.mxu0 0.0
    %313 = vmatpush2.msra.mxu0 0.0
    %314 = vmatprep.subr.mxu0 0.0
    %315 = vmatpush2.msra.mxu0 0.0
    %316 = vmatprep.subr.mxu0 0.0
    %317 = vmatpush2.msra.mxu0 0.0
    %318 = vmatprep.subr.mxu0 0.0
    %319 = vmatpush2.msra.mxu0 0.0
    %320 = vmatprep.subr.mxu0 0.0
    %321 = vmatpush2.msra.mxu0 0.0
    %322 = vmatprep.subr.mxu0 0.0
    %323 = vmatpush2.msra.mxu0 0.0
    %324 = vmatprep.mubr.f32.mxu0 0.0
    %325 = vmatmul.mubr.f32.gmra.mxu0 %v255
    %v326 = vpop.f32.mrf.mxu0
    %v327 = vadd.f32 %v251, %v326
    %v328 = vpop.f32.mrf.mxu0
    %329 = vmatprep.mubr.f32.mxu0 0.0
    %330 = vmatmul.mubr.f32.gmra.mxu0 %v258
    %v331 = vpop.f32.mrf.mxu0
    %v332 = vadd.f32 %v251, %v331
    %v333 = vpop.f32.mrf.mxu0
    %334 = vdwg.mxu0
    %v335 = vld [vmem:[#allocation9] sm:$0xff]
    %v336 = vld [vmem:[#allocation9 + $0x8] sm:$0xff]
    %v337 = vld [vmem:[#allocation10] sm:$0x1]
    %v339 = vlaneseq
    %v340 = vshrl.u32 %v339, 7
    %v341 = vsub.s32 0, %v340
    %v342 = vrot.slane %v337, %v341
    %344 = vmatprep.subr.mxu0 0.0
    %345 = vmatpush1.msra.mxu0 0.0
    %346 = vmatprep.subr.mxu0 0.0
    %347 = vmatpush1.msra.mxu0 0.0
    %348 = vmatprep.subr.mxu0 0.0
    %349 = vmatpush1.msra.mxu0 0.0
    %350 = vmatprep.subr.mxu0 0.0
    %351 = vmatpush1.msra.mxu0 0.0
    %352 = vmatprep.subr.mxu0 0.0
    %353 = vmatpush1.msra.mxu0 0.0
    %354 = vmatprep.subr.mxu0 0.0
    %355 = vmatpush1.msra.mxu0 0.0
    %356 = vmatprep.subr.mxu0 0.0
    %357 = vmatpush1.msra.mxu0 0.0
    %358 = vmatprep.subr.mxu0 0.0
    %359 = vmatpush1.msra.mxu0 0.0
    %360 = vmatprep.subr.mxu0 0.0
    %361 = vmatpush1.msra.mxu0 0.0
    %362 = vmatprep.subr.mxu0 0.0
    %363 = vmatpush1.msra.mxu0 0.0
    %364 = vmatprep.subr.mxu0 0.0
    %365 = vmatpush1.msra.mxu0 0.0
    %366 = vmatprep.subr.mxu0 0.0
    %367 = vmatpush1.msra.mxu0 0.0
    %368 = vmatprep.subr.mxu0 0.0
    %369 = vmatpush1.msra.mxu0 0.0
    %370 = vmatprep.subr.mxu0 0.0
    %371 = vmatpush1.msra.mxu0 0.0
    %372 = vmatprep.subr.mxu0 0.0
    %373 = vmatpush1.msra.mxu0 %v336
    %374 = vmatprep.subr.mxu0 0.0
    %375 = vmatpush1.msra.mxu0 %v335
    %376 = vmatprep.subr.mxu0 0.0
    %377 = vmatpush2.msra.mxu0 0.0
    %378 = vmatprep.subr.mxu0 0.0
    %379 = vmatpush2.msra.mxu0 0.0
    %380 = vmatprep.subr.mxu0 0.0
    %381 = vmatpush2.msra.mxu0 0.0
    %382 = vmatprep.subr.mxu0 0.0
    %383 = vmatpush2.msra.mxu0 0.0
    %384 = vmatprep.subr.mxu0 0.0
    %385 = vmatpush2.msra.mxu0 0.0
    %386 = vmatprep.subr.mxu0 0.0
    %387 = vmatpush2.msra.mxu0 0.0
    %388 = vmatprep.subr.mxu0 0.0
    %389 = vmatpush2.msra.mxu0 0.0
    %390 = vmatprep.subr.mxu0 0.0
    %391 = vmatpush2.msra.mxu0 0.0
    %392 = vmatprep.subr.mxu0 0.0
    %393 = vmatpush2.msra.mxu0 0.0
    %394 = vmatprep.subr.mxu0 0.0
    %395 = vmatpush2.msra.mxu0 0.0
    %396 = vmatprep.subr.mxu0 0.0
    %397 = vmatpush2.msra.mxu0 0.0
    %398 = vmatprep.subr.mxu0 0.0
    %399 = vmatpush2.msra.mxu0 0.0
    %400 = vmatprep.subr.mxu0 0.0
    %401 = vmatpush2.msra.mxu0 0.0
    %402 = vmatprep.subr.mxu0 0.0
    %403 = vmatpush2.msra.mxu0 0.0
    %404 = vmatprep.subr.mxu0 0.0
    %405 = vmatpush2.msra.mxu0 0.0
    %406 = vmatprep.subr.mxu0 0.0
    %407 = vmatpush2.msra.mxu0 0.0
    %408 = vmatprep.mubr.f32.mxu0 0.0
    %409 = vmatmul.mubr.f32.gmra.mxu0 %v255
    %v410 = vpop.f32.mrf.mxu0
    %v411 = vadd.f32 %v342, %v410
    %v412 = vpop.f32.mrf.mxu0
    %413 = vmatprep.mubr.f32.mxu0 0.0
    %414 = vmatmul.mubr.f32.gmra.mxu0 %v258
    %v415 = vpop.f32.mrf.mxu0
    %v416 = vadd.f32 %v342, %v415
    %v417 = vpop.f32.mrf.mxu0
    %418 = vdwg.mxu0
    %v420 = vsel %vm154, 0.0, 0
    %422 = vmatprep.subr.mxu0 0.0
    %423 = vmatpush1.msra.mxu0 0.0
    %424 = vmatprep.subr.mxu0 0.0
    %425 = vmatpush1.msra.mxu0 0.0
    %426 = vmatprep.subr.mxu0 0.0
    %427 = vmatpush1.msra.mxu0 0.0
    %428 = vmatprep.subr.mxu0 0.0
    %429 = vmatpush1.msra.mxu0 0.0
    %430 = vmatprep.subr.mxu0 0.0
    %431 = vmatpush1.msra.mxu0 0.0
    %432 = vmatprep.subr.mxu0 0.0
    %433 = vmatpush1.msra.mxu0 0.0
    %434 = vmatprep.subr.mxu0 0.0
    %435 = vmatpush1.msra.mxu0 0.0
    %436 = vmatprep.subr.mxu0 0.0
    %437 = vmatpush1.msra.mxu0 0.0
    %438 = vmatprep.subr.mxu0 0.0
    %439 = vmatpush1.msra.mxu0 0.0
    %440 = vmatprep.subr.mxu0 0.0
    %441 = vmatpush1.msra.mxu0 0.0
    %442 = vmatprep.subr.mxu0 0.0
    %443 = vmatpush1.msra.mxu0 0.0
    %444 = vmatprep.subr.mxu0 0.0
    %445 = vmatpush1.msra.mxu0 0.0
    %446 = vmatprep.subr.mxu0 0.0
    %447 = vmatpush1.msra.mxu0 %v239
    %448 = vmatprep.subr.mxu0 0.0
    %449 = vmatpush1.msra.mxu0 %v238
    %450 = vmatprep.subr.mxu0 0.0
    %451 = vmatpush1.msra.mxu0 %v237
    %452 = vmatprep.subr.mxu0 0.0
    %453 = vmatpush1.msra.mxu0 %v236
    %454 = vmatprep.subr.mxu0 0.0
    %455 = vmatpush2.msra.mxu0 0.0
    %456 = vmatprep.subr.mxu0 0.0
    %457 = vmatpush2.msra.mxu0 0.0
    %458 = vmatprep.subr.mxu0 0.0
    %459 = vmatpush2.msra.mxu0 0.0
    %460 = vmatprep.subr.mxu0 0.0
    %461 = vmatpush2.msra.mxu0 0.0
    %462 = vmatprep.subr.mxu0 0.0
    %463 = vmatpush2.msra.mxu0 0.0
    %464 = vmatprep.subr.mxu0 0.0
    %465 = vmatpush2.msra.mxu0 0.0
    %466 = vmatprep.subr.mxu0 0.0
    %467 = vmatpush2.msra.mxu0 0.0
    %468 = vmatprep.subr.mxu0 0.0
    %469 = vmatpush2.msra.mxu0 0.0
    %470 = vmatprep.subr.mxu0 0.0
    %471 = vmatpush2.msra.mxu0 0.0
    %472 = vmatprep.subr.mxu0 0.0
    %473 = vmatpush2.msra.mxu0 0.0
    %474 = vmatprep.subr.mxu0 0.0
    %475 = vmatpush2.msra.mxu0 0.0
    %476 = vmatprep.subr.mxu0 0.0
    %477 = vmatpush2.msra.mxu0 0.0
    %478 = vmatprep.subr.mxu0 0.0
    %479 = vmatpush2.msra.mxu0 0.0
    %480 = vmatprep.subr.mxu0 0.0
    %481 = vmatpush2.msra.mxu0 0.0
    %482 = vmatprep.subr.mxu0 0.0
    %483 = vmatpush2.msra.mxu0 0.0
    %484 = vmatprep.subr.mxu0 0.0
    %485 = vmatpush2.msra.mxu0 0.0
    %486 = vmatprep.mubr.f32.mxu0 0.0
    %487 = vmatmul.mubr.f32.gmra.mxu0 %v420
    %v488 = vpop.f32.mrf.mxu0
    %v489 = vadd.f32 0.0, %v488
    %v490 = vpop.f32.mrf.mxu0
    %491 = vdwg.mxu0
    %v492 = vadd.f32 %v327, %v489
    %v493 = vxor.u32 %v492, 2147483648
    %v494 = vmul.f32 %v493, 1.442695
    %v495 = vpow.pop %v494
    %v496 = vadd.f32 %v495, 1.0
    %v497 = vrcp.pop %v496
    %v498 = vmul.f32 1.0, %v497
    %v499 = vtanh.pop %v492
    %v500 = vmul.f32 %v498, 0.0
    %502 = vrot.lane.b32.xlu0 %v499, 64
    %v503 = vpop.permute.xlu0 %502
    %v505 = vmul.f32 %v498, %v503
    %507 = vrot.lane.b32.xlu0 %v505, 32
    %v508 = vpop.permute.xlu0 %507
    %v510 = vadd.f32 %v500, %v508
    %v511 = vtanh.pop %v510
    %513 = vrot.lane.b32.xlu0 %v511, 64
    %v514 = vpop.permute.xlu0 %513
    %v516 = vmul.f32 %v498, %v514
    %517 = vmatprep.subr.mxu0 0.0
    %518 = vmatpush1.msra.mxu0 0.0
    %519 = vmatprep.subr.mxu0 0.0
    %520 = vmatpush1.msra.mxu0 0.0
    %521 = vmatprep.subr.mxu0 0.0
    %522 = vmatpush1.msra.mxu0 0.0
    %523 = vmatprep.subr.mxu0 0.0
    %524 = vmatpush1.msra.mxu0 0.0
    %525 = vmatprep.subr.mxu0 0.0
    %526 = vmatpush1.msra.mxu0 0.0
    %527 = vmatprep.subr.mxu0 0.0
    %528 = vmatpush1.msra.mxu0 0.0
    %529 = vmatprep.subr.mxu0 0.0
    %530 = vmatpush1.msra.mxu0 0.0
    %531 = vmatprep.subr.mxu0 0.0
    %532 = vmatpush1.msra.mxu0 0.0
    %533 = vmatprep.subr.mxu0 0.0
    %534 = vmatpush1.msra.mxu0 0.0
    %535 = vmatprep.subr.mxu0 0.0
    %536 = vmatpush1.msra.mxu0 0.0
    %537 = vmatprep.subr.mxu0 0.0
    %538 = vmatpush1.msra.mxu0 0.0
    %539 = vmatprep.subr.mxu0 0.0
    %540 = vmatpush1.msra.mxu0 0.0
    %541 = vmatprep.subr.mxu0 0.0
    %542 = vmatpush1.msra.mxu0 %v243
    %543 = vmatprep.subr.mxu0 0.0
    %544 = vmatpush1.msra.mxu0 %v242
    %545 = vmatprep.subr.mxu0 0.0
    %546 = vmatpush1.msra.mxu0 %v241
    %547 = vmatprep.subr.mxu0 0.0
    %548 = vmatpush1.msra.mxu0 %v240
    %549 = vmatprep.subr.mxu0 0.0
    %550 = vmatpush2.msra.mxu0 0.0
    %551 = vmatprep.subr.mxu0 0.0
    %552 = vmatpush2.msra.mxu0 0.0
    %553 = vmatprep.subr.mxu0 0.0
    %554 = vmatpush2.msra.mxu0 0.0
    %555 = vmatprep.subr.mxu0 0.0
    %556 = vmatpush2.msra.mxu0 0.0
    %557 = vmatprep.subr.mxu0 0.0
    %558 = vmatpush2.msra.mxu0 0.0
    %559 = vmatprep.subr.mxu0 0.0
    %560 = vmatpush2.msra.mxu0 0.0
    %561 = vmatprep.subr.mxu0 0.0
    %562 = vmatpush2.msra.mxu0 0.0
    %563 = vmatprep.subr.mxu0 0.0
    %564 = vmatpush2.msra.mxu0 0.0
    %565 = vmatprep.subr.mxu0 0.0
    %566 = vmatpush2.msra.mxu0 0.0
    %567 = vmatprep.subr.mxu0 0.0
    %568 = vmatpush2.msra.mxu0 0.0
    %569 = vmatprep.subr.mxu0 0.0
    %570 = vmatpush2.msra.mxu0 0.0
    %571 = vmatprep.subr.mxu0 0.0
    %572 = vmatpush2.msra.mxu0 0.0
    %573 = vmatprep.subr.mxu0 0.0
    %574 = vmatpush2.msra.mxu0 0.0
    %575 = vmatprep.subr.mxu0 0.0
    %576 = vmatpush2.msra.mxu0 0.0
    %577 = vmatprep.subr.mxu0 0.0
    %578 = vmatpush2.msra.mxu0 0.0
    %579 = vmatprep.subr.mxu0 0.0
    %580 = vmatpush2.msra.mxu0 0.0
    %581 = vmatprep.mubr.f32.mxu0 0.0
    %582 = vmatmul.mubr.f32.gmra.mxu0 %v420
    %v583 = vpop.f32.mrf.mxu0
    %v584 = vadd.f32 0.0, %v583
    %v585 = vpop.f32.mrf.mxu0
    %586 = vdwg.mxu0
    %v588 = vrot.slane %v584, 2
    %v590 = vadd.f32 %v416, %v588
    %v591 = vxor.u32 %v590, 2147483648
    %v592 = vmul.f32 %v591, 1.442695
    %v593 = vpow.pop %v592
    %v594 = vadd.f32 %v593, 1.0
    %v595 = vrcp.pop %v594
    %v596 = vmul.f32 1.0, %v595
    %v597 = vtanh.pop %v590
    %v598 = vmul.f32 %v596, 0.0
    %600 = vrot.lane.b32.xlu0 %v597, 64
    %v601 = vpop.permute.xlu0 %600
    %v603 = vmul.f32 %v596, %v601
    %605 = vrot.lane.b32.xlu0 %v603, 32
    %v606 = vpop.permute.xlu0 %605
    %v608 = vadd.f32 %v598, %v606
    %v609 = vtanh.pop %v608
    %611 = vrot.lane.b32.xlu0 %v609, 64
    %v612 = vpop.permute.xlu0 %611
    %v614 = vmul.f32 %v596, %v612
    %616 = vrot.lane.b32.xlu0 %v516, 32
    %v617 = vpop.permute.xlu0 %616
    %vm619 = vcmask 254976
    %620 = vst.msk [vmem:[#allocation2] sm:$0x3] %vm619, %v617
    %622 = vrot.lane.b32.xlu0 %v614, 32
    %v623 = vpop.permute.xlu0 %622
    %vm625 = vcmask 261126
    %626 = vst.msk [vmem:[#allocation3 + $0x8] sm:$0xc0] %vm625, %v623
    %v627 = vsel %vm154, %v617, 0
    %629 = vmatprep.subr.mxu0 0.0
    %630 = vmatpush1.msra.mxu0 0.0
    %631 = vmatprep.subr.mxu0 0.0
    %632 = vmatpush1.msra.mxu0 0.0
    %633 = vmatprep.subr.mxu0 0.0
    %634 = vmatpush1.msra.mxu0 0.0
    %635 = vmatprep.subr.mxu0 0.0
    %636 = vmatpush1.msra.mxu0 0.0
    %637 = vmatprep.subr.mxu0 0.0
    %638 = vmatpush1.msra.mxu0 0.0
    %639 = vmatprep.subr.mxu0 0.0
    %640 = vmatpush1.msra.mxu0 0.0
    %641 = vmatprep.subr.mxu0 0.0
    %642 = vmatpush1.msra.mxu0 0.0
    %643 = vmatprep.subr.mxu0 0.0
    %644 = vmatpush1.msra.mxu0 0.0
    %645 = vmatprep.subr.mxu0 0.0
    %646 = vmatpush1.msra.mxu0 0.0
    %647 = vmatprep.subr.mxu0 0.0
    %648 = vmatpush1.msra.mxu0 0.0
    %649 = vmatprep.subr.mxu0 0.0
    %650 = vmatpush1.msra.mxu0 0.0
    %651 = vmatprep.subr.mxu0 0.0
    %652 = vmatpush1.msra.mxu0 0.0
    %653 = vmatprep.subr.mxu0 0.0
    %654 = vmatpush1.msra.mxu0 %v239
    %655 = vmatprep.subr.mxu0 0.0
    %656 = vmatpush1.msra.mxu0 %v238
    %657 = vmatprep.subr.mxu0 0.0
    %658 = vmatpush1.msra.mxu0 %v237
    %659 = vmatprep.subr.mxu0 0.0
    %660 = vmatpush1.msra.mxu0 %v236
    %661 = vmatprep.subr.mxu0 0.0
    %662 = vmatpush2.msra.mxu0 0.0
    %663 = vmatprep.subr.mxu0 0.0
    %664 = vmatpush2.msra.mxu0 0.0
    %665 = vmatprep.subr.mxu0 0.0
    %666 = vmatpush2.msra.mxu0 0.0
    %667 = vmatprep.subr.mxu0 0.0
    %668 = vmatpush2.msra.mxu0 0.0
    %669 = vmatprep.subr.mxu0 0.0
    %670 = vmatpush2.msra.mxu0 0.0
    %671 = vmatprep.subr.mxu0 0.0
    %672 = vmatpush2.msra.mxu0 0.0
    %673 = vmatprep.subr.mxu0 0.0
    %674 = vmatpush2.msra.mxu0 0.0
    %675 = vmatprep.subr.mxu0 0.0
    %676 = vmatpush2.msra.mxu0 0.0
    %677 = vmatprep.subr.mxu0 0.0
    %678 = vmatpush2.msra.mxu0 0.0
    %679 = vmatprep.subr.mxu0 0.0
    %680 = vmatpush2.msra.mxu0 0.0
    %681 = vmatprep.subr.mxu0 0.0
    %682 = vmatpush2.msra.mxu0 0.0
    %683 = vmatprep.subr.mxu0 0.0
    %684 = vmatpush2.msra.mxu0 0.0
    %685 = vmatprep.subr.mxu0 0.0
    %686 = vmatpush2.msra.mxu0 0.0
    %687 = vmatprep.subr.mxu0 0.0
    %688 = vmatpush2.msra.mxu0 0.0
    %689 = vmatprep.subr.mxu0 0.0
    %690 = vmatpush2.msra.mxu0 0.0
    %691 = vmatprep.subr.mxu0 0.0
    %692 = vmatpush2.msra.mxu0 0.0
    %693 = vmatprep.mubr.f32.mxu0 0.0
    %694 = vmatmul.mubr.f32.gmra.mxu0 %v627
    %v695 = vpop.f32.mrf.mxu0
    %v696 = vadd.f32 0.0, %v695
    %v697 = vpop.f32.mrf.mxu0
    %698 = vdwg.mxu0
    %v700 = vrot.slane %v696, 6
    %v702 = vadd.f32 %v327, %v700
    %v703 = vxor.u32 %v702, 2147483648
    %v704 = vmul.f32 %v703, 1.442695
    %v705 = vpow.pop %v704
    %v706 = vadd.f32 %v705, 1.0
    %v707 = vrcp.pop %v706
    %v708 = vmul.f32 1.0, %v707
    %v709 = vtanh.pop %v702
    %v711 = vrot.slane %v510, 6
    %v713 = vmul.f32 %v708, %v711
    %715 = vrot.lane.b32.xlu0 %v709, 64
    %v716 = vpop.permute.xlu0 %715
    %v718 = vmul.f32 %v708, %v716
    %720 = vrot.lane.b32.xlu0 %v718, 32
    %v721 = vpop.permute.xlu0 %720
    %v723 = vadd.f32 %v713, %v721
    %v724 = vtanh.pop %v723
    %726 = vrot.lane.b32.xlu0 %v724, 64
    %v727 = vpop.permute.xlu0 %726
    %v729 = vmul.f32 %v708, %v727
    %v730 = vrot.slane %v614, 6
    %731 = vrot.lane.b32.xlu0 %v730, 32
    %v732 = vpop.permute.xlu0 %731
    %v733 = vsel %vm154, %v732, 0
    %735 = vmatprep.subr.mxu0 0.0
    %736 = vmatpush1.msra.mxu0 0.0
    %737 = vmatprep.subr.mxu0 0.0
    %738 = vmatpush1.msra.mxu0 0.0
    %739 = vmatprep.subr.mxu0 0.0
    %740 = vmatpush1.msra.mxu0 0.0
    %741 = vmatprep.subr.mxu0 0.0
    %742 = vmatpush1.msra.mxu0 0.0
    %743 = vmatprep.subr.mxu0 0.0
    %744 = vmatpush1.msra.mxu0 0.0
    %745 = vmatprep.subr.mxu0 0.0
    %746 = vmatpush1.msra.mxu0 0.0
    %747 = vmatprep.subr.mxu0 0.0
    %748 = vmatpush1.msra.mxu0 0.0
    %749 = vmatprep.subr.mxu0 0.0
    %750 = vmatpush1.msra.mxu0 0.0
    %751 = vmatprep.subr.mxu0 0.0
    %752 = vmatpush1.msra.mxu0 0.0
    %753 = vmatprep.subr.mxu0 0.0
    %754 = vmatpush1.msra.mxu0 0.0
    %755 = vmatprep.subr.mxu0 0.0
    %756 = vmatpush1.msra.mxu0 0.0
    %757 = vmatprep.subr.mxu0 0.0
    %758 = vmatpush1.msra.mxu0 0.0
    %759 = vmatprep.subr.mxu0 0.0
    %760 = vmatpush1.msra.mxu0 %v243
    %761 = vmatprep.subr.mxu0 0.0
    %762 = vmatpush1.msra.mxu0 %v242
    %763 = vmatprep.subr.mxu0 0.0
    %764 = vmatpush1.msra.mxu0 %v241
    %765 = vmatprep.subr.mxu0 0.0
    %766 = vmatpush1.msra.mxu0 %v240
    %767 = vmatprep.subr.mxu0 0.0
    %768 = vmatpush2.msra.mxu0 0.0
    %769 = vmatprep.subr.mxu0 0.0
    %770 = vmatpush2.msra.mxu0 0.0
    %771 = vmatprep.subr.mxu0 0.0
    %772 = vmatpush2.msra.mxu0 0.0
    %773 = vmatprep.subr.mxu0 0.0
    %774 = vmatpush2.msra.mxu0 0.0
    %775 = vmatprep.subr.mxu0 0.0
    %776 = vmatpush2.msra.mxu0 0.0
    %777 = vmatprep.subr.mxu0 0.0
    %778 = vmatpush2.msra.mxu0 0.0
    %779 = vmatprep.subr.mxu0 0.0
    %780 = vmatpush2.msra.mxu0 0.0
    %781 = vmatprep.subr.mxu0 0.0
    %782 = vmatpush2.msra.mxu0 0.0
    %783 = vmatprep.subr.mxu0 0.0
    %784 = vmatpush2.msra.mxu0 0.0
    %785 = vmatprep.subr.mxu0 0.0
    %786 = vmatpush2.msra.mxu0 0.0
    %787 = vmatprep.subr.mxu0 0.0
    %788 = vmatpush2.msra.mxu0 0.0
    %789 = vmatprep.subr.mxu0 0.0
    %790 = vmatpush2.msra.mxu0 0.0
    %791 = vmatprep.subr.mxu0 0.0
    %792 = vmatpush2.msra.mxu0 0.0
    %793 = vmatprep.subr.mxu0 0.0
    %794 = vmatpush2.msra.mxu0 0.0
    %795 = vmatprep.subr.mxu0 0.0
    %796 = vmatpush2.msra.mxu0 0.0
    %797 = vmatprep.subr.mxu0 0.0
    %798 = vmatpush2.msra.mxu0 0.0
    %799 = vmatprep.mubr.f32.mxu0 0.0
    %800 = vmatmul.mubr.f32.gmra.mxu0 %v733
    %v801 = vpop.f32.mrf.mxu0
    %v802 = vadd.f32 0.0, %v801
    %v803 = vpop.f32.mrf.mxu0
    %804 = vdwg.mxu0
    %v806 = vrot.slane %v802, 4
    %v808 = vadd.f32 %v416, %v806
    %v809 = vxor.u32 %v808, 2147483648
    %v810 = vmul.f32 %v809, 1.442695
    %v811 = vpow.pop %v810
    %v812 = vadd.f32 %v811, 1.0
    %v813 = vrcp.pop %v812
    %v814 = vmul.f32 1.0, %v813
    %v815 = vtanh.pop %v808
    %v817 = vrot.slane %v608, 2
    %v819 = vmul.f32 %v814, %v817
    %821 = vrot.lane.b32.xlu0 %v815, 64
    %v822 = vpop.permute.xlu0 %821
    %v824 = vmul.f32 %v814, %v822
    %826 = vrot.lane.b32.xlu0 %v824, 32
    %v827 = vpop.permute.xlu0 %826
    %v829 = vadd.f32 %v819, %v827
    %v830 = vtanh.pop %v829
    %832 = vrot.lane.b32.xlu0 %v830, 64
    %v833 = vpop.permute.xlu0 %832
    %v835 = vmul.f32 %v814, %v833
    %837 = vrot.lane.b32.xlu0 %v729, 32
    %v838 = vpop.permute.xlu0 %837
    %vm840 = vcmask 257026
    %841 = vst.msk [vmem:[#allocation2] sm:$0xc] %vm840, %v838
    %843 = vrot.lane.b32.xlu0 %v835, 32
    %v844 = vpop.permute.xlu0 %843
    %vm846 = vcmask 259076
    %847 = vst.msk [vmem:[#allocation3 + $0x8] sm:$0x30] %vm846, %v844
    %v848 = vrot.slane %v729, 2
    %849 = vrot.lane.b32.xlu0 %v848, 32
    %v850 = vpop.permute.xlu0 %849
    %v851 = vsel %vm154, %v850, 0
    %853 = vmatprep.subr.mxu0 0.0
    %854 = vmatpush1.msra.mxu0 0.0
    %855 = vmatprep.subr.mxu0 0.0
    %856 = vmatpush1.msra.mxu0 0.0
    %857 = vmatprep.subr.mxu0 0.0
    %858 = vmatpush1.msra.mxu0 0.0
    %859 = vmatprep.subr.mxu0 0.0
    %860 = vmatpush1.msra.mxu0 0.0
    %861 = vmatprep.subr.mxu0 0.0
    %862 = vmatpush1.msra.mxu0 0.0
    %863 = vmatprep.subr.mxu0 0.0
    %864 = vmatpush1.msra.mxu0 0.0
    %865 = vmatprep.subr.mxu0 0.0
    %866 = vmatpush1.msra.mxu0 0.0
    %867 = vmatprep.subr.mxu0 0.0
    %868 = vmatpush1.msra.mxu0 0.0
    %869 = vmatprep.subr.mxu0 0.0
    %870 = vmatpush1.msra.mxu0 0.0
    %871 = vmatprep.subr.mxu0 0.0
    %872 = vmatpush1.msra.mxu0 0.0
    %873 = vmatprep.subr.mxu0 0.0
    %874 = vmatpush1.msra.mxu0 0.0
    %875 = vmatprep.subr.mxu0 0.0
    %876 = vmatpush1.msra.mxu0 0.0
    %877 = vmatprep.subr.mxu0 0.0
    %878 = vmatpush1.msra.mxu0 %v239
    %879 = vmatprep.subr.mxu0 0.0
    %880 = vmatpush1.msra.mxu0 %v238
    %881 = vmatprep.subr.mxu0 0.0
    %882 = vmatpush1.msra.mxu0 %v237
    %883 = vmatprep.subr.mxu0 0.0
    %884 = vmatpush1.msra.mxu0 %v236
    %885 = vmatprep.subr.mxu0 0.0
    %886 = vmatpush2.msra.mxu0 0.0
    %887 = vmatprep.subr.mxu0 0.0
    %888 = vmatpush2.msra.mxu0 0.0
    %889 = vmatprep.subr.mxu0 0.0
    %890 = vmatpush2.msra.mxu0 0.0
    %891 = vmatprep.subr.mxu0 0.0
    %892 = vmatpush2.msra.mxu0 0.0
    %893 = vmatprep.subr.mxu0 0.0
    %894 = vmatpush2.msra.mxu0 0.0
    %895 = vmatprep.subr.mxu0 0.0
    %896 = vmatpush2.msra.mxu0 0.0
    %897 = vmatprep.subr.mxu0 0.0
    %898 = vmatpush2.msra.mxu0 0.0
    %899 = vmatprep.subr.mxu0 0.0
    %900 = vmatpush2.msra.mxu0 0.0
    %901 = vmatprep.subr.mxu0 0.0
    %902 = vmatpush2.msra.mxu0 0.0
    %903 = vmatprep.subr.mxu0 0.0
    %904 = vmatpush2.msra.mxu0 0.0
    %905 = vmatprep.subr.mxu0 0.0
    %906 = vmatpush2.msra.mxu0 0.0
    %907 = vmatprep.subr.mxu0 0.0
    %908 = vmatpush2.msra.mxu0 0.0
    %909 = vmatprep.subr.mxu0 0.0
    %910 = vmatpush2.msra.mxu0 0.0
    %911 = vmatprep.subr.mxu0 0.0
    %912 = vmatpush2.msra.mxu0 0.0
    %913 = vmatprep.subr.mxu0 0.0
    %914 = vmatpush2.msra.mxu0 0.0
    %915 = vmatprep.subr.mxu0 0.0
    %916 = vmatpush2.msra.mxu0 0.0
    %917 = vmatprep.mubr.f32.mxu0 0.0
    %918 = vmatmul.mubr.f32.gmra.mxu0 %v851
    %v919 = vpop.f32.mrf.mxu0
    %v920 = vadd.f32 0.0, %v919
    %v921 = vpop.f32.mrf.mxu0
    %922 = vdwg.mxu0
    %v924 = vrot.slane %v920, 4
    %v926 = vadd.f32 %v327, %v924
    %v927 = vxor.u32 %v926, 2147483648
    %v928 = vmul.f32 %v927, 1.442695
    %v929 = vpow.pop %v928
    %v930 = vadd.f32 %v929, 1.0
    %v931 = vrcp.pop %v930
    %v932 = vmul.f32 1.0, %v931
    %v933 = vtanh.pop %v926
    %v935 = vrot.slane %v723, 6
    %v937 = vmul.f32 %v932, %v935
    %939 = vrot.lane.b32.xlu0 %v933, 64
    %v940 = vpop.permute.xlu0 %939
    %v942 = vmul.f32 %v932, %v940
    %944 = vrot.lane.b32.xlu0 %v942, 32
    %v945 = vpop.permute.xlu0 %944
    %v947 = vadd.f32 %v937, %v945
    %v948 = vtanh.pop %v947
    %950 = vrot.lane.b32.xlu0 %v948, 64
    %v951 = vpop.permute.xlu0 %950
    %v953 = vmul.f32 %v932, %v951
    %v954 = vrot.slane %v835, 4
    %955 = vrot.lane.b32.xlu0 %v954, 32
    %v956 = vpop.permute.xlu0 %955
    %v957 = vsel %vm154, %v956, 0
    %959 = vmatprep.subr.mxu0 0.0
    %960 = vmatpush1.msra.mxu0 0.0
    %961 = vmatprep.subr.mxu0 0.0
    %962 = vmatpush1.msra.mxu0 0.0
    %963 = vmatprep.subr.mxu0 0.0
    %964 = vmatpush1.msra.mxu0 0.0
    %965 = vmatprep.subr.mxu0 0.0
    %966 = vmatpush1.msra.mxu0 0.0
    %967 = vmatprep.subr.mxu0 0.0
    %968 = vmatpush1.msra.mxu0 0.0
    %969 = vmatprep.subr.mxu0 0.0
    %970 = vmatpush1.msra.mxu0 0.0
    %971 = vmatprep.subr.mxu0 0.0
    %972 = vmatpush1.msra.mxu0 0.0
    %973 = vmatprep.subr.mxu0 0.0
    %974 = vmatpush1.msra.mxu0 0.0
    %975 = vmatprep.subr.mxu0 0.0
    %976 = vmatpush1.msra.mxu0 0.0
    %977 = vmatprep.subr.mxu0 0.0
    %978 = vmatpush1.msra.mxu0 0.0
    %979 = vmatprep.subr.mxu0 0.0
    %980 = vmatpush1.msra.mxu0 0.0
    %981 = vmatprep.subr.mxu0 0.0
    %982 = vmatpush1.msra.mxu0 0.0
    %983 = vmatprep.subr.mxu0 0.0
    %984 = vmatpush1.msra.mxu0 %v243
    %985 = vmatprep.subr.mxu0 0.0
    %986 = vmatpush1.msra.mxu0 %v242
    %987 = vmatprep.subr.mxu0 0.0
    %988 = vmatpush1.msra.mxu0 %v241
    %989 = vmatprep.subr.mxu0 0.0
    %990 = vmatpush1.msra.mxu0 %v240
    %991 = vmatprep.subr.mxu0 0.0
    %992 = vmatpush2.msra.mxu0 0.0
    %993 = vmatprep.subr.mxu0 0.0
    %994 = vmatpush2.msra.mxu0 0.0
    %995 = vmatprep.subr.mxu0 0.0
    %996 = vmatpush2.msra.mxu0 0.0
    %997 = vmatprep.subr.mxu0 0.0
    %998 = vmatpush2.msra.mxu0 0.0
    %999 = vmatprep.subr.mxu0 0.0
    %1000 = vmatpush2.msra.mxu0 0.0
    %1001 = vmatprep.subr.mxu0 0.0
    %1002 = vmatpush2.msra.mxu0 0.0
    %1003 = vmatprep.subr.mxu0 0.0
    %1004 = vmatpush2.msra.mxu0 0.0
    %1005 = vmatprep.subr.mxu0 0.0
    %1006 = vmatpush2.msra.mxu0 0.0
    %1007 = vmatprep.subr.mxu0 0.0
    %1008 = vmatpush2.msra.mxu0 0.0
    %1009 = vmatprep.subr.mxu0 0.0
    %1010 = vmatpush2.msra.mxu0 0.0
    %1011 = vmatprep.subr.mxu0 0.0
    %1012 = vmatpush2.msra.mxu0 0.0
    %1013 = vmatprep.subr.mxu0 0.0
    %1014 = vmatpush2.msra.mxu0 0.0
    %1015 = vmatprep.subr.mxu0 0.0
    %1016 = vmatpush2.msra.mxu0 0.0
    %1017 = vmatprep.subr.mxu0 0.0
    %1018 = vmatpush2.msra.mxu0 0.0
    %1019 = vmatprep.subr.mxu0 0.0
    %1020 = vmatpush2.msra.mxu0 0.0
    %1021 = vmatprep.subr.mxu0 0.0
    %1022 = vmatpush2.msra.mxu0 0.0
    %1023 = vmatprep.mubr.f32.mxu0 0.0
    %1024 = vmatmul.mubr.f32.gmra.mxu0 %v957
    %v1025 = vpop.f32.mrf.mxu0
    %v1026 = vadd.f32 0.0, %v1025
    %v1027 = vpop.f32.mrf.mxu0
    %1028 = vdwg.mxu0
    %v1030 = vrot.slane %v1026, 6
    %v1032 = vadd.f32 %v416, %v1030
    %v1033 = vxor.u32 %v1032, 2147483648
    %v1034 = vmul.f32 %v1033, 1.442695
    %v1035 = vpow.pop %v1034
    %v1036 = vadd.f32 %v1035, 1.0
    %v1037 = vrcp.pop %v1036
    %v1038 = vmul.f32 1.0, %v1037
    %v1039 = vtanh.pop %v1032
    %v1041 = vrot.slane %v829, 2
    %v1043 = vmul.f32 %v1038, %v1041
    %1045 = vrot.lane.b32.xlu0 %v1039, 64
    %v1046 = vpop.permute.xlu0 %1045
    %v1048 = vmul.f32 %v1038, %v1046
    %1050 = vrot.lane.b32.xlu0 %v1048, 32
    %v1051 = vpop.permute.xlu0 %1050
    %v1053 = vadd.f32 %v1043, %v1051
    %v1054 = vtanh.pop %v1053
    %1056 = vrot.lane.b32.xlu0 %v1054, 64
    %v1057 = vpop.permute.xlu0 %1056
    %v1059 = vmul.f32 %v1038, %v1057
    %1061 = vrot.lane.b32.xlu0 %v953, 32
    %v1062 = vpop.permute.xlu0 %1061
    %1064 = vst.msk [vmem:[#allocation2] sm:$0x30] %vm846, %v1062
    %1066 = vrot.lane.b32.xlu0 %v1059, 32
    %v1067 = vpop.permute.xlu0 %1066
    %1069 = vst.msk [vmem:[#allocation3 + $0x8] sm:$0xc] %vm840, %v1067
    %v1070 = vrot.slane %v953, 4
    %1071 = vrot.lane.b32.xlu0 %v1070, 32
    %v1072 = vpop.permute.xlu0 %1071
    %v1073 = vsel %vm154, %v1072, 0
    %1075 = vmatprep.subr.mxu0 0.0
    %1076 = vmatpush1.msra.mxu0 0.0
    %1077 = vmatprep.subr.mxu0 0.0
    %1078 = vmatpush1.msra.mxu0 0.0
    %1079 = vmatprep.subr.mxu0 0.0
    %1080 = vmatpush1.msra.mxu0 0.0
    %1081 = vmatprep.subr.mxu0 0.0
    %1082 = vmatpush1.msra.mxu0 0.0
    %1083 = vmatprep.subr.mxu0 0.0
    %1084 = vmatpush1.msra.mxu0 0.0
    %1085 = vmatprep.subr.mxu0 0.0
    %1086 = vmatpush1.msra.mxu0 0.0
    %1087 = vmatprep.subr.mxu0 0.0
    %1088 = vmatpush1.msra.mxu0 0.0
    %1089 = vmatprep.subr.mxu0 0.0
    %1090 = vmatpush1.msra.mxu0 0.0
    %1091 = vmatprep.subr.mxu0 0.0
    %1092 = vmatpush1.msra.mxu0 0.0
    %1093 = vmatprep.subr.mxu0 0.0
    %1094 = vmatpush1.msra.mxu0 0.0
    %1095 = vmatprep.subr.mxu0 0.0
    %1096 = vmatpush1.msra.mxu0 0.0
    %1097 = vmatprep.subr.mxu0 0.0
    %1098 = vmatpush1.msra.mxu0 0.0
    %1099 = vmatprep.subr.mxu0 0.0
    %1100 = vmatpush1.msra.mxu0 %v239
    %1101 = vmatprep.subr.mxu0 0.0
    %1102 = vmatpush1.msra.mxu0 %v238
    %1103 = vmatprep.subr.mxu0 0.0
    %1104 = vmatpush1.msra.mxu0 %v237
    %1105 = vmatprep.subr.mxu0 0.0
    %1106 = vmatpush1.msra.mxu0 %v236
    %1107 = vmatprep.subr.mxu0 0.0
    %1108 = vmatpush2.msra.mxu0 0.0
    %1109 = vmatprep.subr.mxu0 0.0
    %1110 = vmatpush2.msra.mxu0 0.0
    %1111 = vmatprep.subr.mxu0 0.0
    %1112 = vmatpush2.msra.mxu0 0.0
    %1113 = vmatprep.subr.mxu0 0.0
    %1114 = vmatpush2.msra.mxu0 0.0
    %1115 = vmatprep.subr.mxu0 0.0
    %1116 = vmatpush2.msra.mxu0 0.0
    %1117 = vmatprep.subr.mxu0 0.0
    %1118 = vmatpush2.msra.mxu0 0.0
    %1119 = vmatprep.subr.mxu0 0.0
    %1120 = vmatpush2.msra.mxu0 0.0
    %1121 = vmatprep.subr.mxu0 0.0
    %1122 = vmatpush2.msra.mxu0 0.0
    %1123 = vmatprep.subr.mxu0 0.0
    %1124 = vmatpush2.msra.mxu0 0.0
    %1125 = vmatprep.subr.mxu0 0.0
    %1126 = vmatpush2.msra.mxu0 0.0
    %1127 = vmatprep.subr.mxu0 0.0
    %1128 = vmatpush2.msra.mxu0 0.0
    %1129 = vmatprep.subr.mxu0 0.0
    %1130 = vmatpush2.msra.mxu0 0.0
    %1131 = vmatprep.subr.mxu0 0.0
    %1132 = vmatpush2.msra.mxu0 0.0
    %1133 = vmatprep.subr.mxu0 0.0
    %1134 = vmatpush2.msra.mxu0 0.0
    %1135 = vmatprep.subr.mxu0 0.0
    %1136 = vmatpush2.msra.mxu0 0.0
    %1137 = vmatprep.subr.mxu0 0.0
    %1138 = vmatpush2.msra.mxu0 0.0
    %1139 = vmatprep.mubr.f32.mxu0 0.0
    %1140 = vmatmul.mubr.f32.gmra.mxu0 %v1073
    %v1141 = vpop.f32.mrf.mxu0
    %v1142 = vadd.f32 0.0, %v1141
    %v1143 = vpop.f32.mrf.mxu0
    %1144 = vdwg.mxu0
    %v1146 = vrot.slane %v1142, 2
    %v1148 = vadd.f32 %v327, %v1146
    %v1149 = vxor.u32 %v1148, 2147483648
    %v1150 = vmul.f32 %v1149, 1.442695
    %v1151 = vpow.pop %v1150
    %v1152 = vadd.f32 %v1151, 1.0
    %v1153 = vrcp.pop %v1152
    %v1154 = vmul.f32 1.0, %v1153
    %v1155 = vtanh.pop %v1148
    %v1157 = vrot.slane %v947, 6
    %v1159 = vmul.f32 %v1154, %v1157
    %1161 = vrot.lane.b32.xlu0 %v1155, 64
    %v1162 = vpop.permute.xlu0 %1161
    %v1164 = vmul.f32 %v1154, %v1162
    %1166 = vrot.lane.b32.xlu0 %v1164, 32
    %v1167 = vpop.permute.xlu0 %1166
    %v1169 = vadd.f32 %v1159, %v1167
    %v1170 = vtanh.pop %v1169
    %1172 = vrot.lane.b32.xlu0 %v1170, 64
    %v1173 = vpop.permute.xlu0 %1172
    %v1175 = vmul.f32 %v1154, %v1173
    %v1176 = vrot.slane %v1059, 2
    %1177 = vrot.lane.b32.xlu0 %v1176, 32
    %v1178 = vpop.permute.xlu0 %1177
    %v1179 = vsel %vm154, %v1178, 0
    %1181 = vmatprep.subr.mxu0 0.0
    %1182 = vmatpush1.msra.mxu0 0.0
    %1183 = vmatprep.subr.mxu0 0.0
    %1184 = vmatpush1.msra.mxu0 0.0
    %1185 = vmatprep.subr.mxu0 0.0
    %1186 = vmatpush1.msra.mxu0 0.0
    %1187 = vmatprep.subr.mxu0 0.0
    %1188 = vmatpush1.msra.mxu0 0.0
    %1189 = vmatprep.subr.mxu0 0.0
    %1190 = vmatpush1.msra.mxu0 0.0
    %1191 = vmatprep.subr.mxu0 0.0
    %1192 = vmatpush1.msra.mxu0 0.0
    %1193 = vmatprep.subr.mxu0 0.0
    %1194 = vmatpush1.msra.mxu0 0.0
    %1195 = vmatprep.subr.mxu0 0.0
    %1196 = vmatpush1.msra.mxu0 0.0
    %1197 = vmatprep.subr.mxu0 0.0
    %1198 = vmatpush1.msra.mxu0 0.0
    %1199 = vmatprep.subr.mxu0 0.0
    %1200 = vmatpush1.msra.mxu0 0.0
    %1201 = vmatprep.subr.mxu0 0.0
    %1202 = vmatpush1.msra.mxu0 0.0
    %1203 = vmatprep.subr.mxu0 0.0
    %1204 = vmatpush1.msra.mxu0 0.0
    %1205 = vmatprep.subr.mxu0 0.0
    %1206 = vmatpush1.msra.mxu0 %v243
    %1207 = vmatprep.subr.mxu0 0.0
    %1208 = vmatpush1.msra.mxu0 %v242
    %1209 = vmatprep.subr.mxu0 0.0
    %1210 = vmatpush1.msra.mxu0 %v241
    %1211 = vmatprep.subr.mxu0 0.0
    %1212 = vmatpush1.msra.mxu0 %v240
    %1213 = vmatprep.subr.mxu0 0.0
    %1214 = vmatpush2.msra.mxu0 0.0
    %1215 = vmatprep.subr.mxu0 0.0
    %1216 = vmatpush2.msra.mxu0 0.0
    %1217 = vmatprep.subr.mxu0 0.0
    %1218 = vmatpush2.msra.mxu0 0.0
    %1219 = vmatprep.subr.mxu0 0.0
    %1220 = vmatpush2.msra.mxu0 0.0
    %1221 = vmatprep.subr.mxu0 0.0
    %1222 = vmatpush2.msra.mxu0 0.0
    %1223 = vmatprep.subr.mxu0 0.0
    %1224 = vmatpush2.msra.mxu0 0.0
    %1225 = vmatprep.subr.mxu0 0.0
    %1226 = vmatpush2.msra.mxu0 0.0
    %1227 = vmatprep.subr.mxu0 0.0
    %1228 = vmatpush2.msra.mxu0 0.0
    %1229 = vmatprep.subr.mxu0 0.0
    %1230 = vmatpush2.msra.mxu0 0.0
    %1231 = vmatprep.subr.mxu0 0.0
    %1232 = vmatpush2.msra.mxu0 0.0
    %1233 = vmatprep.subr.mxu0 0.0
    %1234 = vmatpush2.msra.mxu0 0.0
    %1235 = vmatprep.subr.mxu0 0.0
    %1236 = vmatpush2.msra.mxu0 0.0
    %1237 = vmatprep.subr.mxu0 0.0
    %1238 = vmatpush2.msra.mxu0 0.0
    %1239 = vmatprep.subr.mxu0 0.0
    %1240 = vmatpush2.msra.mxu0 0.0
    %1241 = vmatprep.subr.mxu0 0.0
    %1242 = vmatpush2.msra.mxu0 0.0
    %1243 = vmatprep.subr.mxu0 0.0
    %1244 = vmatpush2.msra.mxu0 0.0
    %1245 = vmatprep.mubr.f32.mxu0 0.0
    %1246 = vmatmul.mubr.f32.gmra.mxu0 %v1179
    %v1247 = vpop.f32.mrf.mxu0
    %v1248 = vadd.f32 0.0, %v1247
    %v1249 = vpop.f32.mrf.mxu0
    %1250 = vdwg.mxu0
    %v1251 = vadd.f32 %v416, %v1248
    %v1252 = vxor.u32 %v1251, 2147483648
    %v1253 = vmul.f32 %v1252, 1.442695
    %v1254 = vpow.pop %v1253
    %v1255 = vadd.f32 %v1254, 1.0
    %v1256 = vrcp.pop %v1255
    %v1257 = vmul.f32 1.0, %v1256
    %v1258 = vtanh.pop %v1251
    %v1260 = vrot.slane %v1053, 2
    %v1262 = vmul.f32 %v1257, %v1260
    %1264 = vrot.lane.b32.xlu0 %v1258, 64
    %v1265 = vpop.permute.xlu0 %1264
    %v1267 = vmul.f32 %v1257, %v1265
    %1269 = vrot.lane.b32.xlu0 %v1267, 32
    %v1270 = vpop.permute.xlu0 %1269
    %v1272 = vadd.f32 %v1262, %v1270
    %v1273 = vtanh.pop %v1272
    %1275 = vrot.lane.b32.xlu0 %v1273, 64
    %v1276 = vpop.permute.xlu0 %1275
    %v1278 = vmul.f32 %v1257, %v1276
    %1280 = vrot.lane.b32.xlu0 %v1175, 32
    %v1281 = vpop.permute.xlu0 %1280
    %1283 = vst.msk [vmem:[#allocation2] sm:$0xc0] %vm625, %v1281
    %1285 = vrot.lane.b32.xlu0 %v1278, 32
    %v1286 = vpop.permute.xlu0 %1285
    %1288 = vst.msk [vmem:[#allocation3 + $0x8] sm:$0x3] %vm619, %v1286
    %v1289 = vrot.slane %v1175, 6
    %1290 = vrot.lane.b32.xlu0 %v1289, 32
    %v1291 = vpop.permute.xlu0 %1290
    %v1292 = vsel %vm154, %v1291, 0
    %1294 = vmatprep.subr.mxu0 0.0
    %1295 = vmatpush1.msra.mxu0 0.0
    %1296 = vmatprep.subr.mxu0 0.0
    %1297 = vmatpush1.msra.mxu0 0.0
    %1298 = vmatprep.subr.mxu0 0.0
    %1299 = vmatpush1.msra.mxu0 0.0
    %1300 = vmatprep.subr.mxu0 0.0
    %1301 = vmatpush1.msra.mxu0 0.0
    %1302 = vmatprep.subr.mxu0 0.0
    %1303 = vmatpush1.msra.mxu0 0.0
    %1304 = vmatprep.subr.mxu0 0.0
    %1305 = vmatpush1.msra.mxu0 0.0
    %1306 = vmatprep.subr.mxu0 0.0
    %1307 = vmatpush1.msra.mxu0 0.0
    %1308 = vmatprep.subr.mxu0 0.0
    %1309 = vmatpush1.msra.mxu0 0.0
    %1310 = vmatprep.subr.mxu0 0.0
    %1311 = vmatpush1.msra.mxu0 0.0
    %1312 = vmatprep.subr.mxu0 0.0
    %1313 = vmatpush1.msra.mxu0 0.0
    %1314 = vmatprep.subr.mxu0 0.0
    %1315 = vmatpush1.msra.mxu0 0.0
    %1316 = vmatprep.subr.mxu0 0.0
    %1317 = vmatpush1.msra.mxu0 0.0
    %1318 = vmatprep.subr.mxu0 0.0
    %1319 = vmatpush1.msra.mxu0 %v239
    %1320 = vmatprep.subr.mxu0 0.0
    %1321 = vmatpush1.msra.mxu0 %v238
    %1322 = vmatprep.subr.mxu0 0.0
    %1323 = vmatpush1.msra.mxu0 %v237
    %1324 = vmatprep.subr.mxu0 0.0
    %1325 = vmatpush1.msra.mxu0 %v236
    %1326 = vmatprep.subr.mxu0 0.0
    %1327 = vmatpush2.msra.mxu0 0.0
    %1328 = vmatprep.subr.mxu0 0.0
    %1329 = vmatpush2.msra.mxu0 0.0
    %1330 = vmatprep.subr.mxu0 0.0
    %1331 = vmatpush2.msra.mxu0 0.0
    %1332 = vmatprep.subr.mxu0 0.0
    %1333 = vmatpush2.msra.mxu0 0.0
    %1334 = vmatprep.subr.mxu0 0.0
    %1335 = vmatpush2.msra.mxu0 0.0
    %1336 = vmatprep.subr.mxu0 0.0
    %1337 = vmatpush2.msra.mxu0 0.0
    %1338 = vmatprep.subr.mxu0 0.0
    %1339 = vmatpush2.msra.mxu0 0.0
    %1340 = vmatprep.subr.mxu0 0.0
    %1341 = vmatpush2.msra.mxu0 0.0
    %1342 = vmatprep.subr.mxu0 0.0
    %1343 = vmatpush2.msra.mxu0 0.0
    %1344 = vmatprep.subr.mxu0 0.0
    %1345 = vmatpush2.msra.mxu0 0.0
    %1346 = vmatprep.subr.mxu0 0.0
    %1347 = vmatpush2.msra.mxu0 0.0
    %1348 = vmatprep.subr.mxu0 0.0
    %1349 = vmatpush2.msra.mxu0 0.0
    %1350 = vmatprep.subr.mxu0 0.0
    %1351 = vmatpush2.msra.mxu0 0.0
    %1352 = vmatprep.subr.mxu0 0.0
    %1353 = vmatpush2.msra.mxu0 0.0
    %1354 = vmatprep.subr.mxu0 0.0
    %1355 = vmatpush2.msra.mxu0 0.0
    %1356 = vmatprep.subr.mxu0 0.0
    %1357 = vmatpush2.msra.mxu0 0.0
    %1358 = vmatprep.mubr.f32.mxu0 0.0
    %1359 = vmatmul.mubr.f32.gmra.mxu0 %v1292
    %v1360 = vpop.f32.mrf.mxu0
    %v1361 = vadd.f32 0.0, %v1360
    %v1362 = vpop.f32.mrf.mxu0
    %1363 = vdwg.mxu0
    %v1364 = vadd.f32 %v332, %v1361
    %v1365 = vxor.u32 %v1364, 2147483648
    %v1366 = vmul.f32 %v1365, 1.442695
    %v1367 = vpow.pop %v1366
    %v1368 = vadd.f32 %v1367, 1.0
    %v1369 = vrcp.pop %v1368
    %v1370 = vmul.f32 1.0, %v1369
    %v1371 = vtanh.pop %v1364
    %v1373 = vrot.slane %v1169, 6
    %v1375 = vmul.f32 %v1370, %v1373
    %1377 = vrot.lane.b32.xlu0 %v1371, 64
    %v1378 = vpop.permute.xlu0 %1377
    %v1380 = vmul.f32 %v1370, %v1378
    %1382 = vrot.lane.b32.xlu0 %v1380, 32
    %v1383 = vpop.permute.xlu0 %1382
    %v1385 = vadd.f32 %v1375, %v1383
    %v1386 = vtanh.pop %v1385
    %1388 = vrot.lane.b32.xlu0 %v1386, 64
    %v1389 = vpop.permute.xlu0 %1388
    %v1391 = vmul.f32 %v1370, %v1389
    %v1392 = vsel %vm154, %v1286, 0
    %1394 = vmatprep.subr.mxu0 0.0
    %1395 = vmatpush1.msra.mxu0 0.0
    %1396 = vmatprep.subr.mxu0 0.0
    %1397 = vmatpush1.msra.mxu0 0.0
    %1398 = vmatprep.subr.mxu0 0.0
    %1399 = vmatpush1.msra.mxu0 0.0
    %1400 = vmatprep.subr.mxu0 0.0
    %1401 = vmatpush1.msra.mxu0 0.0
    %1402 = vmatprep.subr.mxu0 0.0
    %1403 = vmatpush1.msra.mxu0 0.0
    %1404 = vmatprep.subr.mxu0 0.0
    %1405 = vmatpush1.msra.mxu0 0.0
    %1406 = vmatprep.subr.mxu0 0.0
    %1407 = vmatpush1.msra.mxu0 0.0
    %1408 = vmatprep.subr.mxu0 0.0
    %1409 = vmatpush1.msra.mxu0 0.0
    %1410 = vmatprep.subr.mxu0 0.0
    %1411 = vmatpush1.msra.mxu0 0.0
    %1412 = vmatprep.subr.mxu0 0.0
    %1413 = vmatpush1.msra.mxu0 0.0
    %1414 = vmatprep.subr.mxu0 0.0
    %1415 = vmatpush1.msra.mxu0 0.0
    %1416 = vmatprep.subr.mxu0 0.0
    %1417 = vmatpush1.msra.mxu0 0.0
    %1418 = vmatprep.subr.mxu0 0.0
    %1419 = vmatpush1.msra.mxu0 %v243
    %1420 = vmatprep.subr.mxu0 0.0
    %1421 = vmatpush1.msra.mxu0 %v242
    %1422 = vmatprep.subr.mxu0 0.0
    %1423 = vmatpush1.msra.mxu0 %v241
    %1424 = vmatprep.subr.mxu0 0.0
    %1425 = vmatpush1.msra.mxu0 %v240
    %1426 = vmatprep.subr.mxu0 0.0
    %1427 = vmatpush2.msra.mxu0 0.0
    %1428 = vmatprep.subr.mxu0 0.0
    %1429 = vmatpush2.msra.mxu0 0.0
    %1430 = vmatprep.subr.mxu0 0.0
    %1431 = vmatpush2.msra.mxu0 0.0
    %1432 = vmatprep.subr.mxu0 0.0
    %1433 = vmatpush2.msra.mxu0 0.0
    %1434 = vmatprep.subr.mxu0 0.0
    %1435 = vmatpush2.msra.mxu0 0.0
    %1436 = vmatprep.subr.mxu0 0.0
    %1437 = vmatpush2.msra.mxu0 0.0
    %1438 = vmatprep.subr.mxu0 0.0
    %1439 = vmatpush2.msra.mxu0 0.0
    %1440 = vmatprep.subr.mxu0 0.0
    %1441 = vmatpush2.msra.mxu0 0.0
    %1442 = vmatprep.subr.mxu0 0.0
    %1443 = vmatpush2.msra.mxu0 0.0
    %1444 = vmatprep.subr.mxu0 0.0
    %1445 = vmatpush2.msra.mxu0 0.0
    %1446 = vmatprep.subr.mxu0 0.0
    %1447 = vmatpush2.msra.mxu0 0.0
    %1448 = vmatprep.subr.mxu0 0.0
    %1449 = vmatpush2.msra.mxu0 0.0
    %1450 = vmatprep.subr.mxu0 0.0
    %1451 = vmatpush2.msra.mxu0 0.0
    %1452 = vmatprep.subr.mxu0 0.0
    %1453 = vmatpush2.msra.mxu0 0.0
    %1454 = vmatprep.subr.mxu0 0.0
    %1455 = vmatpush2.msra.mxu0 0.0
    %1456 = vmatprep.subr.mxu0 0.0
    %1457 = vmatpush2.msra.mxu0 0.0
    %1458 = vmatprep.mubr.f32.mxu0 0.0
    %1459 = vmatmul.mubr.f32.gmra.mxu0 %v1392
    %v1460 = vpop.f32.mrf.mxu0
    %v1461 = vadd.f32 0.0, %v1460
    %v1462 = vpop.f32.mrf.mxu0
    %1463 = vdwg.mxu0
    %v1465 = vrot.slane %v1461, 2
    %v1467 = vadd.f32 %v411, %v1465
    %v1468 = vxor.u32 %v1467, 2147483648
    %v1469 = vmul.f32 %v1468, 1.442695
    %v1470 = vpow.pop %v1469
    %v1471 = vadd.f32 %v1470, 1.0
    %v1472 = vrcp.pop %v1471
    %v1473 = vmul.f32 1.0, %v1472
    %v1474 = vtanh.pop %v1467
    %v1476 = vrot.slane %v1272, 2
    %v1478 = vmul.f32 %v1473, %v1476
    %1480 = vrot.lane.b32.xlu0 %v1474, 64
    %v1481 = vpop.permute.xlu0 %1480
    %v1483 = vmul.f32 %v1473, %v1481
    %1485 = vrot.lane.b32.xlu0 %v1483, 32
    %v1486 = vpop.permute.xlu0 %1485
    %v1488 = vadd.f32 %v1478, %v1486
    %v1489 = vtanh.pop %v1488
    %1491 = vrot.lane.b32.xlu0 %v1489, 64
    %v1492 = vpop.permute.xlu0 %1491
    %v1494 = vmul.f32 %v1473, %v1492
    %1496 = vrot.lane.b32.xlu0 %v1391, 32
    %v1497 = vpop.permute.xlu0 %1496
    %1499 = vst.msk [vmem:[#allocation2 + $0x8] sm:$0x3] %vm619, %v1497
    %1501 = vrot.lane.b32.xlu0 %v1494, 32
    %v1502 = vpop.permute.xlu0 %1501
    %1504 = vst.msk [vmem:[#allocation3] sm:$0xc0] %vm625, %v1502
    %v1505 = vsel %vm154, %v1497, 0
    %1507 = vmatprep.subr.mxu0 0.0
    %1508 = vmatpush1.msra.mxu0 0.0
    %1509 = vmatprep.subr.mxu0 0.0
    %1510 = vmatpush1.msra.mxu0 0.0
    %1511 = vmatprep.subr.mxu0 0.0
    %1512 = vmatpush1.msra.mxu0 0.0
    %1513 = vmatprep.subr.mxu0 0.0
    %1514 = vmatpush1.msra.mxu0 0.0
    %1515 = vmatprep.subr.mxu0 0.0
    %1516 = vmatpush1.msra.mxu0 0.0
    %1517 = vmatprep.subr.mxu0 0.0
    %1518 = vmatpush1.msra.mxu0 0.0
    %1519 = vmatprep.subr.mxu0 0.0
    %1520 = vmatpush1.msra.mxu0 0.0
    %1521 = vmatprep.subr.mxu0 0.0
    %1522 = vmatpush1.msra.mxu0 0.0
    %1523 = vmatprep.subr.mxu0 0.0
    %1524 = vmatpush1.msra.mxu0 0.0
    %1525 = vmatprep.subr.mxu0 0.0
    %1526 = vmatpush1.msra.mxu0 0.0
    %1527 = vmatprep.subr.mxu0 0.0
    %1528 = vmatpush1.msra.mxu0 0.0
    %1529 = vmatprep.subr.mxu0 0.0
    %1530 = vmatpush1.msra.mxu0 0.0
    %1531 = vmatprep.subr.mxu0 0.0
    %1532 = vmatpush1.msra.mxu0 %v239
    %1533 = vmatprep.subr.mxu0 0.0
    %1534 = vmatpush1.msra.mxu0 %v238
    %1535 = vmatprep.subr.mxu0 0.0
    %1536 = vmatpush1.msra.mxu0 %v237
    %1537 = vmatprep.subr.mxu0 0.0
    %1538 = vmatpush1.msra.mxu0 %v236
    %1539 = vmatprep.subr.mxu0 0.0
    %1540 = vmatpush2.msra.mxu0 0.0
    %1541 = vmatprep.subr.mxu0 0.0
    %1542 = vmatpush2.msra.mxu0 0.0
    %1543 = vmatprep.subr.mxu0 0.0
    %1544 = vmatpush2.msra.mxu0 0.0
    %1545 = vmatprep.subr.mxu0 0.0
    %1546 = vmatpush2.msra.mxu0 0.0
    %1547 = vmatprep.subr.mxu0 0.0
    %1548 = vmatpush2.msra.mxu0 0.0
    %1549 = vmatprep.subr.mxu0 0.0
    %1550 = vmatpush2.msra.mxu0 0.0
    %1551 = vmatprep.subr.mxu0 0.0
    %1552 = vmatpush2.msra.mxu0 0.0
    %1553 = vmatprep.subr.mxu0 0.0
    %1554 = vmatpush2.msra.mxu0 0.0
    %1555 = vmatprep.subr.mxu0 0.0
    %1556 = vmatpush2.msra.mxu0 0.0
    %1557 = vmatprep.subr.mxu0 0.0
    %1558 = vmatpush2.msra.mxu0 0.0
    %1559 = vmatprep.subr.mxu0 0.0
    %1560 = vmatpush2.msra.mxu0 0.0
    %1561 = vmatprep.subr.mxu0 0.0
    %1562 = vmatpush2.msra.mxu0 0.0
    %1563 = vmatprep.subr.mxu0 0.0
    %1564 = vmatpush2.msra.mxu0 0.0
    %1565 = vmatprep.subr.mxu0 0.0
    %1566 = vmatpush2.msra.mxu0 0.0
    %1567 = vmatprep.subr.mxu0 0.0
    %1568 = vmatpush2.msra.mxu0 0.0
    %1569 = vmatprep.subr.mxu0 0.0
    %1570 = vmatpush2.msra.mxu0 0.0
    %1571 = vmatprep.mubr.f32.mxu0 0.0
    %1572 = vmatmul.mubr.f32.gmra.mxu0 %v1505
    %v1573 = vpop.f32.mrf.mxu0
    %v1574 = vadd.f32 0.0, %v1573
    %v1575 = vpop.f32.mrf.mxu0
    %1576 = vdwg.mxu0
    %v1578 = vrot.slane %v1574, 6
    %v1580 = vadd.f32 %v332, %v1578
    %v1581 = vxor.u32 %v1580, 2147483648
    %v1582 = vmul.f32 %v1581, 1.442695
    %v1583 = vpow.pop %v1582
    %v1584 = vadd.f32 %v1583, 1.0
    %v1585 = vrcp.pop %v1584
    %v1586 = vmul.f32 1.0, %v1585
    %v1587 = vtanh.pop %v1580
    %v1589 = vrot.slane %v1385, 6
    %v1591 = vmul.f32 %v1586, %v1589
    %1593 = vrot.lane.b32.xlu0 %v1587, 64
    %v1594 = vpop.permute.xlu0 %1593
    %v1596 = vmul.f32 %v1586, %v1594
    %1598 = vrot.lane.b32.xlu0 %v1596, 32
    %v1599 = vpop.permute.xlu0 %1598
    %v1601 = vadd.f32 %v1591, %v1599
    %v1602 = vtanh.pop %v1601
    %1604 = vrot.lane.b32.xlu0 %v1602, 64
    %v1605 = vpop.permute.xlu0 %1604
    %v1607 = vmul.f32 %v1586, %v1605
    %v1608 = vrot.slane %v1494, 6
    %1609 = vrot.lane.b32.xlu0 %v1608, 32
    %v1610 = vpop.permute.xlu0 %1609
    %v1611 = vsel %vm154, %v1610, 0
    %1613 = vmatprep.subr.mxu0 0.0
    %1614 = vmatpush1.msra.mxu0 0.0
    %1615 = vmatprep.subr.mxu0 0.0
    %1616 = vmatpush1.msra.mxu0 0.0
    %1617 = vmatprep.subr.mxu0 0.0
    %1618 = vmatpush1.msra.mxu0 0.0
    %1619 = vmatprep.subr.mxu0 0.0
    %1620 = vmatpush1.msra.mxu0 0.0
    %1621 = vmatprep.subr.mxu0 0.0
    %1622 = vmatpush1.msra.mxu0 0.0
    %1623 = vmatprep.subr.mxu0 0.0
    %1624 = vmatpush1.msra.mxu0 0.0
    %1625 = vmatprep.subr.mxu0 0.0
    %1626 = vmatpush1.msra.mxu0 0.0
    %1627 = vmatprep.subr.mxu0 0.0
    %1628 = vmatpush1.msra.mxu0 0.0
    %1629 = vmatprep.subr.mxu0 0.0
    %1630 = vmatpush1.msra.mxu0 0.0
    %1631 = vmatprep.subr.mxu0 0.0
    %1632 = vmatpush1.msra.mxu0 0.0
    %1633 = vmatprep.subr.mxu0 0.0
    %1634 = vmatpush1.msra.mxu0 0.0
    %1635 = vmatprep.subr.mxu0 0.0
    %1636 = vmatpush1.msra.mxu0 0.0
    %1637 = vmatprep.subr.mxu0 0.0
    %1638 = vmatpush1.msra.mxu0 %v243
    %1639 = vmatprep.subr.mxu0 0.0
    %1640 = vmatpush1.msra.mxu0 %v242
    %1641 = vmatprep.subr.mxu0 0.0
    %1642 = vmatpush1.msra.mxu0 %v241
    %1643 = vmatprep.subr.mxu0 0.0
    %1644 = vmatpush1.msra.mxu0 %v240
    %1645 = vmatprep.subr.mxu0 0.0
    %1646 = vmatpush2.msra.mxu0 0.0
    %1647 = vmatprep.subr.mxu0 0.0
    %1648 = vmatpush2.msra.mxu0 0.0
    %1649 = vmatprep.subr.mxu0 0.0
    %1650 = vmatpush2.msra.mxu0 0.0
    %1651 = vmatprep.subr.mxu0 0.0
    %1652 = vmatpush2.msra.mxu0 0.0
    %1653 = vmatprep.subr.mxu0 0.0
    %1654 = vmatpush2.msra.mxu0 0.0
    %1655 = vmatprep.subr.mxu0 0.0
    %1656 = vmatpush2.msra.mxu0 0.0
    %1657 = vmatprep.subr.mxu0 0.0
    %1658 = vmatpush2.msra.mxu0 0.0
    %1659 = vmatprep.subr.mxu0 0.0
    %1660 = vmatpush2.msra.mxu0 0.0
    %1661 = vmatprep.subr.mxu0 0.0
    %1662 = vmatpush2.msra.mxu0 0.0
    %1663 = vmatprep.subr.mxu0 0.0
    %1664 = vmatpush2.msra.mxu0 0.0
    %1665 = vmatprep.subr.mxu0 0.0
    %1666 = vmatpush2.msra.mxu0 0.0
    %1667 = vmatprep.subr.mxu0 0.0
    %1668 = vmatpush2.msra.mxu0 0.0
    %1669 = vmatprep.subr.mxu0 0.0
    %1670 = vmatpush2.msra.mxu0 0.0
    %1671 = vmatprep.subr.mxu0 0.0
    %1672 = vmatpush2.msra.mxu0 0.0
    %1673 = vmatprep.subr.mxu0 0.0
    %1674 = vmatpush2.msra.mxu0 0.0
    %1675 = vmatprep.subr.mxu0 0.0
    %1676 = vmatpush2.msra.mxu0 0.0
    %1677 = vmatprep.mubr.f32.mxu0 0.0
    %1678 = vmatmul.mubr.f32.gmra.mxu0 %v1611
    %v1679 = vpop.f32.mrf.mxu0
    %v1680 = vadd.f32 0.0, %v1679
    %v1681 = vpop.f32.mrf.mxu0
    %1682 = vdwg.mxu0
    %v1684 = vrot.slane %v1680, 4
    %v1686 = vadd.f32 %v411, %v1684
    %v1687 = vxor.u32 %v1686, 2147483648
    %v1688 = vmul.f32 %v1687, 1.442695
    %v1689 = vpow.pop %v1688
    %v1690 = vadd.f32 %v1689, 1.0
    %v1691 = vrcp.pop %v1690
    %v1692 = vmul.f32 1.0, %v1691
    %v1693 = vtanh.pop %v1686
    %v1695 = vrot.slane %v1488, 2
    %v1697 = vmul.f32 %v1692, %v1695
    %1699 = vrot.lane.b32.xlu0 %v1693, 64
    %v1700 = vpop.permute.xlu0 %1699
    %v1702 = vmul.f32 %v1692, %v1700
    %1704 = vrot.lane.b32.xlu0 %v1702, 32
    %v1705 = vpop.permute.xlu0 %1704
    %v1707 = vadd.f32 %v1697, %v1705
    %v1708 = vtanh.pop %v1707
    %1710 = vrot.lane.b32.xlu0 %v1708, 64
    %v1711 = vpop.permute.xlu0 %1710
    %v1713 = vmul.f32 %v1692, %v1711
    %1715 = vrot.lane.b32.xlu0 %v1607, 32
    %v1716 = vpop.permute.xlu0 %1715
    %1718 = vst.msk [vmem:[#allocation2 + $0x8] sm:$0xc] %vm840, %v1716
    %1720 = vrot.lane.b32.xlu0 %v1713, 32
    %v1721 = vpop.permute.xlu0 %1720
    %1723 = vst.msk [vmem:[#allocation3] sm:$0x30] %vm846, %v1721
    %v1724 = vrot.slane %v1607, 2
    %1725 = vrot.lane.b32.xlu0 %v1724, 32
    %v1726 = vpop.permute.xlu0 %1725
    %v1727 = vsel %vm154, %v1726, 0
    %1729 = vmatprep.subr.mxu0 0.0
    %1730 = vmatpush1.msra.mxu0 0.0
    %1731 = vmatprep.subr.mxu0 0.0
    %1732 = vmatpush1.msra.mxu0 0.0
    %1733 = vmatprep.subr.mxu0 0.0
    %1734 = vmatpush1.msra.mxu0 0.0
    %1735 = vmatprep.subr.mxu0 0.0
    %1736 = vmatpush1.msra.mxu0 0.0
    %1737 = vmatprep.subr.mxu0 0.0
    %1738 = vmatpush1.msra.mxu0 0.0
    %1739 = vmatprep.subr.mxu0 0.0
    %1740 = vmatpush1.msra.mxu0 0.0
    %1741 = vmatprep.subr.mxu0 0.0
    %1742 = vmatpush1.msra.mxu0 0.0
    %1743 = vmatprep.subr.mxu0 0.0
    %1744 = vmatpush1.msra.mxu0 0.0
    %1745 = vmatprep.subr.mxu0 0.0
    %1746 = vmatpush1.msra.mxu0 0.0
    %1747 = vmatprep.subr.mxu0 0.0
    %1748 = vmatpush1.msra.mxu0 0.0
    %1749 = vmatprep.subr.mxu0 0.0
    %1750 = vmatpush1.msra.mxu0 0.0
    %1751 = vmatprep.subr.mxu0 0.0
    %1752 = vmatpush1.msra.mxu0 0.0
    %1753 = vmatprep.subr.mxu0 0.0
    %1754 = vmatpush1.msra.mxu0 %v239
    %1755 = vmatprep.subr.mxu0 0.0
    %1756 = vmatpush1.msra.mxu0 %v238
    %1757 = vmatprep.subr.mxu0 0.0
    %1758 = vmatpush1.msra.mxu0 %v237
    %1759 = vmatprep.subr.mxu0 0.0
    %1760 = vmatpush1.msra.mxu0 %v236
    %1761 = vmatprep.subr.mxu0 0.0
    %1762 = vmatpush2.msra.mxu0 0.0
    %1763 = vmatprep.subr.mxu0 0.0
    %1764 = vmatpush2.msra.mxu0 0.0
    %1765 = vmatprep.subr.mxu0 0.0
    %1766 = vmatpush2.msra.mxu0 0.0
    %1767 = vmatprep.subr.mxu0 0.0
    %1768 = vmatpush2.msra.mxu0 0.0
    %1769 = vmatprep.subr.mxu0 0.0
    %1770 = vmatpush2.msra.mxu0 0.0
    %1771 = vmatprep.subr.mxu0 0.0
    %1772 = vmatpush2.msra.mxu0 0.0
    %1773 = vmatprep.subr.mxu0 0.0
    %1774 = vmatpush2.msra.mxu0 0.0
    %1775 = vmatprep.subr.mxu0 0.0
    %1776 = vmatpush2.msra.mxu0 0.0
    %1777 = vmatprep.subr.mxu0 0.0
    %1778 = vmatpush2.msra.mxu0 0.0
    %1779 = vmatprep.subr.mxu0 0.0
    %1780 = vmatpush2.msra.mxu0 0.0
    %1781 = vmatprep.subr.mxu0 0.0
    %1782 = vmatpush2.msra.mxu0 0.0
    %1783 = vmatprep.subr.mxu0 0.0
    %1784 = vmatpush2.msra.mxu0 0.0
    %1785 = vmatprep.subr.mxu0 0.0
    %1786 = vmatpush2.msra.mxu0 0.0
    %1787 = vmatprep.subr.mxu0 0.0
    %1788 = vmatpush2.msra.mxu0 0.0
    %1789 = vmatprep.subr.mxu0 0.0
    %1790 = vmatpush2.msra.mxu0 0.0
    %1791 = vmatprep.subr.mxu0 0.0
    %1792 = vmatpush2.msra.mxu0 0.0
    %1793 = vmatprep.mubr.f32.mxu0 0.0
    %1794 = vmatmul.mubr.f32.gmra.mxu0 %v1727
    %v1795 = vpop.f32.mrf.mxu0
    %v1796 = vadd.f32 0.0, %v1795
    %v1797 = vpop.f32.mrf.mxu0
    %1798 = vdwg.mxu0
    %v1800 = vrot.slane %v1796, 4
    %v1802 = vadd.f32 %v332, %v1800
    %v1803 = vxor.u32 %v1802, 2147483648
    %v1804 = vmul.f32 %v1803, 1.442695
    %v1805 = vpow.pop %v1804
    %v1806 = vadd.f32 %v1805, 1.0
    %v1807 = vrcp.pop %v1806
    %v1808 = vmul.f32 1.0, %v1807
    %v1809 = vtanh.pop %v1802
    %v1811 = vrot.slane %v1601, 6
    %v1813 = vmul.f32 %v1808, %v1811
    %1815 = vrot.lane.b32.xlu0 %v1809, 64
    %v1816 = vpop.permute.xlu0 %1815
    %v1818 = vmul.f32 %v1808, %v1816
    %1820 = vrot.lane.b32.xlu0 %v1818, 32
    %v1821 = vpop.permute.xlu0 %1820
    %v1823 = vadd.f32 %v1813, %v1821
    %v1824 = vtanh.pop %v1823
    %1826 = vrot.lane.b32.xlu0 %v1824, 64
    %v1827 = vpop.permute.xlu0 %1826
    %v1829 = vmul.f32 %v1808, %v1827
    %v1830 = vrot.slane %v1713, 4
    %1831 = vrot.lane.b32.xlu0 %v1830, 32
    %v1832 = vpop.permute.xlu0 %1831
    %v1833 = vsel %vm154, %v1832, 0
    %1835 = vmatprep.subr.mxu0 0.0
    %1836 = vmatpush1.msra.mxu0 0.0
    %1837 = vmatprep.subr.mxu0 0.0
    %1838 = vmatpush1.msra.mxu0 0.0
    %1839 = vmatprep.subr.mxu0 0.0
    %1840 = vmatpush1.msra.mxu0 0.0
    %1841 = vmatprep.subr.mxu0 0.0
    %1842 = vmatpush1.msra.mxu0 0.0
    %1843 = vmatprep.subr.mxu0 0.0
    %1844 = vmatpush1.msra.mxu0 0.0
    %1845 = vmatprep.subr.mxu0 0.0
    %1846 = vmatpush1.msra.mxu0 0.0
    %1847 = vmatprep.subr.mxu0 0.0
    %1848 = vmatpush1.msra.mxu0 0.0
    %1849 = vmatprep.subr.mxu0 0.0
    %1850 = vmatpush1.msra.mxu0 0.0
    %1851 = vmatprep.subr.mxu0 0.0
    %1852 = vmatpush1.msra.mxu0 0.0
    %1853 = vmatprep.subr.mxu0 0.0
    %1854 = vmatpush1.msra.mxu0 0.0
    %1855 = vmatprep.subr.mxu0 0.0
    %1856 = vmatpush1.msra.mxu0 0.0
    %1857 = vmatprep.subr.mxu0 0.0
    %1858 = vmatpush1.msra.mxu0 0.0
    %1859 = vmatprep.subr.mxu0 0.0
    %1860 = vmatpush1.msra.mxu0 %v243
    %1861 = vmatprep.subr.mxu0 0.0
    %1862 = vmatpush1.msra.mxu0 %v242
    %1863 = vmatprep.subr.mxu0 0.0
    %1864 = vmatpush1.msra.mxu0 %v241
    %1865 = vmatprep.subr.mxu0 0.0
    %1866 = vmatpush1.msra.mxu0 %v240
    %1867 = vmatprep.subr.mxu0 0.0
    %1868 = vmatpush2.msra.mxu0 0.0
    %1869 = vmatprep.subr.mxu0 0.0
    %1870 = vmatpush2.msra.mxu0 0.0
    %1871 = vmatprep.subr.mxu0 0.0
    %1872 = vmatpush2.msra.mxu0 0.0
    %1873 = vmatprep.subr.mxu0 0.0
    %1874 = vmatpush2.msra.mxu0 0.0
    %1875 = vmatprep.subr.mxu0 0.0
    %1876 = vmatpush2.msra.mxu0 0.0
    %1877 = vmatprep.subr.mxu0 0.0
    %1878 = vmatpush2.msra.mxu0 0.0
    %1879 = vmatprep.subr.mxu0 0.0
    %1880 = vmatpush2.msra.mxu0 0.0
    %1881 = vmatprep.subr.mxu0 0.0
    %1882 = vmatpush2.msra.mxu0 0.0
    %1883 = vmatprep.subr.mxu0 0.0
    %1884 = vmatpush2.msra.mxu0 0.0
    %1885 = vmatprep.subr.mxu0 0.0
    %1886 = vmatpush2.msra.mxu0 0.0
    %1887 = vmatprep.subr.mxu0 0.0
    %1888 = vmatpush2.msra.mxu0 0.0
    %1889 = vmatprep.subr.mxu0 0.0
    %1890 = vmatpush2.msra.mxu0 0.0
    %1891 = vmatprep.subr.mxu0 0.0
    %1892 = vmatpush2.msra.mxu0 0.0
    %1893 = vmatprep.subr.mxu0 0.0
    %1894 = vmatpush2.msra.mxu0 0.0
    %1895 = vmatprep.subr.mxu0 0.0
    %1896 = vmatpush2.msra.mxu0 0.0
    %1897 = vmatprep.subr.mxu0 0.0
    %1898 = vmatpush2.msra.mxu0 0.0
    %1899 = vmatprep.mubr.f32.mxu0 0.0
    %1900 = vmatmul.mubr.f32.gmra.mxu0 %v1833
    %v1901 = vpop.f32.mrf.mxu0
    %v1902 = vadd.f32 0.0, %v1901
    %v1903 = vpop.f32.mrf.mxu0
    %1904 = vdwg.mxu0
    %v1906 = vrot.slane %v1902, 6
    %v1908 = vadd.f32 %v411, %v1906
    %v1909 = vxor.u32 %v1908, 2147483648
    %v1910 = vmul.f32 %v1909, 1.442695
    %v1911 = vpow.pop %v1910
    %v1912 = vadd.f32 %v1911, 1.0
    %v1913 = vrcp.pop %v1912
    %v1914 = vmul.f32 1.0, %v1913
    %v1915 = vtanh.pop %v1908
    %v1917 = vrot.slane %v1707, 2
    %v1919 = vmul.f32 %v1914, %v1917
    %1921 = vrot.lane.b32.xlu0 %v1915, 64
    %v1922 = vpop.permute.xlu0 %1921
    %v1924 = vmul.f32 %v1914, %v1922
    %1926 = vrot.lane.b32.xlu0 %v1924, 32
    %v1927 = vpop.permute.xlu0 %1926
    %v1929 = vadd.f32 %v1919, %v1927
    %v1930 = vtanh.pop %v1929
    %1932 = vrot.lane.b32.xlu0 %v1930, 64
    %v1933 = vpop.permute.xlu0 %1932
    %v1935 = vmul.f32 %v1914, %v1933
    %1937 = vrot.lane.b32.xlu0 %v1829, 32
    %v1938 = vpop.permute.xlu0 %1937
    %1940 = vst.msk [vmem:[#allocation2 + $0x8] sm:$0x30] %vm846, %v1938
    %1942 = vrot.lane.b32.xlu0 %v1935, 32
    %v1943 = vpop.permute.xlu0 %1942
    %1945 = vst.msk [vmem:[#allocation3] sm:$0xc] %vm840, %v1943
    %v1946 = vrot.slane %v1829, 4
    %1947 = vrot.lane.b32.xlu0 %v1946, 32
    %v1948 = vpop.permute.xlu0 %1947
    %v1949 = vsel %vm154, %v1948, 0
    %1951 = vmatprep.subr.mxu0 0.0
    %1952 = vmatpush1.msra.mxu0 0.0
    %1953 = vmatprep.subr.mxu0 0.0
    %1954 = vmatpush1.msra.mxu0 0.0
    %1955 = vmatprep.subr.mxu0 0.0
    %1956 = vmatpush1.msra.mxu0 0.0
    %1957 = vmatprep.subr.mxu0 0.0
    %1958 = vmatpush1.msra.mxu0 0.0
    %1959 = vmatprep.subr.mxu0 0.0
    %1960 = vmatpush1.msra.mxu0 0.0
    %1961 = vmatprep.subr.mxu0 0.0
    %1962 = vmatpush1.msra.mxu0 0.0
    %1963 = vmatprep.subr.mxu0 0.0
    %1964 = vmatpush1.msra.mxu0 0.0
    %1965 = vmatprep.subr.mxu0 0.0
    %1966 = vmatpush1.msra.mxu0 0.0
    %1967 = vmatprep.subr.mxu0 0.0
    %1968 = vmatpush1.msra.mxu0 0.0
    %1969 = vmatprep.subr.mxu0 0.0
    %1970 = vmatpush1.msra.mxu0 0.0
    %1971 = vmatprep.subr.mxu0 0.0
    %1972 = vmatpush1.msra.mxu0 0.0
    %1973 = vmatprep.subr.mxu0 0.0
    %1974 = vmatpush1.msra.mxu0 0.0
    %1975 = vmatprep.subr.mxu0 0.0
    %1976 = vmatpush1.msra.mxu0 %v239
    %1977 = vmatprep.subr.mxu0 0.0
    %1978 = vmatpush1.msra.mxu0 %v238
    %1979 = vmatprep.subr.mxu0 0.0
    %1980 = vmatpush1.msra.mxu0 %v237
    %1981 = vmatprep.subr.mxu0 0.0
    %1982 = vmatpush1.msra.mxu0 %v236
    %1983 = vmatprep.subr.mxu0 0.0
    %1984 = vmatpush2.msra.mxu0 0.0
    %1985 = vmatprep.subr.mxu0 0.0
    %1986 = vmatpush2.msra.mxu0 0.0
    %1987 = vmatprep.subr.mxu0 0.0
    %1988 = vmatpush2.msra.mxu0 0.0
    %1989 = vmatprep.subr.mxu0 0.0
    %1990 = vmatpush2.msra.mxu0 0.0
    %1991 = vmatprep.subr.mxu0 0.0
    %1992 = vmatpush2.msra.mxu0 0.0
    %1993 = vmatprep.subr.mxu0 0.0
    %1994 = vmatpush2.msra.mxu0 0.0
    %1995 = vmatprep.subr.mxu0 0.0
    %1996 = vmatpush2.msra.mxu0 0.0
    %1997 = vmatprep.subr.mxu0 0.0
    %1998 = vmatpush2.msra.mxu0 0.0
    %1999 = vmatprep.subr.mxu0 0.0
    %2000 = vmatpush2.msra.mxu0 0.0
    %2001 = vmatprep.subr.mxu0 0.0
    %2002 = vmatpush2.msra.mxu0 0.0
    %2003 = vmatprep.subr.mxu0 0.0
    %2004 = vmatpush2.msra.mxu0 0.0
    %2005 = vmatprep.subr.mxu0 0.0
    %2006 = vmatpush2.msra.mxu0 0.0
    %2007 = vmatprep.subr.mxu0 0.0
    %2008 = vmatpush2.msra.mxu0 0.0
    %2009 = vmatprep.subr.mxu0 0.0
    %2010 = vmatpush2.msra.mxu0 0.0
    %2011 = vmatprep.subr.mxu0 0.0
    %2012 = vmatpush2.msra.mxu0 0.0
    %2013 = vmatprep.subr.mxu0 0.0
    %2014 = vmatpush2.msra.mxu0 0.0
    %2015 = vmatprep.mubr.f32.mxu0 0.0
    %2016 = vmatmul.mubr.f32.gmra.mxu0 %v1949
    %v2017 = vpop.f32.mrf.mxu0
    %v2018 = vadd.f32 0.0, %v2017
    %v2019 = vpop.f32.mrf.mxu0
    %2020 = vdwg.mxu0
    %v2022 = vrot.slane %v2018, 2
    %v2024 = vadd.f32 %v332, %v2022
    %v2025 = vxor.u32 %v2024, 2147483648
    %v2026 = vmul.f32 %v2025, 1.442695
    %v2027 = vpow.pop %v2026
    %v2028 = vadd.f32 %v2027, 1.0
    %v2029 = vrcp.pop %v2028
    %v2030 = vmul.f32 1.0, %v2029
    %v2031 = vtanh.pop %v2024
    %v2033 = vrot.slane %v1823, 6
    %v2035 = vmul.f32 %v2030, %v2033
    %2037 = vrot.lane.b32.xlu0 %v2031, 64
    %v2038 = vpop.permute.xlu0 %2037
    %v2040 = vmul.f32 %v2030, %v2038
    %2042 = vrot.lane.b32.xlu0 %v2040, 32
    %v2043 = vpop.permute.xlu0 %2042
    %v2045 = vadd.f32 %v2035, %v2043
    %v2046 = vtanh.pop %v2045
    %2048 = vrot.lane.b32.xlu0 %v2046, 64
    %v2049 = vpop.permute.xlu0 %2048
    %v2051 = vmul.f32 %v2030, %v2049
    %v2052 = vrot.slane %v1935, 2
    %2053 = vrot.lane.b32.xlu0 %v2052, 32
    %v2054 = vpop.permute.xlu0 %2053
    %v2055 = vsel %vm154, %v2054, 0
    %2057 = vmatprep.subr.mxu0 0.0
    %2058 = vmatpush1.msra.mxu0 0.0
    %2059 = vmatprep.subr.mxu0 0.0
    %2060 = vmatpush1.msra.mxu0 0.0
    %2061 = vmatprep.subr.mxu0 0.0
    %2062 = vmatpush1.msra.mxu0 0.0
    %2063 = vmatprep.subr.mxu0 0.0
    %2064 = vmatpush1.msra.mxu0 0.0
    %2065 = vmatprep.subr.mxu0 0.0
    %2066 = vmatpush1.msra.mxu0 0.0
    %2067 = vmatprep.subr.mxu0 0.0
    %2068 = vmatpush1.msra.mxu0 0.0
    %2069 = vmatprep.subr.mxu0 0.0
    %2070 = vmatpush1.msra.mxu0 0.0
    %2071 = vmatprep.subr.mxu0 0.0
    %2072 = vmatpush1.msra.mxu0 0.0
    %2073 = vmatprep.subr.mxu0 0.0
    %2074 = vmatpush1.msra.mxu0 0.0
    %2075 = vmatprep.subr.mxu0 0.0
    %2076 = vmatpush1.msra.mxu0 0.0
    %2077 = vmatprep.subr.mxu0 0.0
    %2078 = vmatpush1.msra.mxu0 0.0
    %2079 = vmatprep.subr.mxu0 0.0
    %2080 = vmatpush1.msra.mxu0 0.0
    %2081 = vmatprep.subr.mxu0 0.0
    %2082 = vmatpush1.msra.mxu0 %v243
    %2083 = vmatprep.subr.mxu0 0.0
    %2084 = vmatpush1.msra.mxu0 %v242
    %2085 = vmatprep.subr.mxu0 0.0
    %2086 = vmatpush1.msra.mxu0 %v241
    %2087 = vmatprep.subr.mxu0 0.0
    %2088 = vmatpush1.msra.mxu0 %v240
    %2089 = vmatprep.subr.mxu0 0.0
    %2090 = vmatpush2.msra.mxu0 0.0
    %2091 = vmatprep.subr.mxu0 0.0
    %2092 = vmatpush2.msra.mxu0 0.0
    %2093 = vmatprep.subr.mxu0 0.0
    %2094 = vmatpush2.msra.mxu0 0.0
    %2095 = vmatprep.subr.mxu0 0.0
    %2096 = vmatpush2.msra.mxu0 0.0
    %2097 = vmatprep.subr.mxu0 0.0
    %2098 = vmatpush2.msra.mxu0 0.0
    %2099 = vmatprep.subr.mxu0 0.0
    %2100 = vmatpush2.msra.mxu0 0.0
    %2101 = vmatprep.subr.mxu0 0.0
    %2102 = vmatpush2.msra.mxu0 0.0
    %2103 = vmatprep.subr.mxu0 0.0
    %2104 = vmatpush2.msra.mxu0 0.0
    %2105 = vmatprep.subr.mxu0 0.0
    %2106 = vmatpush2.msra.mxu0 0.0
    %2107 = vmatprep.subr.mxu0 0.0
    %2108 = vmatpush2.msra.mxu0 0.0
    %2109 = vmatprep.subr.mxu0 0.0
    %2110 = vmatpush2.msra.mxu0 0.0
    %2111 = vmatprep.subr.mxu0 0.0
    %2112 = vmatpush2.msra.mxu0 0.0
    %2113 = vmatprep.subr.mxu0 0.0
    %2114 = vmatpush2.msra.mxu0 0.0
    %2115 = vmatprep.subr.mxu0 0.0
    %2116 = vmatpush2.msra.mxu0 0.0
    %2117 = vmatprep.subr.mxu0 0.0
    %2118 = vmatpush2.msra.mxu0 0.0
    %2119 = vmatprep.subr.mxu0 0.0
    %2120 = vmatpush2.msra.mxu0 0.0
    %2121 = vmatprep.mubr.f32.mxu0 0.0
    %2122 = vmatmul.mubr.f32.gmra.mxu0 %v2055
    %v2123 = vpop.f32.mrf.mxu0
    %v2124 = vadd.f32 0.0, %v2123
    %v2125 = vpop.f32.mrf.mxu0
    %2126 = vdwg.mxu0
    %v2127 = vadd.f32 %v411, %v2124
    %v2128 = vxor.u32 %v2127, 2147483648
    %v2129 = vmul.f32 %v2128, 1.442695
    %v2130 = vpow.pop %v2129
    %v2131 = vadd.f32 %v2130, 1.0
    %v2132 = vrcp.pop %v2131
    %v2133 = vmul.f32 1.0, %v2132
    %v2134 = vtanh.pop %v2127
    %v2136 = vrot.slane %v1929, 2
    %v2138 = vmul.f32 %v2133, %v2136
    %2140 = vrot.lane.b32.xlu0 %v2134, 64
    %v2141 = vpop.permute.xlu0 %2140
    %v2143 = vmul.f32 %v2133, %v2141
    %2145 = vrot.lane.b32.xlu0 %v2143, 32
    %v2146 = vpop.permute.xlu0 %2145
    %v2148 = vadd.f32 %v2138, %v2146
    %v2149 = vtanh.pop %v2148
    %2151 = vrot.lane.b32.xlu0 %v2149, 64
    %v2152 = vpop.permute.xlu0 %2151
    %v2154 = vmul.f32 %v2133, %v2152
    %2156 = vrot.lane.b32.xlu0 %v2051, 32
    %v2157 = vpop.permute.xlu0 %2156
    %2159 = vst.msk [vmem:[#allocation2 + $0x8] sm:$0xc0] %vm625, %v2157
    %2161 = vrot.lane.b32.xlu0 %v2154, 32
    %v2162 = vpop.permute.xlu0 %2161
    %2164 = vst.msk [vmem:[#allocation3] sm:$0x3] %vm619, %v2162
    %v2165 = vld [vmem:[#allocation2] sm:$0xff]
    %v2166 = vld [vmem:[#allocation2 + $0x8] sm:$0xff]
    %v2167 = vld [vmem:[#allocation3] sm:$0xff]
    %v2168 = vld [vmem:[#allocation3 + $0x8] sm:$0xff]
    %v2169 = vld [vmem:[%s8] sm:$0xff]
    %v2170 = vld [vmem:[%s8 + $0x8] sm:$0xff]
    %v2171 = vld [vmem:[%s8 + $0x10] sm:$0xff]
    %v2172 = vld [vmem:[%s8 + $0x18] sm:$0xff]
    %v2173 = vld [vmem:[%s9] sm:$0xff]
    %v2174 = vld [vmem:[%s9 + $0x8] sm:$0xff]
    %v2175 = vld [vmem:[%s9 + $0x10] sm:$0xff]
    %v2176 = vld [vmem:[%s9 + $0x18] sm:$0xff]
    %v2178 = vsel %vm154, %v2167, 0
    %v2181 = vsel %vm154, %v2168, 0
    %2183 = vmatprep.subr.mxu0 0.0
    %2184 = vmatpush1.msra.mxu0 0.0
    %2185 = vmatprep.subr.mxu0 0.0
    %2186 = vmatpush1.msra.mxu0 0.0
    %2187 = vmatprep.subr.mxu0 0.0
    %2188 = vmatpush1.msra.mxu0 0.0
    %2189 = vmatprep.subr.mxu0 0.0
    %2190 = vmatpush1.msra.mxu0 0.0
    %2191 = vmatprep.subr.mxu0 0.0
    %2192 = vmatpush1.msra.mxu0 0.0
    %2193 = vmatprep.subr.mxu0 0.0
    %2194 = vmatpush1.msra.mxu0 0.0
    %2195 = vmatprep.subr.mxu0 0.0
    %2196 = vmatpush1.msra.mxu0 0.0
    %2197 = vmatprep.subr.mxu0 0.0
    %2198 = vmatpush1.msra.mxu0 0.0
    %2199 = vmatprep.subr.mxu0 0.0
    %2200 = vmatpush1.msra.mxu0 0.0
    %2201 = vmatprep.subr.mxu0 0.0
    %2202 = vmatpush1.msra.mxu0 0.0
    %2203 = vmatprep.subr.mxu0 0.0
    %2204 = vmatpush1.msra.mxu0 0.0
    %2205 = vmatprep.subr.mxu0 0.0
    %2206 = vmatpush1.msra.mxu0 0.0
    %2207 = vmatprep.subr.mxu0 0.0
    %2208 = vmatpush1.msra.mxu0 %v2176
    %2209 = vmatprep.subr.mxu0 0.0
    %2210 = vmatpush1.msra.mxu0 %v2175
    %2211 = vmatprep.subr.mxu0 0.0
    %2212 = vmatpush1.msra.mxu0 %v2174
    %2213 = vmatprep.subr.mxu0 0.0
    %2214 = vmatpush1.msra.mxu0 %v2173
    %2215 = vmatprep.subr.mxu0 0.0
    %2216 = vmatpush2.msra.mxu0 0.0
    %2217 = vmatprep.subr.mxu0 0.0
    %2218 = vmatpush2.msra.mxu0 0.0
    %2219 = vmatprep.subr.mxu0 0.0
    %2220 = vmatpush2.msra.mxu0 0.0
    %2221 = vmatprep.subr.mxu0 0.0
    %2222 = vmatpush2.msra.mxu0 0.0
    %2223 = vmatprep.subr.mxu0 0.0
    %2224 = vmatpush2.msra.mxu0 0.0
    %2225 = vmatprep.subr.mxu0 0.0
    %2226 = vmatpush2.msra.mxu0 0.0
    %2227 = vmatprep.subr.mxu0 0.0
    %2228 = vmatpush2.msra.mxu0 0.0
    %2229 = vmatprep.subr.mxu0 0.0
    %2230 = vmatpush2.msra.mxu0 0.0
    %2231 = vmatprep.subr.mxu0 0.0
    %2232 = vmatpush2.msra.mxu0 0.0
    %2233 = vmatprep.subr.mxu0 0.0
    %2234 = vmatpush2.msra.mxu0 0.0
    %2235 = vmatprep.subr.mxu0 0.0
    %2236 = vmatpush2.msra.mxu0 0.0
    %2237 = vmatprep.subr.mxu0 0.0
    %2238 = vmatpush2.msra.mxu0 0.0
    %2239 = vmatprep.subr.mxu0 0.0
    %2240 = vmatpush2.msra.mxu0 0.0
    %2241 = vmatprep.subr.mxu0 0.0
    %2242 = vmatpush2.msra.mxu0 0.0
    %2243 = vmatprep.subr.mxu0 0.0
    %2244 = vmatpush2.msra.mxu0 0.0
    %2245 = vmatprep.subr.mxu0 0.0
    %2246 = vmatpush2.msra.mxu0 0.0
    %2247 = vmatprep.mubr.f32.mxu0 0.0
    %2248 = vmatmul.mubr.f32.gmra.mxu0 %v2178
    %v2249 = vpop.f32.mrf.mxu0
    %v2250 = vadd.f32 0.0, %v2249
    %v2251 = vpop.f32.mrf.mxu0
    %2252 = vmatprep.mubr.f32.mxu0 0.0
    %2253 = vmatmul.mubr.f32.gmra.mxu0 %v2181
    %v2254 = vpop.f32.mrf.mxu0
    %v2255 = vadd.f32 0.0, %v2254
    %v2256 = vpop.f32.mrf.mxu0
    %2257 = vdwg.mxu0
    %v2259 = vsel %vm154, %v2165, 0
    %v2262 = vsel %vm154, %v2166, 0
    %2264 = vmatprep.subr.mxu0 0.0
    %2265 = vmatpush1.msra.mxu0 0.0
    %2266 = vmatprep.subr.mxu0 0.0
    %2267 = vmatpush1.msra.mxu0 0.0
    %2268 = vmatprep.subr.mxu0 0.0
    %2269 = vmatpush1.msra.mxu0 0.0
    %2270 = vmatprep.subr.mxu0 0.0
    %2271 = vmatpush1.msra.mxu0 0.0
    %2272 = vmatprep.subr.mxu0 0.0
    %2273 = vmatpush1.msra.mxu0 0.0
    %2274 = vmatprep.subr.mxu0 0.0
    %2275 = vmatpush1.msra.mxu0 0.0
    %2276 = vmatprep.subr.mxu0 0.0
    %2277 = vmatpush1.msra.mxu0 0.0
    %2278 = vmatprep.subr.mxu0 0.0
    %2279 = vmatpush1.msra.mxu0 0.0
    %2280 = vmatprep.subr.mxu0 0.0
    %2281 = vmatpush1.msra.mxu0 0.0
    %2282 = vmatprep.subr.mxu0 0.0
    %2283 = vmatpush1.msra.mxu0 0.0
    %2284 = vmatprep.subr.mxu0 0.0
    %2285 = vmatpush1.msra.mxu0 0.0
    %2286 = vmatprep.subr.mxu0 0.0
    %2287 = vmatpush1.msra.mxu0 0.0
    %2288 = vmatprep.subr.mxu0 0.0
    %2289 = vmatpush1.msra.mxu0 %v2172
    %2290 = vmatprep.subr.mxu0 0.0
    %2291 = vmatpush1.msra.mxu0 %v2171
    %2292 = vmatprep.subr.mxu0 0.0
    %2293 = vmatpush1.msra.mxu0 %v2170
    %2294 = vmatprep.subr.mxu0 0.0
    %2295 = vmatpush1.msra.mxu0 %v2169
    %2296 = vmatprep.subr.mxu0 0.0
    %2297 = vmatpush2.msra.mxu0 0.0
    %2298 = vmatprep.subr.mxu0 0.0
    %2299 = vmatpush2.msra.mxu0 0.0
    %2300 = vmatprep.subr.mxu0 0.0
    %2301 = vmatpush2.msra.mxu0 0.0
    %2302 = vmatprep.subr.mxu0 0.0
    %2303 = vmatpush2.msra.mxu0 0.0
    %2304 = vmatprep.subr.mxu0 0.0
    %2305 = vmatpush2.msra.mxu0 0.0
    %2306 = vmatprep.subr.mxu0 0.0
    %2307 = vmatpush2.msra.mxu0 0.0
    %2308 = vmatprep.subr.mxu0 0.0
    %2309 = vmatpush2.msra.mxu0 0.0
    %2310 = vmatprep.subr.mxu0 0.0
    %2311 = vmatpush2.msra.mxu0 0.0
    %2312 = vmatprep.subr.mxu0 0.0
    %2313 = vmatpush2.msra.mxu0 0.0
    %2314 = vmatprep.subr.mxu0 0.0
    %2315 = vmatpush2.msra.mxu0 0.0
    %2316 = vmatprep.subr.mxu0 0.0
    %2317 = vmatpush2.msra.mxu0 0.0
    %2318 = vmatprep.subr.mxu0 0.0
    %2319 = vmatpush2.msra.mxu0 0.0
    %2320 = vmatprep.subr.mxu0 0.0
    %2321 = vmatpush2.msra.mxu0 0.0
    %2322 = vmatprep.subr.mxu0 0.0
    %2323 = vmatpush2.msra.mxu0 0.0
    %2324 = vmatprep.subr.mxu0 0.0
    %2325 = vmatpush2.msra.mxu0 0.0
    %2326 = vmatprep.subr.mxu0 0.0
    %2327 = vmatpush2.msra.mxu0 0.0
    %2328 = vmatprep.mubr.f32.mxu0 0.0
    %2329 = vmatmul.mubr.f32.gmra.mxu0 %v2259
    %v2330 = vpop.f32.mrf.mxu0
    %v2331 = vadd.f32 %v2250, %v2330
    %v2332 = vpop.f32.mrf.mxu0
    %2333 = vmatprep.mubr.f32.mxu0 0.0
    %2334 = vmatmul.mubr.f32.gmra.mxu0 %v2262
    %v2335 = vpop.f32.mrf.mxu0
    %v2336 = vadd.f32 %v2255, %v2335
    %v2337 = vpop.f32.mrf.mxu0
    %2338 = vdwg.mxu0
    %v2339 = vld [vmem:[%s11] sm:$0x1]
    %v2341 = vlaneseq
    %v2342 = vshrl.u32 %v2341, 7
    %v2343 = vsub.s32 0, %v2342
    %v2344 = vrot.slane %v2339, %v2343
    %v2346 = vadd.f32 %v2331, %v2344
    %v2347 = vadd.f32 %v2336, %v2344
    %v2348 = vld [vmem:[%s12] sm:$0xff]
    %v2349 = vld [vmem:[%s12 + $0x8] sm:$0xff]
    %v2350 = vld [vmem:[%s12 + $0x10] sm:$0xff]
    %v2351 = vld [vmem:[%s12 + $0x18] sm:$0xff]
    %v2352 = vld [vmem:[%s13] sm:$0xff]
    %v2353 = vld [vmem:[%s13 + $0x8] sm:$0xff]
    %v2354 = vld [vmem:[%s13 + $0x10] sm:$0xff]
    %v2355 = vld [vmem:[%s13 + $0x18] sm:$0xff]
    %2356 = vmatprep.subr.mxu0 0.0
    %2357 = vmatpush1.msra.mxu0 0.0
    %2358 = vmatprep.subr.mxu0 0.0
    %2359 = vmatpush1.msra.mxu0 0.0
    %2360 = vmatprep.subr.mxu0 0.0
    %2361 = vmatpush1.msra.mxu0 0.0
    %2362 = vmatprep.subr.mxu0 0.0
    %2363 = vmatpush1.msra.mxu0 0.0
    %2364 = vmatprep.subr.mxu0 0.0
    %2365 = vmatpush1.msra.mxu0 0.0
    %2366 = vmatprep.subr.mxu0 0.0
    %2367 = vmatpush1.msra.mxu0 0.0
    %2368 = vmatprep.subr.mxu0 0.0
    %2369 = vmatpush1.msra.mxu0 0.0
    %2370 = vmatprep.subr.mxu0 0.0
    %2371 = vmatpush1.msra.mxu0 0.0
    %2372 = vmatprep.subr.mxu0 0.0
    %2373 = vmatpush1.msra.mxu0 0.0
    %2374 = vmatprep.subr.mxu0 0.0
    %2375 = vmatpush1.msra.mxu0 0.0
    %2376 = vmatprep.subr.mxu0 0.0
    %2377 = vmatpush1.msra.mxu0 0.0
    %2378 = vmatprep.subr.mxu0 0.0
    %2379 = vmatpush1.msra.mxu0 0.0
    %2380 = vmatprep.subr.mxu0 0.0
    %2381 = vmatpush1.msra.mxu0 %v2355
    %2382 = vmatprep.subr.mxu0 0.0
    %2383 = vmatpush1.msra.mxu0 %v2354
    %2384 = vmatprep.subr.mxu0 0.0
    %2385 = vmatpush1.msra.mxu0 %v2353
    %2386 = vmatprep.subr.mxu0 0.0
    %2387 = vmatpush1.msra.mxu0 %v2352
    %2388 = vmatprep.subr.mxu0 0.0
    %2389 = vmatpush2.msra.mxu0 0.0
    %2390 = vmatprep.subr.mxu0 0.0
    %2391 = vmatpush2.msra.mxu0 0.0
    %2392 = vmatprep.subr.mxu0 0.0
    %2393 = vmatpush2.msra.mxu0 0.0
    %2394 = vmatprep.subr.mxu0 0.0
    %2395 = vmatpush2.msra.mxu0 0.0
    %2396 = vmatprep.subr.mxu0 0.0
    %2397 = vmatpush2.msra.mxu0 0.0
    %2398 = vmatprep.subr.mxu0 0.0
    %2399 = vmatpush2.msra.mxu0 0.0
    %2400 = vmatprep.subr.mxu0 0.0
    %2401 = vmatpush2.msra.mxu0 0.0
    %2402 = vmatprep.subr.mxu0 0.0
    %2403 = vmatpush2.msra.mxu0 0.0
    %2404 = vmatprep.subr.mxu0 0.0
    %2405 = vmatpush2.msra.mxu0 0.0
    %2406 = vmatprep.subr.mxu0 0.0
    %2407 = vmatpush2.msra.mxu0 0.0
    %2408 = vmatprep.subr.mxu0 0.0
    %2409 = vmatpush2.msra.mxu0 0.0
    %2410 = vmatprep.subr.mxu0 0.0
    %2411 = vmatpush2.msra.mxu0 0.0
    %2412 = vmatprep.subr.mxu0 0.0
    %2413 = vmatpush2.msra.mxu0 0.0
    %2414 = vmatprep.subr.mxu0 0.0
    %2415 = vmatpush2.msra.mxu0 0.0
    %2416 = vmatprep.subr.mxu0 0.0
    %2417 = vmatpush2.msra.mxu0 0.0
    %2418 = vmatprep.subr.mxu0 0.0
    %2419 = vmatpush2.msra.mxu0 0.0
    %2420 = vmatprep.mubr.f32.mxu0 0.0
    %2421 = vmatmul.mubr.f32.gmra.mxu0 %v2178
    %v2422 = vpop.f32.mrf.mxu0
    %v2423 = vadd.f32 0.0, %v2422
    %v2424 = vpop.f32.mrf.mxu0
    %2425 = vmatprep.mubr.f32.mxu0 0.0
    %2426 = vmatmul.mubr.f32.gmra.mxu0 %v2181
    %v2427 = vpop.f32.mrf.mxu0
    %v2428 = vadd.f32 0.0, %v2427
    %v2429 = vpop.f32.mrf.mxu0
    %2430 = vdwg.mxu0
    %2431 = vmatprep.subr.mxu0 0.0
    %2432 = vmatpush1.msra.mxu0 0.0
    %2433 = vmatprep.subr.mxu0 0.0
    %2434 = vmatpush1.msra.mxu0 0.0
    %2435 = vmatprep.subr.mxu0 0.0
    %2436 = vmatpush1.msra.mxu0 0.0
    %2437 = vmatprep.subr.mxu0 0.0
    %2438 = vmatpush1.msra.mxu0 0.0
    %2439 = vmatprep.subr.mxu0 0.0
    %2440 = vmatpush1.msra.mxu0 0.0
    %2441 = vmatprep.subr.mxu0 0.0
    %2442 = vmatpush1.msra.mxu0 0.0
    %2443 = vmatprep.subr.mxu0 0.0
    %2444 = vmatpush1.msra.mxu0 0.0
    %2445 = vmatprep.subr.mxu0 0.0
    %2446 = vmatpush1.msra.mxu0 0.0
    %2447 = vmatprep.subr.mxu0 0.0
    %2448 = vmatpush1.msra.mxu0 0.0
    %2449 = vmatprep.subr.mxu0 0.0
    %2450 = vmatpush1.msra.mxu0 0.0
    %2451 = vmatprep.subr.mxu0 0.0
    %2452 = vmatpush1.msra.mxu0 0.0
    %2453 = vmatprep.subr.mxu0 0.0
    %2454 = vmatpush1.msra.mxu0 0.0
    %2455 = vmatprep.subr.mxu0 0.0
    %2456 = vmatpush1.msra.mxu0 %v2351
    %2457 = vmatprep.subr.mxu0 0.0
    %2458 = vmatpush1.msra.mxu0 %v2350
    %2459 = vmatprep.subr.mxu0 0.0
    %2460 = vmatpush1.msra.mxu0 %v2349
    %2461 = vmatprep.subr.mxu0 0.0
    %2462 = vmatpush1.msra.mxu0 %v2348
    %2463 = vmatprep.subr.mxu0 0.0
    %2464 = vmatpush2.msra.mxu0 0.0
    %2465 = vmatprep.subr.mxu0 0.0
    %2466 = vmatpush2.msra.mxu0 0.0
    %2467 = vmatprep.subr.mxu0 0.0
    %2468 = vmatpush2.msra.mxu0 0.0
    %2469 = vmatprep.subr.mxu0 0.0
    %2470 = vmatpush2.msra.mxu0 0.0
    %2471 = vmatprep.subr.mxu0 0.0
    %2472 = vmatpush2.msra.mxu0 0.0
    %2473 = vmatprep.subr.mxu0 0.0
    %2474 = vmatpush2.msra.mxu0 0.0
    %2475 = vmatprep.subr.mxu0 0.0
    %2476 = vmatpush2.msra.mxu0 0.0
    %2477 = vmatprep.subr.mxu0 0.0
    %2478 = vmatpush2.msra.mxu0 0.0
    %2479 = vmatprep.subr.mxu0 0.0
    %2480 = vmatpush2.msra.mxu0 0.0
    %2481 = vmatprep.subr.mxu0 0.0
    %2482 = vmatpush2.msra.mxu0 0.0
    %2483 = vmatprep.subr.mxu0 0.0
    %2484 = vmatpush2.msra.mxu0 0.0
    %2485 = vmatprep.subr.mxu0 0.0
    %2486 = vmatpush2.msra.mxu0 0.0
    %2487 = vmatprep.subr.mxu0 0.0
    %2488 = vmatpush2.msra.mxu0 0.0
    %2489 = vmatprep.subr.mxu0 0.0
    %2490 = vmatpush2.msra.mxu0 0.0
    %2491 = vmatprep.subr.mxu0 0.0
    %2492 = vmatpush2.msra.mxu0 0.0
    %2493 = vmatprep.subr.mxu0 0.0
    %2494 = vmatpush2.msra.mxu0 0.0
    %2495 = vmatprep.mubr.f32.mxu0 0.0
    %2496 = vmatmul.mubr.f32.gmra.mxu0 %v2259
    %v2497 = vpop.f32.mrf.mxu0
    %v2498 = vadd.f32 %v2423, %v2497
    %v2499 = vpop.f32.mrf.mxu0
    %2500 = vmatprep.mubr.f32.mxu0 0.0
    %2501 = vmatmul.mubr.f32.gmra.mxu0 %v2262
    %v2502 = vpop.f32.mrf.mxu0
    %v2503 = vadd.f32 %v2428, %v2502
    %v2504 = vpop.f32.mrf.mxu0
    %2505 = vdwg.mxu0
    %v2506 = vld [vmem:[#allocation13] sm:$0x1]
    %v2508 = vlaneseq
    %v2509 = vshrl.u32 %v2508, 7
    %v2510 = vsub.s32 0, %v2509
    %v2511 = vrot.slane %v2506, %v2510
    %v2513 = vadd.f32 %v2498, %v2511
    %v2514 = vadd.f32 %v2503, %v2511
    %v2515 = vld [vmem:[%s10] sm:$0xff]
    %v2516 = vld [vmem:[%s10 + $0x8] sm:$0xff]
    %v2517 = vld [vmem:[%s10 + $0x10] sm:$0xff]
    %v2518 = vld [vmem:[%s10 + $0x18] sm:$0xff]
    %v2519 = vld [vmem:[#allocation12] sm:$0xff]
    %v2520 = vld [vmem:[#allocation12 + $0x8] sm:$0xff]
    %v2521 = vld [vmem:[#allocation12 + $0x10] sm:$0xff]
    %v2522 = vld [vmem:[#allocation12 + $0x18] sm:$0xff]
    %2523 = vmatprep.subr.mxu0 0.0
    %2524 = vmatpush1.msra.mxu0 0.0
    %2525 = vmatprep.subr.mxu0 0.0
    %2526 = vmatpush1.msra.mxu0 0.0
    %2527 = vmatprep.subr.mxu0 0.0
    %2528 = vmatpush1.msra.mxu0 0.0
    %2529 = vmatprep.subr.mxu0 0.0
    %2530 = vmatpush1.msra.mxu0 0.0
    %2531 = vmatprep.subr.mxu0 0.0
    %2532 = vmatpush1.msra.mxu0 0.0
    %2533 = vmatprep.subr.mxu0 0.0
    %2534 = vmatpush1.msra.mxu0 0.0
    %2535 = vmatprep.subr.mxu0 0.0
    %2536 = vmatpush1.msra.mxu0 0.0
    %2537 = vmatprep.subr.mxu0 0.0
    %2538 = vmatpush1.msra.mxu0 0.0
    %2539 = vmatprep.subr.mxu0 0.0
    %2540 = vmatpush1.msra.mxu0 0.0
    %2541 = vmatprep.subr.mxu0 0.0
    %2542 = vmatpush1.msra.mxu0 0.0
    %2543 = vmatprep.subr.mxu0 0.0
    %2544 = vmatpush1.msra.mxu0 0.0
    %2545 = vmatprep.subr.mxu0 0.0
    %2546 = vmatpush1.msra.mxu0 0.0
    %2547 = vmatprep.subr.mxu0 0.0
    %2548 = vmatpush1.msra.mxu0 %v2518
    %2549 = vmatprep.subr.mxu0 0.0
    %2550 = vmatpush1.msra.mxu0 %v2517
    %2551 = vmatprep.subr.mxu0 0.0
    %2552 = vmatpush1.msra.mxu0 %v2516
    %2553 = vmatprep.subr.mxu0 0.0
    %2554 = vmatpush1.msra.mxu0 %v2515
    %2555 = vmatprep.subr.mxu0 0.0
    %2556 = vmatpush2.msra.mxu0 0.0
    %2557 = vmatprep.subr.mxu0 0.0
    %2558 = vmatpush2.msra.mxu0 0.0
    %2559 = vmatprep.subr.mxu0 0.0
    %2560 = vmatpush2.msra.mxu0 0.0
    %2561 = vmatprep.subr.mxu0 0.0
    %2562 = vmatpush2.msra.mxu0 0.0
    %2563 = vmatprep.subr.mxu0 0.0
    %2564 = vmatpush2.msra.mxu0 0.0
    %2565 = vmatprep.subr.mxu0 0.0
    %2566 = vmatpush2.msra.mxu0 0.0
    %2567 = vmatprep.subr.mxu0 0.0
    %2568 = vmatpush2.msra.mxu0 0.0
    %2569 = vmatprep.subr.mxu0 0.0
    %2570 = vmatpush2.msra.mxu0 0.0
    %2571 = vmatprep.subr.mxu0 0.0
    %2572 = vmatpush2.msra.mxu0 0.0
    %2573 = vmatprep.subr.mxu0 0.0
    %2574 = vmatpush2.msra.mxu0 0.0
    %2575 = vmatprep.subr.mxu0 0.0
    %2576 = vmatpush2.msra.mxu0 0.0
    %2577 = vmatprep.subr.mxu0 0.0
    %2578 = vmatpush2.msra.mxu0 0.0
    %2579 = vmatprep.subr.mxu0 0.0
    %2580 = vmatpush2.msra.mxu0 0.0
    %2581 = vmatprep.subr.mxu0 0.0
    %2582 = vmatpush2.msra.mxu0 0.0
    %2583 = vmatprep.subr.mxu0 0.0
    %2584 = vmatpush2.msra.mxu0 0.0
    %2585 = vmatprep.subr.mxu0 0.0
    %2586 = vmatpush2.msra.mxu0 0.0
    %2587 = vmatprep.mubr.f32.mxu0 0.0
    %2588 = vmatmul.mubr.f32.gmra.mxu0 %v420
    %v2589 = vpop.f32.mrf.mxu0
    %v2590 = vadd.f32 0.0, %v2589
    %v2591 = vpop.f32.mrf.mxu0
    %2592 = vdwg.mxu0
    %v2593 = vadd.f32 %v2346, %v2590
    %v2594 = vxor.u32 %v2593, 2147483648
    %v2595 = vmul.f32 %v2594, 1.442695
    %v2596 = vpow.pop %v2595
    %v2597 = vadd.f32 %v2596, 1.0
    %v2598 = vrcp.pop %v2597
    %v2599 = vmul.f32 1.0, %v2598
    %v2600 = vtanh.pop %v2593
    %v2601 = vmul.f32 %v2599, 0.0
    %2603 = vrot.lane.b32.xlu0 %v2600, 64
    %v2604 = vpop.permute.xlu0 %2603
    %v2606 = vmul.f32 %v2599, %v2604
    %2608 = vrot.lane.b32.xlu0 %v2606, 32
    %v2609 = vpop.permute.xlu0 %2608
    %v2611 = vadd.f32 %v2601, %v2609
    %v2612 = vtanh.pop %v2611
    %2614 = vrot.lane.b32.xlu0 %v2612, 64
    %v2615 = vpop.permute.xlu0 %2614
    %v2617 = vmul.f32 %v2599, %v2615
    %2618 = vmatprep.subr.mxu0 0.0
    %2619 = vmatpush1.msra.mxu0 0.0
    %2620 = vmatprep.subr.mxu0 0.0
    %2621 = vmatpush1.msra.mxu0 0.0
    %2622 = vmatprep.subr.mxu0 0.0
    %2623 = vmatpush1.msra.mxu0 0.0
    %2624 = vmatprep.subr.mxu0 0.0
    %2625 = vmatpush1.msra.mxu0 0.0
    %2626 = vmatprep.subr.mxu0 0.0
    %2627 = vmatpush1.msra.mxu0 0.0
    %2628 = vmatprep.subr.mxu0 0.0
    %2629 = vmatpush1.msra.mxu0 0.0
    %2630 = vmatprep.subr.mxu0 0.0
    %2631 = vmatpush1.msra.mxu0 0.0
    %2632 = vmatprep.subr.mxu0 0.0
    %2633 = vmatpush1.msra.mxu0 0.0
    %2634 = vmatprep.subr.mxu0 0.0
    %2635 = vmatpush1.msra.mxu0 0.0
    %2636 = vmatprep.subr.mxu0 0.0
    %2637 = vmatpush1.msra.mxu0 0.0
    %2638 = vmatprep.subr.mxu0 0.0
    %2639 = vmatpush1.msra.mxu0 0.0
    %2640 = vmatprep.subr.mxu0 0.0
    %2641 = vmatpush1.msra.mxu0 0.0
    %2642 = vmatprep.subr.mxu0 0.0
    %2643 = vmatpush1.msra.mxu0 %v2522
    %2644 = vmatprep.subr.mxu0 0.0
    %2645 = vmatpush1.msra.mxu0 %v2521
    %2646 = vmatprep.subr.mxu0 0.0
    %2647 = vmatpush1.msra.mxu0 %v2520
    %2648 = vmatprep.subr.mxu0 0.0
    %2649 = vmatpush1.msra.mxu0 %v2519
    %2650 = vmatprep.subr.mxu0 0.0
    %2651 = vmatpush2.msra.mxu0 0.0
    %2652 = vmatprep.subr.mxu0 0.0
    %2653 = vmatpush2.msra.mxu0 0.0
    %2654 = vmatprep.subr.mxu0 0.0
    %2655 = vmatpush2.msra.mxu0 0.0
    %2656 = vmatprep.subr.mxu0 0.0
    %2657 = vmatpush2.msra.mxu0 0.0
    %2658 = vmatprep.subr.mxu0 0.0
    %2659 = vmatpush2.msra.mxu0 0.0
    %2660 = vmatprep.subr.mxu0 0.0
    %2661 = vmatpush2.msra.mxu0 0.0
    %2662 = vmatprep.subr.mxu0 0.0
    %2663 = vmatpush2.msra.mxu0 0.0
    %2664 = vmatprep.subr.mxu0 0.0
    %2665 = vmatpush2.msra.mxu0 0.0
    %2666 = vmatprep.subr.mxu0 0.0
    %2667 = vmatpush2.msra.mxu0 0.0
    %2668 = vmatprep.subr.mxu0 0.0
    %2669 = vmatpush2.msra.mxu0 0.0
    %2670 = vmatprep.subr.mxu0 0.0
    %2671 = vmatpush2.msra.mxu0 0.0
    %2672 = vmatprep.subr.mxu0 0.0
    %2673 = vmatpush2.msra.mxu0 0.0
    %2674 = vmatprep.subr.mxu0 0.0
    %2675 = vmatpush2.msra.mxu0 0.0
    %2676 = vmatprep.subr.mxu0 0.0
    %2677 = vmatpush2.msra.mxu0 0.0
    %2678 = vmatprep.subr.mxu0 0.0
    %2679 = vmatpush2.msra.mxu0 0.0
    %2680 = vmatprep.subr.mxu0 0.0
    %2681 = vmatpush2.msra.mxu0 0.0
    %2682 = vmatprep.mubr.f32.mxu0 0.0
    %2683 = vmatmul.mubr.f32.gmra.mxu0 %v420
    %v2684 = vpop.f32.mrf.mxu0
    %v2685 = vadd.f32 0.0, %v2684
    %v2686 = vpop.f32.mrf.mxu0
    %2687 = vdwg.mxu0
    %v2689 = vrot.slane %v2685, 2
    %v2691 = vadd.f32 %v2514, %v2689
    %v2692 = vxor.u32 %v2691, 2147483648
    %v2693 = vmul.f32 %v2692, 1.442695
    %v2694 = vpow.pop %v2693
    %v2695 = vadd.f32 %v2694, 1.0
    %v2696 = vrcp.pop %v2695
    %v2697 = vmul.f32 1.0, %v2696
    %v2698 = vtanh.pop %v2691
    %v2699 = vmul.f32 %v2697, 0.0
    %2701 = vrot.lane.b32.xlu0 %v2698, 64
    %v2702 = vpop.permute.xlu0 %2701
    %v2704 = vmul.f32 %v2697, %v2702
    %2706 = vrot.lane.b32.xlu0 %v2704, 32
    %v2707 = vpop.permute.xlu0 %2706
    %v2709 = vadd.f32 %v2699, %v2707
    %v2710 = vtanh.pop %v2709
    %2712 = vrot.lane.b32.xlu0 %v2710, 64
    %v2713 = vpop.permute.xlu0 %2712
    %v2715 = vmul.f32 %v2697, %v2713
    %2717 = vrot.lane.b32.xlu0 %v2617, 32
    %v2718 = vpop.permute.xlu0 %2717
    %v2719 = vsel %vm154, %v2718, 0
    %2721 = vmatprep.subr.mxu0 0.0
    %2722 = vmatpush1.msra.mxu0 0.0
    %2723 = vmatprep.subr.mxu0 0.0
    %2724 = vmatpush1.msra.mxu0 0.0
    %2725 = vmatprep.subr.mxu0 0.0
    %2726 = vmatpush1.msra.mxu0 0.0
    %2727 = vmatprep.subr.mxu0 0.0
    %2728 = vmatpush1.msra.mxu0 0.0
    %2729 = vmatprep.subr.mxu0 0.0
    %2730 = vmatpush1.msra.mxu0 0.0
    %2731 = vmatprep.subr.mxu0 0.0
    %2732 = vmatpush1.msra.mxu0 0.0
    %2733 = vmatprep.subr.mxu0 0.0
    %2734 = vmatpush1.msra.mxu0 0.0
    %2735 = vmatprep.subr.mxu0 0.0
    %2736 = vmatpush1.msra.mxu0 0.0
    %2737 = vmatprep.subr.mxu0 0.0
    %2738 = vmatpush1.msra.mxu0 0.0
    %2739 = vmatprep.subr.mxu0 0.0
    %2740 = vmatpush1.msra.mxu0 0.0
    %2741 = vmatprep.subr.mxu0 0.0
    %2742 = vmatpush1.msra.mxu0 0.0
    %2743 = vmatprep.subr.mxu0 0.0
    %2744 = vmatpush1.msra.mxu0 0.0
    %2745 = vmatprep.subr.mxu0 0.0
    %2746 = vmatpush1.msra.mxu0 %v2518
    %2747 = vmatprep.subr.mxu0 0.0
    %2748 = vmatpush1.msra.mxu0 %v2517
    %2749 = vmatprep.subr.mxu0 0.0
    %2750 = vmatpush1.msra.mxu0 %v2516
    %2751 = vmatprep.subr.mxu0 0.0
    %2752 = vmatpush1.msra.mxu0 %v2515
    %2753 = vmatprep.subr.mxu0 0.0
    %2754 = vmatpush2.msra.mxu0 0.0
    %2755 = vmatprep.subr.mxu0 0.0
    %2756 = vmatpush2.msra.mxu0 0.0
    %2757 = vmatprep.subr.mxu0 0.0
    %2758 = vmatpush2.msra.mxu0 0.0
    %2759 = vmatprep.subr.mxu0 0.0
    %2760 = vmatpush2.msra.mxu0 0.0
    %2761 = vmatprep.subr.mxu0 0.0
    %2762 = vmatpush2.msra.mxu0 0.0
    %2763 = vmatprep.subr.mxu0 0.0
    %2764 = vmatpush2.msra.mxu0 0.0
    %2765 = vmatprep.subr.mxu0 0.0
    %2766 = vmatpush2.msra.mxu0 0.0
    %2767 = vmatprep.subr.mxu0 0.0
    %2768 = vmatpush2.msra.mxu0 0.0
    %2769 = vmatprep.subr.mxu0 0.0
    %2770 = vmatpush2.msra.mxu0 0.0
    %2771 = vmatprep.subr.mxu0 0.0
    %2772 = vmatpush2.msra.mxu0 0.0
    %2773 = vmatprep.subr.mxu0 0.0
    %2774 = vmatpush2.msra.mxu0 0.0
    %2775 = vmatprep.subr.mxu0 0.0
    %2776 = vmatpush2.msra.mxu0 0.0
    %2777 = vmatprep.subr.mxu0 0.0
    %2778 = vmatpush2.msra.mxu0 0.0
    %2779 = vmatprep.subr.mxu0 0.0
    %2780 = vmatpush2.msra.mxu0 0.0
    %2781 = vmatprep.subr.mxu0 0.0
    %2782 = vmatpush2.msra.mxu0 0.0
    %2783 = vmatprep.subr.mxu0 0.0
    %2784 = vmatpush2.msra.mxu0 0.0
    %2785 = vmatprep.mubr.f32.mxu0 0.0
    %2786 = vmatmul.mubr.f32.gmra.mxu0 %v2719
    %v2787 = vpop.f32.mrf.mxu0
    %v2788 = vadd.f32 0.0, %v2787
    %v2789 = vpop.f32.mrf.mxu0
    %2790 = vdwg.mxu0
    %v2792 = vrot.slane %v2788, 6
    %v2794 = vadd.f32 %v2346, %v2792
    %v2795 = vxor.u32 %v2794, 2147483648
    %v2796 = vmul.f32 %v2795, 1.442695
    %v2797 = vpow.pop %v2796
    %v2798 = vadd.f32 %v2797, 1.0
    %v2799 = vrcp.pop %v2798
    %v2800 = vmul.f32 1.0, %v2799
    %v2801 = vtanh.pop %v2794
    %v2803 = vrot.slane %v2611, 6
    %v2805 = vmul.f32 %v2800, %v2803
    %2807 = vrot.lane.b32.xlu0 %v2801, 64
    %v2808 = vpop.permute.xlu0 %2807
    %v2810 = vmul.f32 %v2800, %v2808
    %2812 = vrot.lane.b32.xlu0 %v2810, 32
    %v2813 = vpop.permute.xlu0 %2812
    %v2815 = vadd.f32 %v2805, %v2813
    %v2816 = vtanh.pop %v2815
    %2818 = vrot.lane.b32.xlu0 %v2816, 64
    %v2819 = vpop.permute.xlu0 %2818
    %v2821 = vmul.f32 %v2800, %v2819
    %v2823 = vrot.slane %v2715, 6
    %2824 = vrot.lane.b32.xlu0 %v2823, 32
    %v2825 = vpop.permute.xlu0 %2824
    %v2826 = vsel %vm154, %v2825, 0
    %2828 = vmatprep.subr.mxu0 0.0
    %2829 = vmatpush1.msra.mxu0 0.0
    %2830 = vmatprep.subr.mxu0 0.0
    %2831 = vmatpush1.msra.mxu0 0.0
    %2832 = vmatprep.subr.mxu0 0.0
    %2833 = vmatpush1.msra.mxu0 0.0
    %2834 = vmatprep.subr.mxu0 0.0
    %2835 = vmatpush1.msra.mxu0 0.0
    %2836 = vmatprep.subr.mxu0 0.0
    %2837 = vmatpush1.msra.mxu0 0.0
    %2838 = vmatprep.subr.mxu0 0.0
    %2839 = vmatpush1.msra.mxu0 0.0
    %2840 = vmatprep.subr.mxu0 0.0
    %2841 = vmatpush1.msra.mxu0 0.0
    %2842 = vmatprep.subr.mxu0 0.0
    %2843 = vmatpush1.msra.mxu0 0.0
    %2844 = vmatprep.subr.mxu0 0.0
    %2845 = vmatpush1.msra.mxu0 0.0
    %2846 = vmatprep.subr.mxu0 0.0
    %2847 = vmatpush1.msra.mxu0 0.0
    %2848 = vmatprep.subr.mxu0 0.0
    %2849 = vmatpush1.msra.mxu0 0.0
    %2850 = vmatprep.subr.mxu0 0.0
    %2851 = vmatpush1.msra.mxu0 0.0
    %2852 = vmatprep.subr.mxu0 0.0
    %2853 = vmatpush1.msra.mxu0 %v2522
    %2854 = vmatprep.subr.mxu0 0.0
    %2855 = vmatpush1.msra.mxu0 %v2521
    %2856 = vmatprep.subr.mxu0 0.0
    %2857 = vmatpush1.msra.mxu0 %v2520
    %2858 = vmatprep.subr.mxu0 0.0
    %2859 = vmatpush1.msra.mxu0 %v2519
    %2860 = vmatprep.subr.mxu0 0.0
    %2861 = vmatpush2.msra.mxu0 0.0
    %2862 = vmatprep.subr.mxu0 0.0
    %2863 = vmatpush2.msra.mxu0 0.0
    %2864 = vmatprep.subr.mxu0 0.0
    %2865 = vmatpush2.msra.mxu0 0.0
    %2866 = vmatprep.subr.mxu0 0.0
    %2867 = vmatpush2.msra.mxu0 0.0
    %2868 = vmatprep.subr.mxu0 0.0
    %2869 = vmatpush2.msra.mxu0 0.0
    %2870 = vmatprep.subr.mxu0 0.0
    %2871 = vmatpush2.msra.mxu0 0.0
    %2872 = vmatprep.subr.mxu0 0.0
    %2873 = vmatpush2.msra.mxu0 0.0
    %2874 = vmatprep.subr.mxu0 0.0
    %2875 = vmatpush2.msra.mxu0 0.0
    %2876 = vmatprep.subr.mxu0 0.0
    %2877 = vmatpush2.msra.mxu0 0.0
    %2878 = vmatprep.subr.mxu0 0.0
    %2879 = vmatpush2.msra.mxu0 0.0
    %2880 = vmatprep.subr.mxu0 0.0
    %2881 = vmatpush2.msra.mxu0 0.0
    %2882 = vmatprep.subr.mxu0 0.0
    %2883 = vmatpush2.msra.mxu0 0.0
    %2884 = vmatprep.subr.mxu0 0.0
    %2885 = vmatpush2.msra.mxu0 0.0
    %2886 = vmatprep.subr.mxu0 0.0
    %2887 = vmatpush2.msra.mxu0 0.0
    %2888 = vmatprep.subr.mxu0 0.0
    %2889 = vmatpush2.msra.mxu0 0.0
    %2890 = vmatprep.subr.mxu0 0.0
    %2891 = vmatpush2.msra.mxu0 0.0
    %2892 = vmatprep.mubr.f32.mxu0 0.0
    %2893 = vmatmul.mubr.f32.gmra.mxu0 %v2826
    %v2894 = vpop.f32.mrf.mxu0
    %v2895 = vadd.f32 0.0, %v2894
    %v2896 = vpop.f32.mrf.mxu0
    %2897 = vdwg.mxu0
    %v2899 = vrot.slane %v2895, 4
    %v2901 = vadd.f32 %v2514, %v2899
    %v2902 = vxor.u32 %v2901, 2147483648
    %v2903 = vmul.f32 %v2902, 1.442695
    %v2904 = vpow.pop %v2903
    %v2905 = vadd.f32 %v2904, 1.0
    %v2906 = vrcp.pop %v2905
    %v2907 = vmul.f32 1.0, %v2906
    %v2908 = vtanh.pop %v2901
    %v2910 = vrot.slane %v2709, 2
    %v2912 = vmul.f32 %v2907, %v2910
    %2914 = vrot.lane.b32.xlu0 %v2908, 64
    %v2915 = vpop.permute.xlu0 %2914
    %v2917 = vmul.f32 %v2907, %v2915
    %2919 = vrot.lane.b32.xlu0 %v2917, 32
    %v2920 = vpop.permute.xlu0 %2919
    %v2922 = vadd.f32 %v2912, %v2920
    %v2923 = vtanh.pop %v2922
    %2925 = vrot.lane.b32.xlu0 %v2923, 64
    %v2926 = vpop.permute.xlu0 %2925
    %v2928 = vmul.f32 %v2907, %v2926
    %v2930 = vrot.slane %v2821, 2
    %2931 = vrot.lane.b32.xlu0 %v2930, 32
    %v2932 = vpop.permute.xlu0 %2931
    %v2933 = vsel %vm154, %v2932, 0
    %2935 = vmatprep.subr.mxu0 0.0
    %2936 = vmatpush1.msra.mxu0 0.0
    %2937 = vmatprep.subr.mxu0 0.0
    %2938 = vmatpush1.msra.mxu0 0.0
    %2939 = vmatprep.subr.mxu0 0.0
    %2940 = vmatpush1.msra.mxu0 0.0
    %2941 = vmatprep.subr.mxu0 0.0
    %2942 = vmatpush1.msra.mxu0 0.0
    %2943 = vmatprep.subr.mxu0 0.0
    %2944 = vmatpush1.msra.mxu0 0.0
    %2945 = vmatprep.subr.mxu0 0.0
    %2946 = vmatpush1.msra.mxu0 0.0
    %2947 = vmatprep.subr.mxu0 0.0
    %2948 = vmatpush1.msra.mxu0 0.0
    %2949 = vmatprep.subr.mxu0 0.0
    %2950 = vmatpush1.msra.mxu0 0.0
    %2951 = vmatprep.subr.mxu0 0.0
    %2952 = vmatpush1.msra.mxu0 0.0
    %2953 = vmatprep.subr.mxu0 0.0
    %2954 = vmatpush1.msra.mxu0 0.0
    %2955 = vmatprep.subr.mxu0 0.0
    %2956 = vmatpush1.msra.mxu0 0.0
    %2957 = vmatprep.subr.mxu0 0.0
    %2958 = vmatpush1.msra.mxu0 0.0
    %2959 = vmatprep.subr.mxu0 0.0
    %2960 = vmatpush1.msra.mxu0 %v2518
    %2961 = vmatprep.subr.mxu0 0.0
    %2962 = vmatpush1.msra.mxu0 %v2517
    %2963 = vmatprep.subr.mxu0 0.0
    %2964 = vmatpush1.msra.mxu0 %v2516
    %2965 = vmatprep.subr.mxu0 0.0
    %2966 = vmatpush1.msra.mxu0 %v2515
    %2967 = vmatprep.subr.mxu0 0.0
    %2968 = vmatpush2.msra.mxu0 0.0
    %2969 = vmatprep.subr.mxu0 0.0
    %2970 = vmatpush2.msra.mxu0 0.0
    %2971 = vmatprep.subr.mxu0 0.0
    %2972 = vmatpush2.msra.mxu0 0.0
    %2973 = vmatprep.subr.mxu0 0.0
    %2974 = vmatpush2.msra.mxu0 0.0
    %2975 = vmatprep.subr.mxu0 0.0
    %2976 = vmatpush2.msra.mxu0 0.0
    %2977 = vmatprep.subr.mxu0 0.0
    %2978 = vmatpush2.msra.mxu0 0.0
    %2979 = vmatprep.subr.mxu0 0.0
    %2980 = vmatpush2.msra.mxu0 0.0
    %2981 = vmatprep.subr.mxu0 0.0
    %2982 = vmatpush2.msra.mxu0 0.0
    %2983 = vmatprep.subr.mxu0 0.0
    %2984 = vmatpush2.msra.mxu0 0.0
    %2985 = vmatprep.subr.mxu0 0.0
    %2986 = vmatpush2.msra.mxu0 0.0
    %2987 = vmatprep.subr.mxu0 0.0
    %2988 = vmatpush2.msra.mxu0 0.0
    %2989 = vmatprep.subr.mxu0 0.0
    %2990 = vmatpush2.msra.mxu0 0.0
    %2991 = vmatprep.subr.mxu0 0.0
    %2992 = vmatpush2.msra.mxu0 0.0
    %2993 = vmatprep.subr.mxu0 0.0
    %2994 = vmatpush2.msra.mxu0 0.0
    %2995 = vmatprep.subr.mxu0 0.0
    %2996 = vmatpush2.msra.mxu0 0.0
    %2997 = vmatprep.subr.mxu0 0.0
    %2998 = vmatpush2.msra.mxu0 0.0
    %2999 = vmatprep.mubr.f32.mxu0 0.0
    %3000 = vmatmul.mubr.f32.gmra.mxu0 %v2933
    %v3001 = vpop.f32.mrf.mxu0
    %v3002 = vadd.f32 0.0, %v3001
    %v3003 = vpop.f32.mrf.mxu0
    %3004 = vdwg.mxu0
    %v3006 = vrot.slane %v3002, 4
    %v3008 = vadd.f32 %v2346, %v3006
    %v3009 = vxor.u32 %v3008, 2147483648
    %v3010 = vmul.f32 %v3009, 1.442695
    %v3011 = vpow.pop %v3010
    %v3012 = vadd.f32 %v3011, 1.0
    %v3013 = vrcp.pop %v3012
    %v3014 = vmul.f32 1.0, %v3013
    %v3015 = vtanh.pop %v3008
    %v3017 = vrot.slane %v2815, 6
    %v3019 = vmul.f32 %v3014, %v3017
    %3021 = vrot.lane.b32.xlu0 %v3015, 64
    %v3022 = vpop.permute.xlu0 %3021
    %v3024 = vmul.f32 %v3014, %v3022
    %3026 = vrot.lane.b32.xlu0 %v3024, 32
    %v3027 = vpop.permute.xlu0 %3026
    %v3029 = vadd.f32 %v3019, %v3027
    %v3030 = vtanh.pop %v3029
    %3032 = vrot.lane.b32.xlu0 %v3030, 64
    %v3033 = vpop.permute.xlu0 %3032
    %v3035 = vmul.f32 %v3014, %v3033
    %v3037 = vrot.slane %v2928, 4
    %3038 = vrot.lane.b32.xlu0 %v3037, 32
    %v3039 = vpop.permute.xlu0 %3038
    %v3040 = vsel %vm154, %v3039, 0
    %3042 = vmatprep.subr.mxu0 0.0
    %3043 = vmatpush1.msra.mxu0 0.0
    %3044 = vmatprep.subr.mxu0 0.0
    %3045 = vmatpush1.msra.mxu0 0.0
    %3046 = vmatprep.subr.mxu0 0.0
    %3047 = vmatpush1.msra.mxu0 0.0
    %3048 = vmatprep.subr.mxu0 0.0
    %3049 = vmatpush1.msra.mxu0 0.0
    %3050 = vmatprep.subr.mxu0 0.0
    %3051 = vmatpush1.msra.mxu0 0.0
    %3052 = vmatprep.subr.mxu0 0.0
    %3053 = vmatpush1.msra.mxu0 0.0
    %3054 = vmatprep.subr.mxu0 0.0
    %3055 = vmatpush1.msra.mxu0 0.0
    %3056 = vmatprep.subr.mxu0 0.0
    %3057 = vmatpush1.msra.mxu0 0.0
    %3058 = vmatprep.subr.mxu0 0.0
    %3059 = vmatpush1.msra.mxu0 0.0
    %3060 = vmatprep.subr.mxu0 0.0
    %3061 = vmatpush1.msra.mxu0 0.0
    %3062 = vmatprep.subr.mxu0 0.0
    %3063 = vmatpush1.msra.mxu0 0.0
    %3064 = vmatprep.subr.mxu0 0.0
    %3065 = vmatpush1.msra.mxu0 0.0
    %3066 = vmatprep.subr.mxu0 0.0
    %3067 = vmatpush1.msra.mxu0 %v2522
    %3068 = vmatprep.subr.mxu0 0.0
    %3069 = vmatpush1.msra.mxu0 %v2521
    %3070 = vmatprep.subr.mxu0 0.0
    %3071 = vmatpush1.msra.mxu0 %v2520
    %3072 = vmatprep.subr.mxu0 0.0
    %3073 = vmatpush1.msra.mxu0 %v2519
    %3074 = vmatprep.subr.mxu0 0.0
    %3075 = vmatpush2.msra.mxu0 0.0
    %3076 = vmatprep.subr.mxu0 0.0
    %3077 = vmatpush2.msra.mxu0 0.0
    %3078 = vmatprep.subr.mxu0 0.0
    %3079 = vmatpush2.msra.mxu0 0.0
    %3080 = vmatprep.subr.mxu0 0.0
    %3081 = vmatpush2.msra.mxu0 0.0
    %3082 = vmatprep.subr.mxu0 0.0
    %3083 = vmatpush2.msra.mxu0 0.0
    %3084 = vmatprep.subr.mxu0 0.0
    %3085 = vmatpush2.msra.mxu0 0.0
    %3086 = vmatprep.subr.mxu0 0.0
    %3087 = vmatpush2.msra.mxu0 0.0
    %3088 = vmatprep.subr.mxu0 0.0
    %3089 = vmatpush2.msra.mxu0 0.0
    %3090 = vmatprep.subr.mxu0 0.0
    %3091 = vmatpush2.msra.mxu0 0.0
    %3092 = vmatprep.subr.mxu0 0.0
    %3093 = vmatpush2.msra.mxu0 0.0
    %3094 = vmatprep.subr.mxu0 0.0
    %3095 = vmatpush2.msra.mxu0 0.0
    %3096 = vmatprep.subr.mxu0 0.0
    %3097 = vmatpush2.msra.mxu0 0.0
    %3098 = vmatprep.subr.mxu0 0.0
    %3099 = vmatpush2.msra.mxu0 0.0
    %3100 = vmatprep.subr.mxu0 0.0
    %3101 = vmatpush2.msra.mxu0 0.0
    %3102 = vmatprep.subr.mxu0 0.0
    %3103 = vmatpush2.msra.mxu0 0.0
    %3104 = vmatprep.subr.mxu0 0.0
    %3105 = vmatpush2.msra.mxu0 0.0
    %3106 = vmatprep.mubr.f32.mxu0 0.0
    %3107 = vmatmul.mubr.f32.gmra.mxu0 %v3040
    %v3108 = vpop.f32.mrf.mxu0
    %v3109 = vadd.f32 0.0, %v3108
    %v3110 = vpop.f32.mrf.mxu0
    %3111 = vdwg.mxu0
    %v3113 = vrot.slane %v3109, 6
    %v3115 = vadd.f32 %v2514, %v3113
    %v3116 = vxor.u32 %v3115, 2147483648
    %v3117 = vmul.f32 %v3116, 1.442695
    %v3118 = vpow.pop %v3117
    %v3119 = vadd.f32 %v3118, 1.0
    %v3120 = vrcp.pop %v3119
    %v3121 = vmul.f32 1.0, %v3120
    %v3122 = vtanh.pop %v3115
    %v3124 = vrot.slane %v2922, 2
    %v3126 = vmul.f32 %v3121, %v3124
    %3128 = vrot.lane.b32.xlu0 %v3122, 64
    %v3129 = vpop.permute.xlu0 %3128
    %v3131 = vmul.f32 %v3121, %v3129
    %3133 = vrot.lane.b32.xlu0 %v3131, 32
    %v3134 = vpop.permute.xlu0 %3133
    %v3136 = vadd.f32 %v3126, %v3134
    %v3137 = vtanh.pop %v3136
    %3139 = vrot.lane.b32.xlu0 %v3137, 64
    %v3140 = vpop.permute.xlu0 %3139
    %v3142 = vmul.f32 %v3121, %v3140
    %v3144 = vrot.slane %v3035, 4
    %3145 = vrot.lane.b32.xlu0 %v3144, 32
    %v3146 = vpop.permute.xlu0 %3145
    %v3147 = vsel %vm154, %v3146, 0
    %3149 = vmatprep.subr.mxu0 0.0
    %3150 = vmatpush1.msra.mxu0 0.0
    %3151 = vmatprep.subr.mxu0 0.0
    %3152 = vmatpush1.msra.mxu0 0.0
    %3153 = vmatprep.subr.mxu0 0.0
    %3154 = vmatpush1.msra.mxu0 0.0
    %3155 = vmatprep.subr.mxu0 0.0
    %3156 = vmatpush1.msra.mxu0 0.0
    %3157 = vmatprep.subr.mxu0 0.0
    %3158 = vmatpush1.msra.mxu0 0.0
    %3159 = vmatprep.subr.mxu0 0.0
    %3160 = vmatpush1.msra.mxu0 0.0
    %3161 = vmatprep.subr.mxu0 0.0
    %3162 = vmatpush1.msra.mxu0 0.0
    %3163 = vmatprep.subr.mxu0 0.0
    %3164 = vmatpush1.msra.mxu0 0.0
    %3165 = vmatprep.subr.mxu0 0.0
    %3166 = vmatpush1.msra.mxu0 0.0
    %3167 = vmatprep.subr.mxu0 0.0
    %3168 = vmatpush1.msra.mxu0 0.0
    %3169 = vmatprep.subr.mxu0 0.0
    %3170 = vmatpush1.msra.mxu0 0.0
    %3171 = vmatprep.subr.mxu0 0.0
    %3172 = vmatpush1.msra.mxu0 0.0
    %3173 = vmatprep.subr.mxu0 0.0
    %3174 = vmatpush1.msra.mxu0 %v2518
    %3175 = vmatprep.subr.mxu0 0.0
    %3176 = vmatpush1.msra.mxu0 %v2517
    %3177 = vmatprep.subr.mxu0 0.0
    %3178 = vmatpush1.msra.mxu0 %v2516
    %3179 = vmatprep.subr.mxu0 0.0
    %3180 = vmatpush1.msra.mxu0 %v2515
    %3181 = vmatprep.subr.mxu0 0.0
    %3182 = vmatpush2.msra.mxu0 0.0
    %3183 = vmatprep.subr.mxu0 0.0
    %3184 = vmatpush2.msra.mxu0 0.0
    %3185 = vmatprep.subr.mxu0 0.0
    %3186 = vmatpush2.msra.mxu0 0.0
    %3187 = vmatprep.subr.mxu0 0.0
    %3188 = vmatpush2.msra.mxu0 0.0
    %3189 = vmatprep.subr.mxu0 0.0
    %3190 = vmatpush2.msra.mxu0 0.0
    %3191 = vmatprep.subr.mxu0 0.0
    %3192 = vmatpush2.msra.mxu0 0.0
    %3193 = vmatprep.subr.mxu0 0.0
    %3194 = vmatpush2.msra.mxu0 0.0
    %3195 = vmatprep.subr.mxu0 0.0
    %3196 = vmatpush2.msra.mxu0 0.0
    %3197 = vmatprep.subr.mxu0 0.0
    %3198 = vmatpush2.msra.mxu0 0.0
    %3199 = vmatprep.subr.mxu0 0.0
    %3200 = vmatpush2.msra.mxu0 0.0
    %3201 = vmatprep.subr.mxu0 0.0
    %3202 = vmatpush2.msra.mxu0 0.0
    %3203 = vmatprep.subr.mxu0 0.0
    %3204 = vmatpush2.msra.mxu0 0.0
    %3205 = vmatprep.subr.mxu0 0.0
    %3206 = vmatpush2.msra.mxu0 0.0
    %3207 = vmatprep.subr.mxu0 0.0
    %3208 = vmatpush2.msra.mxu0 0.0
    %3209 = vmatprep.subr.mxu0 0.0
    %3210 = vmatpush2.msra.mxu0 0.0
    %3211 = vmatprep.subr.mxu0 0.0
    %3212 = vmatpush2.msra.mxu0 0.0
    %3213 = vmatprep.mubr.f32.mxu0 0.0
    %3214 = vmatmul.mubr.f32.gmra.mxu0 %v3147
    %v3215 = vpop.f32.mrf.mxu0
    %v3216 = vadd.f32 0.0, %v3215
    %v3217 = vpop.f32.mrf.mxu0
    %3218 = vdwg.mxu0
    %v3220 = vrot.slane %v3216, 2
    %v3222 = vadd.f32 %v2346, %v3220
    %v3223 = vxor.u32 %v3222, 2147483648
    %v3224 = vmul.f32 %v3223, 1.442695
    %v3225 = vpow.pop %v3224
    %v3226 = vadd.f32 %v3225, 1.0
    %v3227 = vrcp.pop %v3226
    %v3228 = vmul.f32 1.0, %v3227
    %v3229 = vtanh.pop %v3222
    %v3231 = vrot.slane %v3029, 6
    %v3233 = vmul.f32 %v3228, %v3231
    %3235 = vrot.lane.b32.xlu0 %v3229, 64
    %v3236 = vpop.permute.xlu0 %3235
    %v3238 = vmul.f32 %v3228, %v3236
    %3240 = vrot.lane.b32.xlu0 %v3238, 32
    %v3241 = vpop.permute.xlu0 %3240
    %v3243 = vadd.f32 %v3233, %v3241
    %v3244 = vtanh.pop %v3243
    %3246 = vrot.lane.b32.xlu0 %v3244, 64
    %v3247 = vpop.permute.xlu0 %3246
    %v3249 = vmul.f32 %v3228, %v3247
    %v3251 = vrot.slane %v3142, 2
    %3252 = vrot.lane.b32.xlu0 %v3251, 32
    %v3253 = vpop.permute.xlu0 %3252
    %v3254 = vsel %vm154, %v3253, 0
    %3256 = vmatprep.subr.mxu0 0.0
    %3257 = vmatpush1.msra.mxu0 0.0
    %3258 = vmatprep.subr.mxu0 0.0
    %3259 = vmatpush1.msra.mxu0 0.0
    %3260 = vmatprep.subr.mxu0 0.0
    %3261 = vmatpush1.msra.mxu0 0.0
    %3262 = vmatprep.subr.mxu0 0.0
    %3263 = vmatpush1.msra.mxu0 0.0
    %3264 = vmatprep.subr.mxu0 0.0
    %3265 = vmatpush1.msra.mxu0 0.0
    %3266 = vmatprep.subr.mxu0 0.0
    %3267 = vmatpush1.msra.mxu0 0.0
    %3268 = vmatprep.subr.mxu0 0.0
    %3269 = vmatpush1.msra.mxu0 0.0
    %3270 = vmatprep.subr.mxu0 0.0
    %3271 = vmatpush1.msra.mxu0 0.0
    %3272 = vmatprep.subr.mxu0 0.0
    %3273 = vmatpush1.msra.mxu0 0.0
    %3274 = vmatprep.subr.mxu0 0.0
    %3275 = vmatpush1.msra.mxu0 0.0
    %3276 = vmatprep.subr.mxu0 0.0
    %3277 = vmatpush1.msra.mxu0 0.0
    %3278 = vmatprep.subr.mxu0 0.0
    %3279 = vmatpush1.msra.mxu0 0.0
    %3280 = vmatprep.subr.mxu0 0.0
    %3281 = vmatpush1.msra.mxu0 %v2522
    %3282 = vmatprep.subr.mxu0 0.0
    %3283 = vmatpush1.msra.mxu0 %v2521
    %3284 = vmatprep.subr.mxu0 0.0
    %3285 = vmatpush1.msra.mxu0 %v2520
    %3286 = vmatprep.subr.mxu0 0.0
    %3287 = vmatpush1.msra.mxu0 %v2519
    %3288 = vmatprep.subr.mxu0 0.0
    %3289 = vmatpush2.msra.mxu0 0.0
    %3290 = vmatprep.subr.mxu0 0.0
    %3291 = vmatpush2.msra.mxu0 0.0
    %3292 = vmatprep.subr.mxu0 0.0
    %3293 = vmatpush2.msra.mxu0 0.0
    %3294 = vmatprep.subr.mxu0 0.0
    %3295 = vmatpush2.msra.mxu0 0.0
    %3296 = vmatprep.subr.mxu0 0.0
    %3297 = vmatpush2.msra.mxu0 0.0
    %3298 = vmatprep.subr.mxu0 0.0
    %3299 = vmatpush2.msra.mxu0 0.0
    %3300 = vmatprep.subr.mxu0 0.0
    %3301 = vmatpush2.msra.mxu0 0.0
    %3302 = vmatprep.subr.mxu0 0.0
    %3303 = vmatpush2.msra.mxu0 0.0
    %3304 = vmatprep.subr.mxu0 0.0
    %3305 = vmatpush2.msra.mxu0 0.0
    %3306 = vmatprep.subr.mxu0 0.0
    %3307 = vmatpush2.msra.mxu0 0.0
    %3308 = vmatprep.subr.mxu0 0.0
    %3309 = vmatpush2.msra.mxu0 0.0
    %3310 = vmatprep.subr.mxu0 0.0
    %3311 = vmatpush2.msra.mxu0 0.0
    %3312 = vmatprep.subr.mxu0 0.0
    %3313 = vmatpush2.msra.mxu0 0.0
    %3314 = vmatprep.subr.mxu0 0.0
    %3315 = vmatpush2.msra.mxu0 0.0
    %3316 = vmatprep.subr.mxu0 0.0
    %3317 = vmatpush2.msra.mxu0 0.0
    %3318 = vmatprep.subr.mxu0 0.0
    %3319 = vmatpush2.msra.mxu0 0.0
    %3320 = vmatprep.mubr.f32.mxu0 0.0
    %3321 = vmatmul.mubr.f32.gmra.mxu0 %v3254
    %v3322 = vpop.f32.mrf.mxu0
    %v3323 = vadd.f32 0.0, %v3322
    %v3324 = vpop.f32.mrf.mxu0
    %3325 = vdwg.mxu0
    %v3326 = vadd.f32 %v2514, %v3323
    %v3327 = vxor.u32 %v3326, 2147483648
    %v3328 = vmul.f32 %v3327, 1.442695
    %v3329 = vpow.pop %v3328
    %v3330 = vadd.f32 %v3329, 1.0
    %v3331 = vrcp.pop %v3330
    %v3332 = vmul.f32 1.0, %v3331
    %v3333 = vtanh.pop %v3326
    %v3335 = vrot.slane %v3136, 2
    %v3337 = vmul.f32 %v3332, %v3335
    %3339 = vrot.lane.b32.xlu0 %v3333, 64
    %v3340 = vpop.permute.xlu0 %3339
    %v3342 = vmul.f32 %v3332, %v3340
    %3344 = vrot.lane.b32.xlu0 %v3342, 32
    %v3345 = vpop.permute.xlu0 %3344
    %v3347 = vadd.f32 %v3337, %v3345
    %v3348 = vtanh.pop %v3347
    %3350 = vrot.lane.b32.xlu0 %v3348, 64
    %v3351 = vpop.permute.xlu0 %3350
    %v3353 = vmul.f32 %v3332, %v3351
    %v3355 = vrot.slane %v3249, 6
    %3356 = vrot.lane.b32.xlu0 %v3355, 32
    %v3357 = vpop.permute.xlu0 %3356
    %v3358 = vsel %vm154, %v3357, 0
    %3360 = vmatprep.subr.mxu0 0.0
    %3361 = vmatpush1.msra.mxu0 0.0
    %3362 = vmatprep.subr.mxu0 0.0
    %3363 = vmatpush1.msra.mxu0 0.0
    %3364 = vmatprep.subr.mxu0 0.0
    %3365 = vmatpush1.msra.mxu0 0.0
    %3366 = vmatprep.subr.mxu0 0.0
    %3367 = vmatpush1.msra.mxu0 0.0
    %3368 = vmatprep.subr.mxu0 0.0
    %3369 = vmatpush1.msra.mxu0 0.0
    %3370 = vmatprep.subr.mxu0 0.0
    %3371 = vmatpush1.msra.mxu0 0.0
    %3372 = vmatprep.subr.mxu0 0.0
    %3373 = vmatpush1.msra.mxu0 0.0
    %3374 = vmatprep.subr.mxu0 0.0
    %3375 = vmatpush1.msra.mxu0 0.0
    %3376 = vmatprep.subr.mxu0 0.0
    %3377 = vmatpush1.msra.mxu0 0.0
    %3378 = vmatprep.subr.mxu0 0.0
    %3379 = vmatpush1.msra.mxu0 0.0
    %3380 = vmatprep.subr.mxu0 0.0
    %3381 = vmatpush1.msra.mxu0 0.0
    %3382 = vmatprep.subr.mxu0 0.0
    %3383 = vmatpush1.msra.mxu0 0.0
    %3384 = vmatprep.subr.mxu0 0.0
    %3385 = vmatpush1.msra.mxu0 %v2518
    %3386 = vmatprep.subr.mxu0 0.0
    %3387 = vmatpush1.msra.mxu0 %v2517
    %3388 = vmatprep.subr.mxu0 0.0
    %3389 = vmatpush1.msra.mxu0 %v2516
    %3390 = vmatprep.subr.mxu0 0.0
    %3391 = vmatpush1.msra.mxu0 %v2515
    %3392 = vmatprep.subr.mxu0 0.0
    %3393 = vmatpush2.msra.mxu0 0.0
    %3394 = vmatprep.subr.mxu0 0.0
    %3395 = vmatpush2.msra.mxu0 0.0
    %3396 = vmatprep.subr.mxu0 0.0
    %3397 = vmatpush2.msra.mxu0 0.0
    %3398 = vmatprep.subr.mxu0 0.0
    %3399 = vmatpush2.msra.mxu0 0.0
    %3400 = vmatprep.subr.mxu0 0.0
    %3401 = vmatpush2.msra.mxu0 0.0
    %3402 = vmatprep.subr.mxu0 0.0
    %3403 = vmatpush2.msra.mxu0 0.0
    %3404 = vmatprep.subr.mxu0 0.0
    %3405 = vmatpush2.msra.mxu0 0.0
    %3406 = vmatprep.subr.mxu0 0.0
    %3407 = vmatpush2.msra.mxu0 0.0
    %3408 = vmatprep.subr.mxu0 0.0
    %3409 = vmatpush2.msra.mxu0 0.0
    %3410 = vmatprep.subr.mxu0 0.0
    %3411 = vmatpush2.msra.mxu0 0.0
    %3412 = vmatprep.subr.mxu0 0.0
    %3413 = vmatpush2.msra.mxu0 0.0
    %3414 = vmatprep.subr.mxu0 0.0
    %3415 = vmatpush2.msra.mxu0 0.0
    %3416 = vmatprep.subr.mxu0 0.0
    %3417 = vmatpush2.msra.mxu0 0.0
    %3418 = vmatprep.subr.mxu0 0.0
    %3419 = vmatpush2.msra.mxu0 0.0
    %3420 = vmatprep.subr.mxu0 0.0
    %3421 = vmatpush2.msra.mxu0 0.0
    %3422 = vmatprep.subr.mxu0 0.0
    %3423 = vmatpush2.msra.mxu0 0.0
    %3424 = vmatprep.mubr.f32.mxu0 0.0
    %3425 = vmatmul.mubr.f32.gmra.mxu0 %v3358
    %v3426 = vpop.f32.mrf.mxu0
    %v3427 = vadd.f32 0.0, %v3426
    %v3428 = vpop.f32.mrf.mxu0
    %3429 = vdwg.mxu0
    %v3430 = vadd.f32 %v2347, %v3427
    %v3431 = vxor.u32 %v3430, 2147483648
    %v3432 = vmul.f32 %v3431, 1.442695
    %v3433 = vpow.pop %v3432
    %v3434 = vadd.f32 %v3433, 1.0
    %v3435 = vrcp.pop %v3434
    %v3436 = vmul.f32 1.0, %v3435
    %v3437 = vtanh.pop %v3430
    %v3439 = vrot.slane %v3243, 6
    %v3441 = vmul.f32 %v3436, %v3439
    %3443 = vrot.lane.b32.xlu0 %v3437, 64
    %v3444 = vpop.permute.xlu0 %3443
    %v3446 = vmul.f32 %v3436, %v3444
    %3448 = vrot.lane.b32.xlu0 %v3446, 32
    %v3449 = vpop.permute.xlu0 %3448
    %v3451 = vadd.f32 %v3441, %v3449
    %v3452 = vtanh.pop %v3451
    %3454 = vrot.lane.b32.xlu0 %v3452, 64
    %v3455 = vpop.permute.xlu0 %3454
    %v3457 = vmul.f32 %v3436, %v3455
    %3459 = vrot.lane.b32.xlu0 %v3353, 32
    %v3460 = vpop.permute.xlu0 %3459
    %v3461 = vsel %vm154, %v3460, 0
    %3463 = vmatprep.subr.mxu0 0.0
    %3464 = vmatpush1.msra.mxu0 0.0
    %3465 = vmatprep.subr.mxu0 0.0
    %3466 = vmatpush1.msra.mxu0 0.0
    %3467 = vmatprep.subr.mxu0 0.0
    %3468 = vmatpush1.msra.mxu0 0.0
    %3469 = vmatprep.subr.mxu0 0.0
    %3470 = vmatpush1.msra.mxu0 0.0
    %3471 = vmatprep.subr.mxu0 0.0
    %3472 = vmatpush1.msra.mxu0 0.0
    %3473 = vmatprep.subr.mxu0 0.0
    %3474 = vmatpush1.msra.mxu0 0.0
    %3475 = vmatprep.subr.mxu0 0.0
    %3476 = vmatpush1.msra.mxu0 0.0
    %3477 = vmatprep.subr.mxu0 0.0
    %3478 = vmatpush1.msra.mxu0 0.0
    %3479 = vmatprep.subr.mxu0 0.0
    %3480 = vmatpush1.msra.mxu0 0.0
    %3481 = vmatprep.subr.mxu0 0.0
    %3482 = vmatpush1.msra.mxu0 0.0
    %3483 = vmatprep.subr.mxu0 0.0
    %3484 = vmatpush1.msra.mxu0 0.0
    %3485 = vmatprep.subr.mxu0 0.0
    %3486 = vmatpush1.msra.mxu0 0.0
    %3487 = vmatprep.subr.mxu0 0.0
    %3488 = vmatpush1.msra.mxu0 %v2522
    %3489 = vmatprep.subr.mxu0 0.0
    %3490 = vmatpush1.msra.mxu0 %v2521
    %3491 = vmatprep.subr.mxu0 0.0
    %3492 = vmatpush1.msra.mxu0 %v2520
    %3493 = vmatprep.subr.mxu0 0.0
    %3494 = vmatpush1.msra.mxu0 %v2519
    %3495 = vmatprep.subr.mxu0 0.0
    %3496 = vmatpush2.msra.mxu0 0.0
    %3497 = vmatprep.subr.mxu0 0.0
    %3498 = vmatpush2.msra.mxu0 0.0
    %3499 = vmatprep.subr.mxu0 0.0
    %3500 = vmatpush2.msra.mxu0 0.0
    %3501 = vmatprep.subr.mxu0 0.0
    %3502 = vmatpush2.msra.mxu0 0.0
    %3503 = vmatprep.subr.mxu0 0.0
    %3504 = vmatpush2.msra.mxu0 0.0
    %3505 = vmatprep.subr.mxu0 0.0
    %3506 = vmatpush2.msra.mxu0 0.0
    %3507 = vmatprep.subr.mxu0 0.0
    %3508 = vmatpush2.msra.mxu0 0.0
    %3509 = vmatprep.subr.mxu0 0.0
    %3510 = vmatpush2.msra.mxu0 0.0
    %3511 = vmatprep.subr.mxu0 0.0
    %3512 = vmatpush2.msra.mxu0 0.0
    %3513 = vmatprep.subr.mxu0 0.0
    %3514 = vmatpush2.msra.mxu0 0.0
    %3515 = vmatprep.subr.mxu0 0.0
    %3516 = vmatpush2.msra.mxu0 0.0
    %3517 = vmatprep.subr.mxu0 0.0
    %3518 = vmatpush2.msra.mxu0 0.0
    %3519 = vmatprep.subr.mxu0 0.0
    %3520 = vmatpush2.msra.mxu0 0.0
    %3521 = vmatprep.subr.mxu0 0.0
    %3522 = vmatpush2.msra.mxu0 0.0
    %3523 = vmatprep.subr.mxu0 0.0
    %3524 = vmatpush2.msra.mxu0 0.0
    %3525 = vmatprep.subr.mxu0 0.0
    %3526 = vmatpush2.msra.mxu0 0.0
    %3527 = vmatprep.mubr.f32.mxu0 0.0
    %3528 = vmatmul.mubr.f32.gmra.mxu0 %v3461
    %v3529 = vpop.f32.mrf.mxu0
    %v3530 = vadd.f32 0.0, %v3529
    %v3531 = vpop.f32.mrf.mxu0
    %3532 = vdwg.mxu0
    %v3534 = vrot.slane %v3530, 2
    %v3536 = vadd.f32 %v2513, %v3534
    %v3537 = vxor.u32 %v3536, 2147483648
    %v3538 = vmul.f32 %v3537, 1.442695
    %v3539 = vpow.pop %v3538
    %v3540 = vadd.f32 %v3539, 1.0
    %v3541 = vrcp.pop %v3540
    %v3542 = vmul.f32 1.0, %v3541
    %v3543 = vtanh.pop %v3536
    %v3545 = vrot.slane %v3347, 2
    %v3547 = vmul.f32 %v3542, %v3545
    %3549 = vrot.lane.b32.xlu0 %v3543, 64
    %v3550 = vpop.permute.xlu0 %3549
    %v3552 = vmul.f32 %v3542, %v3550
    %3554 = vrot.lane.b32.xlu0 %v3552, 32
    %v3555 = vpop.permute.xlu0 %3554
    %v3557 = vadd.f32 %v3547, %v3555
    %v3558 = vtanh.pop %v3557
    %3560 = vrot.lane.b32.xlu0 %v3558, 64
    %v3561 = vpop.permute.xlu0 %3560
    %v3563 = vmul.f32 %v3542, %v3561
    %3565 = vrot.lane.b32.xlu0 %v3457, 32
    %v3566 = vpop.permute.xlu0 %3565
    %v3567 = vsel %vm154, %v3566, 0
    %3569 = vmatprep.subr.mxu0 0.0
    %3570 = vmatpush1.msra.mxu0 0.0
    %3571 = vmatprep.subr.mxu0 0.0
    %3572 = vmatpush1.msra.mxu0 0.0
    %3573 = vmatprep.subr.mxu0 0.0
    %3574 = vmatpush1.msra.mxu0 0.0
    %3575 = vmatprep.subr.mxu0 0.0
    %3576 = vmatpush1.msra.mxu0 0.0
    %3577 = vmatprep.subr.mxu0 0.0
    %3578 = vmatpush1.msra.mxu0 0.0
    %3579 = vmatprep.subr.mxu0 0.0
    %3580 = vmatpush1.msra.mxu0 0.0
    %3581 = vmatprep.subr.mxu0 0.0
    %3582 = vmatpush1.msra.mxu0 0.0
    %3583 = vmatprep.subr.mxu0 0.0
    %3584 = vmatpush1.msra.mxu0 0.0
    %3585 = vmatprep.subr.mxu0 0.0
    %3586 = vmatpush1.msra.mxu0 0.0
    %3587 = vmatprep.subr.mxu0 0.0
    %3588 = vmatpush1.msra.mxu0 0.0
    %3589 = vmatprep.subr.mxu0 0.0
    %3590 = vmatpush1.msra.mxu0 0.0
    %3591 = vmatprep.subr.mxu0 0.0
    %3592 = vmatpush1.msra.mxu0 0.0
    %3593 = vmatprep.subr.mxu0 0.0
    %3594 = vmatpush1.msra.mxu0 %v2518
    %3595 = vmatprep.subr.mxu0 0.0
    %3596 = vmatpush1.msra.mxu0 %v2517
    %3597 = vmatprep.subr.mxu0 0.0
    %3598 = vmatpush1.msra.mxu0 %v2516
    %3599 = vmatprep.subr.mxu0 0.0
    %3600 = vmatpush1.msra.mxu0 %v2515
    %3601 = vmatprep.subr.mxu0 0.0
    %3602 = vmatpush2.msra.mxu0 0.0
    %3603 = vmatprep.subr.mxu0 0.0
    %3604 = vmatpush2.msra.mxu0 0.0
    %3605 = vmatprep.subr.mxu0 0.0
    %3606 = vmatpush2.msra.mxu0 0.0
    %3607 = vmatprep.subr.mxu0 0.0
    %3608 = vmatpush2.msra.mxu0 0.0
    %3609 = vmatprep.subr.mxu0 0.0
    %3610 = vmatpush2.msra.mxu0 0.0
    %3611 = vmatprep.subr.mxu0 0.0
    %3612 = vmatpush2.msra.mxu0 0.0
    %3613 = vmatprep.subr.mxu0 0.0
    %3614 = vmatpush2.msra.mxu0 0.0
    %3615 = vmatprep.subr.mxu0 0.0
    %3616 = vmatpush2.msra.mxu0 0.0
    %3617 = vmatprep.subr.mxu0 0.0
    %3618 = vmatpush2.msra.mxu0 0.0
    %3619 = vmatprep.subr.mxu0 0.0
    %3620 = vmatpush2.msra.mxu0 0.0
    %3621 = vmatprep.subr.mxu0 0.0
    %3622 = vmatpush2.msra.mxu0 0.0
    %3623 = vmatprep.subr.mxu0 0.0
    %3624 = vmatpush2.msra.mxu0 0.0
    %3625 = vmatprep.subr.mxu0 0.0
    %3626 = vmatpush2.msra.mxu0 0.0
    %3627 = vmatprep.subr.mxu0 0.0
    %3628 = vmatpush2.msra.mxu0 0.0
    %3629 = vmatprep.subr.mxu0 0.0
    %3630 = vmatpush2.msra.mxu0 0.0
    %3631 = vmatprep.subr.mxu0 0.0
    %3632 = vmatpush2.msra.mxu0 0.0
    %3633 = vmatprep.mubr.f32.mxu0 0.0
    %3634 = vmatmul.mubr.f32.gmra.mxu0 %v3567
    %v3635 = vpop.f32.mrf.mxu0
    %v3636 = vadd.f32 0.0, %v3635
    %v3637 = vpop.f32.mrf.mxu0
    %3638 = vdwg.mxu0
    %v3640 = vrot.slane %v3636, 6
    %v3642 = vadd.f32 %v2347, %v3640
    %v3643 = vxor.u32 %v3642, 2147483648
    %v3644 = vmul.f32 %v3643, 1.442695
    %v3645 = vpow.pop %v3644
    %v3646 = vadd.f32 %v3645, 1.0
    %v3647 = vrcp.pop %v3646
    %v3648 = vmul.f32 1.0, %v3647
    %v3649 = vtanh.pop %v3642
    %v3651 = vrot.slane %v3451, 6
    %v3653 = vmul.f32 %v3648, %v3651
    %3655 = vrot.lane.b32.xlu0 %v3649, 64
    %v3656 = vpop.permute.xlu0 %3655
    %v3658 = vmul.f32 %v3648, %v3656
    %3660 = vrot.lane.b32.xlu0 %v3658, 32
    %v3661 = vpop.permute.xlu0 %3660
    %v3663 = vadd.f32 %v3653, %v3661
    %v3664 = vtanh.pop %v3663
    %3666 = vrot.lane.b32.xlu0 %v3664, 64
    %v3667 = vpop.permute.xlu0 %3666
    %v3669 = vmul.f32 %v3648, %v3667
    %v3671 = vrot.slane %v3563, 6
    %3672 = vrot.lane.b32.xlu0 %v3671, 32
    %v3673 = vpop.permute.xlu0 %3672
    %v3674 = vsel %vm154, %v3673, 0
    %3676 = vmatprep.subr.mxu0 0.0
    %3677 = vmatpush1.msra.mxu0 0.0
    %3678 = vmatprep.subr.mxu0 0.0
    %3679 = vmatpush1.msra.mxu0 0.0
    %3680 = vmatprep.subr.mxu0 0.0
    %3681 = vmatpush1.msra.mxu0 0.0
    %3682 = vmatprep.subr.mxu0 0.0
    %3683 = vmatpush1.msra.mxu0 0.0
    %3684 = vmatprep.subr.mxu0 0.0
    %3685 = vmatpush1.msra.mxu0 0.0
    %3686 = vmatprep.subr.mxu0 0.0
    %3687 = vmatpush1.msra.mxu0 0.0
    %3688 = vmatprep.subr.mxu0 0.0
    %3689 = vmatpush1.msra.mxu0 0.0
    %3690 = vmatprep.subr.mxu0 0.0
    %3691 = vmatpush1.msra.mxu0 0.0
    %3692 = vmatprep.subr.mxu0 0.0
    %3693 = vmatpush1.msra.mxu0 0.0
    %3694 = vmatprep.subr.mxu0 0.0
    %3695 = vmatpush1.msra.mxu0 0.0
    %3696 = vmatprep.subr.mxu0 0.0
    %3697 = vmatpush1.msra.mxu0 0.0
    %3698 = vmatprep.subr.mxu0 0.0
    %3699 = vmatpush1.msra.mxu0 0.0
    %3700 = vmatprep.subr.mxu0 0.0
    %3701 = vmatpush1.msra.mxu0 %v2522
    %3702 = vmatprep.subr.mxu0 0.0
    %3703 = vmatpush1.msra.mxu0 %v2521
    %3704 = vmatprep.subr.mxu0 0.0
    %3705 = vmatpush1.msra.mxu0 %v2520
    %3706 = vmatprep.subr.mxu0 0.0
    %3707 = vmatpush1.msra.mxu0 %v2519
    %3708 = vmatprep.subr.mxu0 0.0
    %3709 = vmatpush2.msra.mxu0 0.0
    %3710 = vmatprep.subr.mxu0 0.0
    %3711 = vmatpush2.msra.mxu0 0.0
    %3712 = vmatprep.subr.mxu0 0.0
    %3713 = vmatpush2.msra.mxu0 0.0
    %3714 = vmatprep.subr.mxu0 0.0
    %3715 = vmatpush2.msra.mxu0 0.0
    %3716 = vmatprep.subr.mxu0 0.0
    %3717 = vmatpush2.msra.mxu0 0.0
    %3718 = vmatprep.subr.mxu0 0.0
    %3719 = vmatpush2.msra.mxu0 0.0
    %3720 = vmatprep.subr.mxu0 0.0
    %3721 = vmatpush2.msra.mxu0 0.0
    %3722 = vmatprep.subr.mxu0 0.0
    %3723 = vmatpush2.msra.mxu0 0.0
    %3724 = vmatprep.subr.mxu0 0.0
    %3725 = vmatpush2.msra.mxu0 0.0
    %3726 = vmatprep.subr.mxu0 0.0
    %3727 = vmatpush2.msra.mxu0 0.0
    %3728 = vmatprep.subr.mxu0 0.0
    %3729 = vmatpush2.msra.mxu0 0.0
    %3730 = vmatprep.subr.mxu0 0.0
    %3731 = vmatpush2.msra.mxu0 0.0
    %3732 = vmatprep.subr.mxu0 0.0
    %3733 = vmatpush2.msra.mxu0 0.0
    %3734 = vmatprep.subr.mxu0 0.0
    %3735 = vmatpush2.msra.mxu0 0.0
    %3736 = vmatprep.subr.mxu0 0.0
    %3737 = vmatpush2.msra.mxu0 0.0
    %3738 = vmatprep.subr.mxu0 0.0
    %3739 = vmatpush2.msra.mxu0 0.0
    %3740 = vmatprep.mubr.f32.mxu0 0.0
    %3741 = vmatmul.mubr.f32.gmra.mxu0 %v3674
    %v3742 = vpop.f32.mrf.mxu0
    %v3743 = vadd.f32 0.0, %v3742
    %v3744 = vpop.f32.mrf.mxu0
    %3745 = vdwg.mxu0
    %v3747 = vrot.slane %v3743, 4
    %v3749 = vadd.f32 %v2513, %v3747
    %v3750 = vxor.u32 %v3749, 2147483648
    %v3751 = vmul.f32 %v3750, 1.442695
    %v3752 = vpow.pop %v3751
    %v3753 = vadd.f32 %v3752, 1.0
    %v3754 = vrcp.pop %v3753
    %v3755 = vmul.f32 1.0, %v3754
    %v3756 = vtanh.pop %v3749
    %v3758 = vrot.slane %v3557, 2
    %v3760 = vmul.f32 %v3755, %v3758
    %3762 = vrot.lane.b32.xlu0 %v3756, 64
    %v3763 = vpop.permute.xlu0 %3762
    %v3765 = vmul.f32 %v3755, %v3763
    %3767 = vrot.lane.b32.xlu0 %v3765, 32
    %v3768 = vpop.permute.xlu0 %3767
    %v3770 = vadd.f32 %v3760, %v3768
    %v3771 = vtanh.pop %v3770
    %3773 = vrot.lane.b32.xlu0 %v3771, 64
    %v3774 = vpop.permute.xlu0 %3773
    %v3776 = vmul.f32 %v3755, %v3774
    %v3778 = vrot.slane %v3669, 2
    %3779 = vrot.lane.b32.xlu0 %v3778, 32
    %v3780 = vpop.permute.xlu0 %3779
    %v3781 = vsel %vm154, %v3780, 0
    %3783 = vmatprep.subr.mxu0 0.0
    %3784 = vmatpush1.msra.mxu0 0.0
    %3785 = vmatprep.subr.mxu0 0.0
    %3786 = vmatpush1.msra.mxu0 0.0
    %3787 = vmatprep.subr.mxu0 0.0
    %3788 = vmatpush1.msra.mxu0 0.0
    %3789 = vmatprep.subr.mxu0 0.0
    %3790 = vmatpush1.msra.mxu0 0.0
    %3791 = vmatprep.subr.mxu0 0.0
    %3792 = vmatpush1.msra.mxu0 0.0
    %3793 = vmatprep.subr.mxu0 0.0
    %3794 = vmatpush1.msra.mxu0 0.0
    %3795 = vmatprep.subr.mxu0 0.0
    %3796 = vmatpush1.msra.mxu0 0.0
    %3797 = vmatprep.subr.mxu0 0.0
    %3798 = vmatpush1.msra.mxu0 0.0
    %3799 = vmatprep.subr.mxu0 0.0
    %3800 = vmatpush1.msra.mxu0 0.0
    %3801 = vmatprep.subr.mxu0 0.0
    %3802 = vmatpush1.msra.mxu0 0.0
    %3803 = vmatprep.subr.mxu0 0.0
    %3804 = vmatpush1.msra.mxu0 0.0
    %3805 = vmatprep.subr.mxu0 0.0
    %3806 = vmatpush1.msra.mxu0 0.0
    %3807 = vmatprep.subr.mxu0 0.0
    %3808 = vmatpush1.msra.mxu0 %v2518
    %3809 = vmatprep.subr.mxu0 0.0
    %3810 = vmatpush1.msra.mxu0 %v2517
    %3811 = vmatprep.subr.mxu0 0.0
    %3812 = vmatpush1.msra.mxu0 %v2516
    %3813 = vmatprep.subr.mxu0 0.0
    %3814 = vmatpush1.msra.mxu0 %v2515
    %3815 = vmatprep.subr.mxu0 0.0
    %3816 = vmatpush2.msra.mxu0 0.0
    %3817 = vmatprep.subr.mxu0 0.0
    %3818 = vmatpush2.msra.mxu0 0.0
    %3819 = vmatprep.subr.mxu0 0.0
    %3820 = vmatpush2.msra.mxu0 0.0
    %3821 = vmatprep.subr.mxu0 0.0
    %3822 = vmatpush2.msra.mxu0 0.0
    %3823 = vmatprep.subr.mxu0 0.0
    %3824 = vmatpush2.msra.mxu0 0.0
    %3825 = vmatprep.subr.mxu0 0.0
    %3826 = vmatpush2.msra.mxu0 0.0
    %3827 = vmatprep.subr.mxu0 0.0
    %3828 = vmatpush2.msra.mxu0 0.0
    %3829 = vmatprep.subr.mxu0 0.0
    %3830 = vmatpush2.msra.mxu0 0.0
    %3831 = vmatprep.subr.mxu0 0.0
    %3832 = vmatpush2.msra.mxu0 0.0
    %3833 = vmatprep.subr.mxu0 0.0
    %3834 = vmatpush2.msra.mxu0 0.0
    %3835 = vmatprep.subr.mxu0 0.0
    %3836 = vmatpush2.msra.mxu0 0.0
    %3837 = vmatprep.subr.mxu0 0.0
    %3838 = vmatpush2.msra.mxu0 0.0
    %3839 = vmatprep.subr.mxu0 0.0
    %3840 = vmatpush2.msra.mxu0 0.0
    %3841 = vmatprep.subr.mxu0 0.0
    %3842 = vmatpush2.msra.mxu0 0.0
    %3843 = vmatprep.subr.mxu0 0.0
    %3844 = vmatpush2.msra.mxu0 0.0
    %3845 = vmatprep.subr.mxu0 0.0
    %3846 = vmatpush2.msra.mxu0 0.0
    %3847 = vmatprep.mubr.f32.mxu0 0.0
    %3848 = vmatmul.mubr.f32.gmra.mxu0 %v3781
    %v3849 = vpop.f32.mrf.mxu0
    %v3850 = vadd.f32 0.0, %v3849
    %v3851 = vpop.f32.mrf.mxu0
    %3852 = vdwg.mxu0
    %v3854 = vrot.slane %v3850, 4
    %v3856 = vadd.f32 %v2347, %v3854
    %v3857 = vxor.u32 %v3856, 2147483648
    %v3858 = vmul.f32 %v3857, 1.442695
    %v3859 = vpow.pop %v3858
    %v3860 = vadd.f32 %v3859, 1.0
    %v3861 = vrcp.pop %v3860
    %v3862 = vmul.f32 1.0, %v3861
    %v3863 = vtanh.pop %v3856
    %v3865 = vrot.slane %v3663, 6
    %v3867 = vmul.f32 %v3862, %v3865
    %3869 = vrot.lane.b32.xlu0 %v3863, 64
    %v3870 = vpop.permute.xlu0 %3869
    %v3872 = vmul.f32 %v3862, %v3870
    %3874 = vrot.lane.b32.xlu0 %v3872, 32
    %v3875 = vpop.permute.xlu0 %3874
    %v3877 = vadd.f32 %v3867, %v3875
    %v3878 = vtanh.pop %v3877
    %3880 = vrot.lane.b32.xlu0 %v3878, 64
    %v3881 = vpop.permute.xlu0 %3880
    %v3883 = vmul.f32 %v3862, %v3881
    %v3885 = vrot.slane %v3776, 4
    %3886 = vrot.lane.b32.xlu0 %v3885, 32
    %v3887 = vpop.permute.xlu0 %3886
    %v3888 = vsel %vm154, %v3887, 0
    %3890 = vmatprep.subr.mxu0 0.0
    %3891 = vmatpush1.msra.mxu0 0.0
    %3892 = vmatprep.subr.mxu0 0.0
    %3893 = vmatpush1.msra.mxu0 0.0
    %3894 = vmatprep.subr.mxu0 0.0
    %3895 = vmatpush1.msra.mxu0 0.0
    %3896 = vmatprep.subr.mxu0 0.0
    %3897 = vmatpush1.msra.mxu0 0.0
    %3898 = vmatprep.subr.mxu0 0.0
    %3899 = vmatpush1.msra.mxu0 0.0
    %3900 = vmatprep.subr.mxu0 0.0
    %3901 = vmatpush1.msra.mxu0 0.0
    %3902 = vmatprep.subr.mxu0 0.0
    %3903 = vmatpush1.msra.mxu0 0.0
    %3904 = vmatprep.subr.mxu0 0.0
    %3905 = vmatpush1.msra.mxu0 0.0
    %3906 = vmatprep.subr.mxu0 0.0
    %3907 = vmatpush1.msra.mxu0 0.0
    %3908 = vmatprep.subr.mxu0 0.0
    %3909 = vmatpush1.msra.mxu0 0.0
    %3910 = vmatprep.subr.mxu0 0.0
    %3911 = vmatpush1.msra.mxu0 0.0
    %3912 = vmatprep.subr.mxu0 0.0
    %3913 = vmatpush1.msra.mxu0 0.0
    %3914 = vmatprep.subr.mxu0 0.0
    %3915 = vmatpush1.msra.mxu0 %v2522
    %3916 = vmatprep.subr.mxu0 0.0
    %3917 = vmatpush1.msra.mxu0 %v2521
    %3918 = vmatprep.subr.mxu0 0.0
    %3919 = vmatpush1.msra.mxu0 %v2520
    %3920 = vmatprep.subr.mxu0 0.0
    %3921 = vmatpush1.msra.mxu0 %v2519
    %3922 = vmatprep.subr.mxu0 0.0
    %3923 = vmatpush2.msra.mxu0 0.0
    %3924 = vmatprep.subr.mxu0 0.0
    %3925 = vmatpush2.msra.mxu0 0.0
    %3926 = vmatprep.subr.mxu0 0.0
    %3927 = vmatpush2.msra.mxu0 0.0
    %3928 = vmatprep.subr.mxu0 0.0
    %3929 = vmatpush2.msra.mxu0 0.0
    %3930 = vmatprep.subr.mxu0 0.0
    %3931 = vmatpush2.msra.mxu0 0.0
    %3932 = vmatprep.subr.mxu0 0.0
    %3933 = vmatpush2.msra.mxu0 0.0
    %3934 = vmatprep.subr.mxu0 0.0
    %3935 = vmatpush2.msra.mxu0 0.0
    %3936 = vmatprep.subr.mxu0 0.0
    %3937 = vmatpush2.msra.mxu0 0.0
    %3938 = vmatprep.subr.mxu0 0.0
    %3939 = vmatpush2.msra.mxu0 0.0
    %3940 = vmatprep.subr.mxu0 0.0
    %3941 = vmatpush2.msra.mxu0 0.0
    %3942 = vmatprep.subr.mxu0 0.0
    %3943 = vmatpush2.msra.mxu0 0.0
    %3944 = vmatprep.subr.mxu0 0.0
    %3945 = vmatpush2.msra.mxu0 0.0
    %3946 = vmatprep.subr.mxu0 0.0
    %3947 = vmatpush2.msra.mxu0 0.0
    %3948 = vmatprep.subr.mxu0 0.0
    %3949 = vmatpush2.msra.mxu0 0.0
    %3950 = vmatprep.subr.mxu0 0.0
    %3951 = vmatpush2.msra.mxu0 0.0
    %3952 = vmatprep.subr.mxu0 0.0
    %3953 = vmatpush2.msra.mxu0 0.0
    %3954 = vmatprep.mubr.f32.mxu0 0.0
    %3955 = vmatmul.mubr.f32.gmra.mxu0 %v3888
    %v3956 = vpop.f32.mrf.mxu0
    %v3957 = vadd.f32 0.0, %v3956
    %v3958 = vpop.f32.mrf.mxu0
    %3959 = vdwg.mxu0
    %v3961 = vrot.slane %v3957, 6
    %v3963 = vadd.f32 %v2513, %v3961
    %v3964 = vxor.u32 %v3963, 2147483648
    %v3965 = vmul.f32 %v3964, 1.442695
    %v3966 = vpow.pop %v3965
    %v3967 = vadd.f32 %v3966, 1.0
    %v3968 = vrcp.pop %v3967
    %v3969 = vmul.f32 1.0, %v3968
    %v3970 = vtanh.pop %v3963
    %v3972 = vrot.slane %v3770, 2
    %v3974 = vmul.f32 %v3969, %v3972
    %3976 = vrot.lane.b32.xlu0 %v3970, 64
    %v3977 = vpop.permute.xlu0 %3976
    %v3979 = vmul.f32 %v3969, %v3977
    %3981 = vrot.lane.b32.xlu0 %v3979, 32
    %v3982 = vpop.permute.xlu0 %3981
    %v3984 = vadd.f32 %v3974, %v3982
    %v3985 = vtanh.pop %v3984
    %3987 = vrot.lane.b32.xlu0 %v3985, 64
    %v3988 = vpop.permute.xlu0 %3987
    %v3990 = vmul.f32 %v3969, %v3988
    %v3992 = vrot.slane %v3883, 4
    %3993 = vrot.lane.b32.xlu0 %v3992, 32
    %v3994 = vpop.permute.xlu0 %3993
    %v3995 = vsel %vm154, %v3994, 0
    %3997 = vmatprep.subr.mxu0 0.0
    %3998 = vmatpush1.msra.mxu0 0.0
    %3999 = vmatprep.subr.mxu0 0.0
    %4000 = vmatpush1.msra.mxu0 0.0
    %4001 = vmatprep.subr.mxu0 0.0
    %4002 = vmatpush1.msra.mxu0 0.0
    %4003 = vmatprep.subr.mxu0 0.0
    %4004 = vmatpush1.msra.mxu0 0.0
    %4005 = vmatprep.subr.mxu0 0.0
    %4006 = vmatpush1.msra.mxu0 0.0
    %4007 = vmatprep.subr.mxu0 0.0
    %4008 = vmatpush1.msra.mxu0 0.0
    %4009 = vmatprep.subr.mxu0 0.0
    %4010 = vmatpush1.msra.mxu0 0.0
    %4011 = vmatprep.subr.mxu0 0.0
    %4012 = vmatpush1.msra.mxu0 0.0
    %4013 = vmatprep.subr.mxu0 0.0
    %4014 = vmatpush1.msra.mxu0 0.0
    %4015 = vmatprep.subr.mxu0 0.0
    %4016 = vmatpush1.msra.mxu0 0.0
    %4017 = vmatprep.subr.mxu0 0.0
    %4018 = vmatpush1.msra.mxu0 0.0
    %4019 = vmatprep.subr.mxu0 0.0
    %4020 = vmatpush1.msra.mxu0 0.0
    %4021 = vmatprep.subr.mxu0 0.0
    %4022 = vmatpush1.msra.mxu0 %v2518
    %4023 = vmatprep.subr.mxu0 0.0
    %4024 = vmatpush1.msra.mxu0 %v2517
    %4025 = vmatprep.subr.mxu0 0.0
    %4026 = vmatpush1.msra.mxu0 %v2516
    %4027 = vmatprep.subr.mxu0 0.0
    %4028 = vmatpush1.msra.mxu0 %v2515
    %4029 = vmatprep.subr.mxu0 0.0
    %4030 = vmatpush2.msra.mxu0 0.0
    %4031 = vmatprep.subr.mxu0 0.0
    %4032 = vmatpush2.msra.mxu0 0.0
    %4033 = vmatprep.subr.mxu0 0.0
    %4034 = vmatpush2.msra.mxu0 0.0
    %4035 = vmatprep.subr.mxu0 0.0
    %4036 = vmatpush2.msra.mxu0 0.0
    %4037 = vmatprep.subr.mxu0 0.0
    %4038 = vmatpush2.msra.mxu0 0.0
    %4039 = vmatprep.subr.mxu0 0.0
    %4040 = vmatpush2.msra.mxu0 0.0
    %4041 = vmatprep.subr.mxu0 0.0
    %4042 = vmatpush2.msra.mxu0 0.0
    %4043 = vmatprep.subr.mxu0 0.0
    %4044 = vmatpush2.msra.mxu0 0.0
    %4045 = vmatprep.subr.mxu0 0.0
    %4046 = vmatpush2.msra.mxu0 0.0
    %4047 = vmatprep.subr.mxu0 0.0
    %4048 = vmatpush2.msra.mxu0 0.0
    %4049 = vmatprep.subr.mxu0 0.0
    %4050 = vmatpush2.msra.mxu0 0.0
    %4051 = vmatprep.subr.mxu0 0.0
    %4052 = vmatpush2.msra.mxu0 0.0
    %4053 = vmatprep.subr.mxu0 0.0
    %4054 = vmatpush2.msra.mxu0 0.0
    %4055 = vmatprep.subr.mxu0 0.0
    %4056 = vmatpush2.msra.mxu0 0.0
    %4057 = vmatprep.subr.mxu0 0.0
    %4058 = vmatpush2.msra.mxu0 0.0
    %4059 = vmatprep.subr.mxu0 0.0
    %4060 = vmatpush2.msra.mxu0 0.0
    %4061 = vmatprep.mubr.f32.mxu0 0.0
    %4062 = vmatmul.mubr.f32.gmra.mxu0 %v3995
    %v4063 = vpop.f32.mrf.mxu0
    %v4064 = vadd.f32 0.0, %v4063
    %v4065 = vpop.f32.mrf.mxu0
    %4066 = vdwg.mxu0
    %v4068 = vrot.slane %v4064, 2
    %v4070 = vadd.f32 %v2347, %v4068
    %v4071 = vxor.u32 %v4070, 2147483648
    %v4072 = vmul.f32 %v4071, 1.442695
    %v4073 = vpow.pop %v4072
    %v4074 = vadd.f32 %v4073, 1.0
    %v4075 = vrcp.pop %v4074
    %v4076 = vmul.f32 1.0, %v4075
    %v4077 = vtanh.pop %v4070
    %v4079 = vrot.slane %v3877, 6
    %v4081 = vmul.f32 %v4076, %v4079
    %4083 = vrot.lane.b32.xlu0 %v4077, 64
    %v4084 = vpop.permute.xlu0 %4083
    %v4086 = vmul.f32 %v4076, %v4084
    %4088 = vrot.lane.b32.xlu0 %v4086, 32
    %v4089 = vpop.permute.xlu0 %4088
    %v4091 = vadd.f32 %v4081, %v4089
    %v4092 = vtanh.pop %v4091
    %4094 = vrot.lane.b32.xlu0 %v4092, 64
    %v4095 = vpop.permute.xlu0 %4094
    %v4097 = vmul.f32 %v4076, %v4095
    %v4099 = vrot.slane %v3990, 2
    %4100 = vrot.lane.b32.xlu0 %v4099, 32
    %v4101 = vpop.permute.xlu0 %4100
    %v4102 = vsel %vm154, %v4101, 0
    %4104 = vmatprep.subr.mxu0 0.0
    %4105 = vmatpush1.msra.mxu0 0.0
    %4106 = vmatprep.subr.mxu0 0.0
    %4107 = vmatpush1.msra.mxu0 0.0
    %4108 = vmatprep.subr.mxu0 0.0
    %4109 = vmatpush1.msra.mxu0 0.0
    %4110 = vmatprep.subr.mxu0 0.0
    %4111 = vmatpush1.msra.mxu0 0.0
    %4112 = vmatprep.subr.mxu0 0.0
    %4113 = vmatpush1.msra.mxu0 0.0
    %4114 = vmatprep.subr.mxu0 0.0
    %4115 = vmatpush1.msra.mxu0 0.0
    %4116 = vmatprep.subr.mxu0 0.0
    %4117 = vmatpush1.msra.mxu0 0.0
    %4118 = vmatprep.subr.mxu0 0.0
    %4119 = vmatpush1.msra.mxu0 0.0
    %4120 = vmatprep.subr.mxu0 0.0
    %4121 = vmatpush1.msra.mxu0 0.0
    %4122 = vmatprep.subr.mxu0 0.0
    %4123 = vmatpush1.msra.mxu0 0.0
    %4124 = vmatprep.subr.mxu0 0.0
    %4125 = vmatpush1.msra.mxu0 0.0
    %4126 = vmatprep.subr.mxu0 0.0
    %4127 = vmatpush1.msra.mxu0 0.0
    %4128 = vmatprep.subr.mxu0 0.0
    %4129 = vmatpush1.msra.mxu0 %v2522
    %4130 = vmatprep.subr.mxu0 0.0
    %4131 = vmatpush1.msra.mxu0 %v2521
    %4132 = vmatprep.subr.mxu0 0.0
    %4133 = vmatpush1.msra.mxu0 %v2520
    %4134 = vmatprep.subr.mxu0 0.0
    %4135 = vmatpush1.msra.mxu0 %v2519
    %4136 = vmatprep.subr.mxu0 0.0
    %4137 = vmatpush2.msra.mxu0 0.0
    %4138 = vmatprep.subr.mxu0 0.0
    %4139 = vmatpush2.msra.mxu0 0.0
    %4140 = vmatprep.subr.mxu0 0.0
    %4141 = vmatpush2.msra.mxu0 0.0
    %4142 = vmatprep.subr.mxu0 0.0
    %4143 = vmatpush2.msra.mxu0 0.0
    %4144 = vmatprep.subr.mxu0 0.0
    %4145 = vmatpush2.msra.mxu0 0.0
    %4146 = vmatprep.subr.mxu0 0.0
    %4147 = vmatpush2.msra.mxu0 0.0
    %4148 = vmatprep.subr.mxu0 0.0
    %4149 = vmatpush2.msra.mxu0 0.0
    %4150 = vmatprep.subr.mxu0 0.0
    %4151 = vmatpush2.msra.mxu0 0.0
    %4152 = vmatprep.subr.mxu0 0.0
    %4153 = vmatpush2.msra.mxu0 0.0
    %4154 = vmatprep.subr.mxu0 0.0
    %4155 = vmatpush2.msra.mxu0 0.0
    %4156 = vmatprep.subr.mxu0 0.0
    %4157 = vmatpush2.msra.mxu0 0.0
    %4158 = vmatprep.subr.mxu0 0.0
    %4159 = vmatpush2.msra.mxu0 0.0
    %4160 = vmatprep.subr.mxu0 0.0
    %4161 = vmatpush2.msra.mxu0 0.0
    %4162 = vmatprep.subr.mxu0 0.0
    %4163 = vmatpush2.msra.mxu0 0.0
    %4164 = vmatprep.subr.mxu0 0.0
    %4165 = vmatpush2.msra.mxu0 0.0
    %4166 = vmatprep.subr.mxu0 0.0
    %4167 = vmatpush2.msra.mxu0 0.0
    %4168 = vmatprep.mubr.f32.mxu0 0.0
    %4169 = vmatmul.mubr.f32.gmra.mxu0 %v4102
    %v4170 = vpop.f32.mrf.mxu0
    %v4171 = vadd.f32 0.0, %v4170
    %v4172 = vpop.f32.mrf.mxu0
    %4173 = vdwg.mxu0
    %v4174 = vadd.f32 %v2513, %v4171
    %v4175 = vxor.u32 %v4174, 2147483648
    %v4176 = vmul.f32 %v4175, 1.442695
    %v4177 = vpow.pop %v4176
    %v4178 = vadd.f32 %v4177, 1.0
    %v4179 = vrcp.pop %v4178
    %v4180 = vmul.f32 1.0, %v4179
    %v4181 = vtanh.pop %v4174
    %v4183 = vrot.slane %v3984, 2
    %v4185 = vmul.f32 %v4180, %v4183
    %4187 = vrot.lane.b32.xlu0 %v4181, 64
    %v4188 = vpop.permute.xlu0 %4187
    %v4190 = vmul.f32 %v4180, %v4188
    %4192 = vrot.lane.b32.xlu0 %v4190, 32
    %v4193 = vpop.permute.xlu0 %4192
    %v4195 = vadd.f32 %v4185, %v4193
    %v4196 = vtanh.pop %v4195
    %4198 = vrot.lane.b32.xlu0 %v4196, 64
    %v4199 = vpop.permute.xlu0 %4198
    %v4201 = vmul.f32 %v4180, %v4199
    %v4202 = vld [vmem:[%s16] sm:$0xff]
    %v4203 = vld [vmem:[%s16 + $0x8] sm:$0xff]
    %v4204 = vld [vmem:[%s16 + $0x10] sm:$0xff]
    %v4205 = vld [vmem:[%s16 + $0x18] sm:$0xff]
    %v4206 = vld [vmem:[%s16 + $0x20] sm:$0xff]
    %v4207 = vld [vmem:[%s16 + $0x28] sm:$0xff]
    %v4208 = vld [vmem:[%s16 + $0x30] sm:$0xff]
    %v4209 = vld [vmem:[%s16 + $0x38] sm:$0xff]
    %v4210 = vld [vmem:[%s16 + $0x40] sm:$0xff]
    %v4211 = vld [vmem:[%s16 + $0x48] sm:$0xff]
    %v4212 = vld [vmem:[%s16 + $0x50] sm:$0xff]
    %v4213 = vld [vmem:[%s16 + $0x58] sm:$0xff]
    %v4214 = vld [vmem:[%s16 + $0x60] sm:$0xff]
    %v4215 = vld [vmem:[%s16 + $0x68] sm:$0xff]
    %v4216 = vld [vmem:[%s16 + $0x70] sm:$0xff]
    %v4217 = vld [vmem:[%s16 + $0x78] sm:$0xff]
    %4218 = vmatprep.subr.mxu0 0.0
    %4219 = vmatpush1.msra.mxu0 0.0
    %4220 = vmatprep.subr.mxu0 0.0
    %4221 = vmatpush1.msra.mxu0 0.0
    %4222 = vmatprep.subr.mxu0 0.0
    %4223 = vmatpush1.msra.mxu0 0.0
    %4224 = vmatprep.subr.mxu0 0.0
    %4225 = vmatpush1.msra.mxu0 0.0
    %4226 = vmatprep.subr.mxu0 0.0
    %4227 = vmatpush1.msra.mxu0 0.0
    %4228 = vmatprep.subr.mxu0 0.0
    %4229 = vmatpush1.msra.mxu0 0.0
    %4230 = vmatprep.subr.mxu0 0.0
    %4231 = vmatpush1.msra.mxu0 0.0
    %4232 = vmatprep.subr.mxu0 0.0
    %4233 = vmatpush1.msra.mxu0 0.0
    %4234 = vmatprep.subr.mxu0 0.0
    %4235 = vmatpush1.msra.mxu0 0.0
    %4236 = vmatprep.subr.mxu0 0.0
    %4237 = vmatpush1.msra.mxu0 0.0
    %4238 = vmatprep.subr.mxu0 0.0
    %4239 = vmatpush1.msra.mxu0 0.0
    %4240 = vmatprep.subr.mxu0 0.0
    %4241 = vmatpush1.msra.mxu0 0.0
    %4242 = vmatprep.subr.mxu0 0.0
    %4243 = vmatpush1.msra.mxu0 %v4209
    %4244 = vmatprep.subr.mxu0 0.0
    %4245 = vmatpush1.msra.mxu0 %v4208
    %4246 = vmatprep.subr.mxu0 0.0
    %4247 = vmatpush1.msra.mxu0 %v4207
    %4248 = vmatprep.subr.mxu0 0.0
    %4249 = vmatpush1.msra.mxu0 %v4206
    %4250 = vmatprep.subr.mxu0 0.0
    %4251 = vmatpush2.msra.mxu0 0.0
    %4252 = vmatprep.subr.mxu0 0.0
    %4253 = vmatpush2.msra.mxu0 0.0
    %4254 = vmatprep.subr.mxu0 0.0
    %4255 = vmatpush2.msra.mxu0 0.0
    %4256 = vmatprep.subr.mxu0 0.0
    %4257 = vmatpush2.msra.mxu0 0.0
    %4258 = vmatprep.subr.mxu0 0.0
    %4259 = vmatpush2.msra.mxu0 0.0
    %4260 = vmatprep.subr.mxu0 0.0
    %4261 = vmatpush2.msra.mxu0 0.0
    %4262 = vmatprep.subr.mxu0 0.0
    %4263 = vmatpush2.msra.mxu0 0.0
    %4264 = vmatprep.subr.mxu0 0.0
    %4265 = vmatpush2.msra.mxu0 0.0
    %4266 = vmatprep.subr.mxu0 0.0
    %4267 = vmatpush2.msra.mxu0 0.0
    %4268 = vmatprep.subr.mxu0 0.0
    %4269 = vmatpush2.msra.mxu0 0.0
    %4270 = vmatprep.subr.mxu0 0.0
    %4271 = vmatpush2.msra.mxu0 0.0
    %4272 = vmatprep.subr.mxu0 0.0
    %4273 = vmatpush2.msra.mxu0 0.0
    %4274 = vmatprep.subr.mxu0 0.0
    %4275 = vmatpush2.msra.mxu0 0.0
    %4276 = vmatprep.subr.mxu0 0.0
    %4277 = vmatpush2.msra.mxu0 0.0
    %4278 = vmatprep.subr.mxu0 0.0
    %4279 = vmatpush2.msra.mxu0 0.0
    %4280 = vmatprep.subr.mxu0 0.0
    %4281 = vmatpush2.msra.mxu0 0.0
    %4282 = vmatprep.mubr.f32.mxu0 0.0
    %4283 = vmatmul.mubr.f32.gmra.mxu0 %v2826
    %v4284 = vpop.f32.mrf.mxu0
    %v4285 = vadd.f32 0.0, %v4284
    %v4286 = vpop.f32.mrf.mxu0
    %4287 = vdwg.mxu0
    %v4289 = vrot.slane %v4097, 6
    %4290 = vrot.lane.b32.xlu0 %v4289, 32
    %v4291 = vpop.permute.xlu0 %4290
    %v4292 = vsel %vm154, %v4291, 0
    %4294 = vmatprep.subr.mxu0 0.0
    %4295 = vmatpush1.msra.mxu0 0.0
    %4296 = vmatprep.subr.mxu0 0.0
    %4297 = vmatpush1.msra.mxu0 0.0
    %4298 = vmatprep.subr.mxu0 0.0
    %4299 = vmatpush1.msra.mxu0 0.0
    %4300 = vmatprep.subr.mxu0 0.0
    %4301 = vmatpush1.msra.mxu0 0.0
    %4302 = vmatprep.subr.mxu0 0.0
    %4303 = vmatpush1.msra.mxu0 0.0
    %4304 = vmatprep.subr.mxu0 0.0
    %4305 = vmatpush1.msra.mxu0 0.0
    %4306 = vmatprep.subr.mxu0 0.0
    %4307 = vmatpush1.msra.mxu0 0.0
    %4308 = vmatprep.subr.mxu0 0.0
    %4309 = vmatpush1.msra.mxu0 0.0
    %4310 = vmatprep.subr.mxu0 0.0
    %4311 = vmatpush1.msra.mxu0 0.0
    %4312 = vmatprep.subr.mxu0 0.0
    %4313 = vmatpush1.msra.mxu0 0.0
    %4314 = vmatprep.subr.mxu0 0.0
    %4315 = vmatpush1.msra.mxu0 0.0
    %4316 = vmatprep.subr.mxu0 0.0
    %4317 = vmatpush1.msra.mxu0 0.0
    %4318 = vmatprep.subr.mxu0 0.0
    %4319 = vmatpush1.msra.mxu0 %v4205
    %4320 = vmatprep.subr.mxu0 0.0
    %4321 = vmatpush1.msra.mxu0 %v4204
    %4322 = vmatprep.subr.mxu0 0.0
    %4323 = vmatpush1.msra.mxu0 %v4203
    %4324 = vmatprep.subr.mxu0 0.0
    %4325 = vmatpush1.msra.mxu0 %v4202
    %4326 = vmatprep.subr.mxu0 0.0
    %4327 = vmatpush2.msra.mxu0 0.0
    %4328 = vmatprep.subr.mxu0 0.0
    %4329 = vmatpush2.msra.mxu0 0.0
    %4330 = vmatprep.subr.mxu0 0.0
    %4331 = vmatpush2.msra.mxu0 0.0
    %4332 = vmatprep.subr.mxu0 0.0
    %4333 = vmatpush2.msra.mxu0 0.0
    %4334 = vmatprep.subr.mxu0 0.0
    %4335 = vmatpush2.msra.mxu0 0.0
    %4336 = vmatprep.subr.mxu0 0.0
    %4337 = vmatpush2.msra.mxu0 0.0
    %4338 = vmatprep.subr.mxu0 0.0
    %4339 = vmatpush2.msra.mxu0 0.0
    %4340 = vmatprep.subr.mxu0 0.0
    %4341 = vmatpush2.msra.mxu0 0.0
    %4342 = vmatprep.subr.mxu0 0.0
    %4343 = vmatpush2.msra.mxu0 0.0
    %4344 = vmatprep.subr.mxu0 0.0
    %4345 = vmatpush2.msra.mxu0 0.0
    %4346 = vmatprep.subr.mxu0 0.0
    %4347 = vmatpush2.msra.mxu0 0.0
    %4348 = vmatprep.subr.mxu0 0.0
    %4349 = vmatpush2.msra.mxu0 0.0
    %4350 = vmatprep.subr.mxu0 0.0
    %4351 = vmatpush2.msra.mxu0 0.0
    %4352 = vmatprep.subr.mxu0 0.0
    %4353 = vmatpush2.msra.mxu0 0.0
    %4354 = vmatprep.subr.mxu0 0.0
    %4355 = vmatpush2.msra.mxu0 0.0
    %4356 = vmatprep.subr.mxu0 0.0
    %4357 = vmatpush2.msra.mxu0 0.0
    %4358 = vmatprep.mubr.f32.mxu0 0.0
    %4359 = vmatmul.mubr.f32.gmra.mxu0 %v4292
    %v4360 = vpop.f32.mrf.mxu0
    %v4361 = vadd.f32 %v4285, %v4360
    %v4362 = vpop.f32.mrf.mxu0
    %4363 = vdwg.mxu0
    %4364 = vmatprep.subr.mxu0 0.0
    %4365 = vmatpush1.msra.mxu0 0.0
    %4366 = vmatprep.subr.mxu0 0.0
    %4367 = vmatpush1.msra.mxu0 0.0
    %4368 = vmatprep.subr.mxu0 0.0
    %4369 = vmatpush1.msra.mxu0 0.0
    %4370 = vmatprep.subr.mxu0 0.0
    %4371 = vmatpush1.msra.mxu0 0.0
    %4372 = vmatprep.subr.mxu0 0.0
    %4373 = vmatpush1.msra.mxu0 0.0
    %4374 = vmatprep.subr.mxu0 0.0
    %4375 = vmatpush1.msra.mxu0 0.0
    %4376 = vmatprep.subr.mxu0 0.0
    %4377 = vmatpush1.msra.mxu0 0.0
    %4378 = vmatprep.subr.mxu0 0.0
    %4379 = vmatpush1.msra.mxu0 0.0
    %4380 = vmatprep.subr.mxu0 0.0
    %4381 = vmatpush1.msra.mxu0 0.0
    %4382 = vmatprep.subr.mxu0 0.0
    %4383 = vmatpush1.msra.mxu0 0.0
    %4384 = vmatprep.subr.mxu0 0.0
    %4385 = vmatpush1.msra.mxu0 0.0
    %4386 = vmatprep.subr.mxu0 0.0
    %4387 = vmatpush1.msra.mxu0 0.0
    %4388 = vmatprep.subr.mxu0 0.0
    %4389 = vmatpush1.msra.mxu0 %v4213
    %4390 = vmatprep.subr.mxu0 0.0
    %4391 = vmatpush1.msra.mxu0 %v4212
    %4392 = vmatprep.subr.mxu0 0.0
    %4393 = vmatpush1.msra.mxu0 %v4211
    %4394 = vmatprep.subr.mxu0 0.0
    %4395 = vmatpush1.msra.mxu0 %v4210
    %4396 = vmatprep.subr.mxu0 0.0
    %4397 = vmatpush2.msra.mxu0 0.0
    %4398 = vmatprep.subr.mxu0 0.0
    %4399 = vmatpush2.msra.mxu0 0.0
    %4400 = vmatprep.subr.mxu0 0.0
    %4401 = vmatpush2.msra.mxu0 0.0
    %4402 = vmatprep.subr.mxu0 0.0
    %4403 = vmatpush2.msra.mxu0 0.0
    %4404 = vmatprep.subr.mxu0 0.0
    %4405 = vmatpush2.msra.mxu0 0.0
    %4406 = vmatprep.subr.mxu0 0.0
    %4407 = vmatpush2.msra.mxu0 0.0
    %4408 = vmatprep.subr.mxu0 0.0
    %4409 = vmatpush2.msra.mxu0 0.0
    %4410 = vmatprep.subr.mxu0 0.0
    %4411 = vmatpush2.msra.mxu0 0.0
    %4412 = vmatprep.subr.mxu0 0.0
    %4413 = vmatpush2.msra.mxu0 0.0
    %4414 = vmatprep.subr.mxu0 0.0
    %4415 = vmatpush2.msra.mxu0 0.0
    %4416 = vmatprep.subr.mxu0 0.0
    %4417 = vmatpush2.msra.mxu0 0.0
    %4418 = vmatprep.subr.mxu0 0.0
    %4419 = vmatpush2.msra.mxu0 0.0
    %4420 = vmatprep.subr.mxu0 0.0
    %4421 = vmatpush2.msra.mxu0 0.0
    %4422 = vmatprep.subr.mxu0 0.0
    %4423 = vmatpush2.msra.mxu0 0.0
    %4424 = vmatprep.subr.mxu0 0.0
    %4425 = vmatpush2.msra.mxu0 0.0
    %4426 = vmatprep.subr.mxu0 0.0
    %4427 = vmatpush2.msra.mxu0 0.0
    %4428 = vmatprep.mubr.f32.mxu0 0.0
    %4429 = vmatmul.mubr.f32.gmra.mxu0 %v2719
    %v4430 = vpop.f32.mrf.mxu0
    %v4431 = vadd.f32 0.0, %v4430
    %v4432 = vpop.f32.mrf.mxu0
    %4433 = vdwg.mxu0
    %v4434 = vadd.f32 %v4361, %v4431
    %4436 = vrot.lane.b32.xlu0 %v4201, 32
    %v4437 = vpop.permute.xlu0 %4436
    %v4438 = vsel %vm154, %v4437, 0
    %4440 = vmatprep.subr.mxu0 0.0
    %4441 = vmatpush1.msra.mxu0 0.0
    %4442 = vmatprep.subr.mxu0 0.0
    %4443 = vmatpush1.msra.mxu0 0.0
    %4444 = vmatprep.subr.mxu0 0.0
    %4445 = vmatpush1.msra.mxu0 0.0
    %4446 = vmatprep.subr.mxu0 0.0
    %4447 = vmatpush1.msra.mxu0 0.0
    %4448 = vmatprep.subr.mxu0 0.0
    %4449 = vmatpush1.msra.mxu0 0.0
    %4450 = vmatprep.subr.mxu0 0.0
    %4451 = vmatpush1.msra.mxu0 0.0
    %4452 = vmatprep.subr.mxu0 0.0
    %4453 = vmatpush1.msra.mxu0 0.0
    %4454 = vmatprep.subr.mxu0 0.0
    %4455 = vmatpush1.msra.mxu0 0.0
    %4456 = vmatprep.subr.mxu0 0.0
    %4457 = vmatpush1.msra.mxu0 0.0
    %4458 = vmatprep.subr.mxu0 0.0
    %4459 = vmatpush1.msra.mxu0 0.0
    %4460 = vmatprep.subr.mxu0 0.0
    %4461 = vmatpush1.msra.mxu0 0.0
    %4462 = vmatprep.subr.mxu0 0.0
    %4463 = vmatpush1.msra.mxu0 0.0
    %4464 = vmatprep.subr.mxu0 0.0
    %4465 = vmatpush1.msra.mxu0 %v4217
    %4466 = vmatprep.subr.mxu0 0.0
    %4467 = vmatpush1.msra.mxu0 %v4216
    %4468 = vmatprep.subr.mxu0 0.0
    %4469 = vmatpush1.msra.mxu0 %v4215
    %4470 = vmatprep.subr.mxu0 0.0
    %4471 = vmatpush1.msra.mxu0 %v4214
    %4472 = vmatprep.subr.mxu0 0.0
    %4473 = vmatpush2.msra.mxu0 0.0
    %4474 = vmatprep.subr.mxu0 0.0
    %4475 = vmatpush2.msra.mxu0 0.0
    %4476 = vmatprep.subr.mxu0 0.0
    %4477 = vmatpush2.msra.mxu0 0.0
    %4478 = vmatprep.subr.mxu0 0.0
    %4479 = vmatpush2.msra.mxu0 0.0
    %4480 = vmatprep.subr.mxu0 0.0
    %4481 = vmatpush2.msra.mxu0 0.0
    %4482 = vmatprep.subr.mxu0 0.0
    %4483 = vmatpush2.msra.mxu0 0.0
    %4484 = vmatprep.subr.mxu0 0.0
    %4485 = vmatpush2.msra.mxu0 0.0
    %4486 = vmatprep.subr.mxu0 0.0
    %4487 = vmatpush2.msra.mxu0 0.0
    %4488 = vmatprep.subr.mxu0 0.0
    %4489 = vmatpush2.msra.mxu0 0.0
    %4490 = vmatprep.subr.mxu0 0.0
    %4491 = vmatpush2.msra.mxu0 0.0
    %4492 = vmatprep.subr.mxu0 0.0
    %4493 = vmatpush2.msra.mxu0 0.0
    %4494 = vmatprep.subr.mxu0 0.0
    %4495 = vmatpush2.msra.mxu0 0.0
    %4496 = vmatprep.subr.mxu0 0.0
    %4497 = vmatpush2.msra.mxu0 0.0
    %4498 = vmatprep.subr.mxu0 0.0
    %4499 = vmatpush2.msra.mxu0 0.0
    %4500 = vmatprep.subr.mxu0 0.0
    %4501 = vmatpush2.msra.mxu0 0.0
    %4502 = vmatprep.subr.mxu0 0.0
    %4503 = vmatpush2.msra.mxu0 0.0
    %4504 = vmatprep.mubr.f32.mxu0 0.0
    %4505 = vmatmul.mubr.f32.gmra.mxu0 %v4438
    %v4506 = vpop.f32.mrf.mxu0
    %v4507 = vadd.f32 0.0, %v4506
    %v4508 = vpop.f32.mrf.mxu0
    %4509 = vdwg.mxu0
    %v4510 = vadd.f32 %v4434, %v4507
    %v4511 = vld [vmem:[%s17] sm:$0x1]
    %v4513 = vlaneseq
    %v4514 = vshrl.u32 %v4513, 7
    %v4515 = vsub.s32 0, %v4514
    %v4516 = vrot.slane %v4511, %v4515
    %v4518 = vadd.f32 %v4510, %v4516
    %v4519 = vmax.f32 %v4518, 0.0
    %4520 = vst.msk [vmem:[#allocation15] sm:$0x3] %vm619, %v4519
    // Predicated region
    $region98: #{model_forward.1} parent=1 // pred_check
      _
    $region99: #{model_forward.1} parent=1 // pred_check_branch
      %4522 = sbr.rel (0) target = $region101
    $region100: #{model_forward.1} parent=1 // pred_region
      %s4524 = ssub.s32 32, 32
      %4525 = vsyncadd [#allocation6], %s4524
      %s4527 = sshll.u32 [#allocation15], 4
      %s4528 = int_to_ptr.vmem [resolvable:$true] %s4527
      %4530 = dma.vmem_to_hbm [thread:$0]  %s4528, 32, %s18, [#allocation6]
    $region101: #{model_forward.1} parent=1 // pred_fallthru
      _
    // Predicated region
    $region102: #{model_forward.1} parent=1 // pred_check
      _
    $region103: #{model_forward.1} parent=1 // pred_check_branch
      %4532 = sbr.rel (0) target = $region105
    $region104: #{model_forward.1} parent=1 // pred_region
      %4533 = dma.done [#allocation6], 32
    $region105: #{model_forward.1} parent=1 // pred_fallthru
      _
    %4534 = vsyncpa [#allocation5], 1
    %4535 = vsyncpa [#allocation8], 1
    %4536 = vsyncpa [#allocation11], 1
    %4537 = vsyncpa [#allocation14], 1
    %4538 = vsyncpa [#allocation6], 1

</llo_original>
